<compile_context>
chip_gen: v7x
topology: tpu7x:2x2x1
jax: 0.10.0
libtpu: 0.0.40
codegen_flags: <defaults>
</compile_context>

<pallas_src>
import numpy as np
import jax
import jax.numpy as jnp
from jax.experimental import pallas as pl
from jax.experimental.pallas import tpu as pltpu


# ----------------------------- wrapper-side helpers -----------------------------

def _ws_standardize_oihw(w, rho):
    """WSConv2d.forward weight standardization (torch semantics) on an OIHW weight."""
    n = w.shape[1] * w.shape[2] * w.shape[3]
    mu = jnp.mean(w, axis=(1, 2, 3), keepdims=True)
    wc = w - mu
    var = jnp.sum(wc * wc, axis=(1, 2, 3), keepdims=True) / (n - 1)   # unbiased std
    return wc / (jnp.sqrt(var) + 1e-5) * rho


def _pad_group_channels(a, axis, groups, cg, cgp):
    """Zero-pad a channel axis of size groups*cg to groups*cgp, keeping groups contiguous."""
    if cgp == cg:
        return a
    shape = a.shape
    a = a.reshape(shape[:axis] + (groups, cg) + shape[axis + 1:])
    pads = [(0, 0)] * a.ndim
    pads[axis + 1] = (0, cgp - cg)
    a = jnp.pad(a, pads)
    return a.reshape(shape[:axis] + (groups * cgp,) + shape[axis + 1:])


def _to_tap_matrix(w_oihw):
    """(O, I, KH, KW) -> (KH*KW, I, O); tap-major, rows = input channel, cols = output."""
    O, I, KH, KW = w_oihw.shape
    return jnp.transpose(w_oihw, (2, 3, 1, 0)).reshape(KH * KW, I, O)


# ----------------------------------- kernel -------------------------------------

def _make_kernel(*, Ho, Wo, Lo, Wq, Cin_eff, Cpad, cg, cgp, stride, groups,
                 no_relu, has_ds, n_scr_rows):
    s = stride
    Wp2 = Wo + 2                     # row width of the flattened (halo-padded) layout
    inv_cnt = 1.0 / float(cg * Ho * Wo)
    f32 = jnp.float32

    def kernel(*refs):
        if has_ds:
            x_ref, smask_ref, w1_ref, w2_ref, wd_ref, gb_ref, o_ref, pad_flat = refs
        else:
            x_ref, smask_ref, w1_ref, w2_ref, gb_ref, o_ref, pad_flat = refs

        gb = gb_ref[...].astype(f32)                 # (8, Cpad): g1,b1,g2,b2,gd,bd,0,0

        # Hoisted once per step: spatial validity mask broadcast (JAX does not CSE
        # broadcast_in_dim) and per-group channel masks over the padded channel axis.
        smask_b = jnp.broadcast_to(smask_ref[...], (Lo, Cpad))      # 1 on real cols
        ch = jax.lax.broadcasted_iota(jnp.int32, (1, Cpad), 1)
        gmasks = [jnp.logical_and(ch >= g * cgp, ch < g * cgp + cg).astype(f32)
                  for g in range(groups)]

        def group_norm(y_masked, gamma, beta):
            # Single-pass GroupNorm: per-channel sum / sum-of-squares (column reductions),
            # combined per group; var = E[x^2] - mean^2, everything in f32.
            # `y_masked` must already be zero on wrap rows and on padded channels, so the
            # reductions need no further masking.
            s1 = jnp.sum(y_masked, axis=0, keepdims=True)              # (1, Cpad)
            s2 = jnp.sum(y_masked * y_masked, axis=0, keepdims=True)   # (1, Cpad)
            mean_map = jnp.zeros((1, Cpad), f32)
            var_map = jnp.zeros((1, Cpad), f32)
            for g in range(groups):
                m = gmasks[g]
                mu = jnp.sum(s1 * m) * inv_cnt
                ex2 = jnp.sum(s2 * m) * inv_cnt
                mean_map = mean_map + mu * m
                var_map = var_map + (ex2 - mu * mu) * m
            yn = (y_masked - mean_map) * jax.lax.rsqrt(var_map + 1e-5)
            return yn * gamma + beta

        # ---- conv1 (3x3, stride s, pad 1): 9 shifted bf16 MXU matmuls, f32 accumulation.
        #      Accumulator seeded by the first tap (no zero init / extra add).
        acc = None
        for kh in range(3):
            for kw in range(3):
                p = (kh % s) * s + (kw % s)
                off = (kh // s) * Wq + (kw // s)
                win = x_ref[p, pl.ds(off, Lo), :]               # (Lo, Cin_eff) bf16
                d = jnp.dot(win, w1_ref[kh * 3 + kw], preferred_element_type=f32)
                acc = d if acc is None else acc + d
        acc = acc * smask_b                                     # zero wrap rows for GN
        y = jnp.maximum(group_norm(acc, gb[0:1], gb[1:2]), 0.0) * smask_b

        # ---- stage the ReLU output into the flat halo scratch (bf16).  Wrap columns are
        #      already zero (they act as the horizontal halo of conv2); only the small
        #      top/tail border strips need re-zeroing, the interior is fully rewritten.
        top = Wo + 3
        pad_flat[pl.ds(0, top), :] = jnp.zeros((top, Cpad), pad_flat.dtype)
        tail = n_scr_rows - (top + Lo)
        pad_flat[pl.ds(top + Lo, tail), :] = jnp.zeros((tail, Cpad), pad_flat.dtype)
        pad_flat[pl.ds(top, Lo), :] = y.astype(pad_flat.dtype)

        # ---- conv2 (3x3, stride 1, pad 1) + GN
        acc2 = None
        for kh in range(3):
            for kw in range(3):
                win = pad_flat[pl.ds(kh * Wp2 + kw, Lo), :]     # (Lo, Cpad) bf16
                d = jnp.dot(win, w2_ref[kh * 3 + kw], preferred_element_type=f32)
                acc2 = d if acc2 is None else acc2 + d
        y2 = group_norm(acc2 * smask_b, gb[2:3], gb[3:4])

        # ---- residual branch (tap (1,1) of the parity layout).  Wrap rows of xres are
        #      zero by construction (they read the spatial zero padding), so no mask is
        #      needed before the GN reductions.
        pd = (1 % s) * s + (1 % s)
        roff = (1 // s) * Wq + (1 // s)
        xres = x_ref[pd, pl.ds(roff, Lo), :]
        if has_ds:
            res = jnp.dot(xres, wd_ref[...], preferred_element_type=f32)
            res = group_norm(res, gb[4:5], gb[5:6])
        else:
            res = xres.astype(f32)          # identity: Cin_eff == Cpad, same layout

        out = y2 + res
        if not no_relu:
            out = jnp.maximum(out, 0.0)
        # NOTE: wrap columns / padded channels carry un-masked GN residue; the wrapper
        # slices them off, so they are never observed downstream.
        o_ref[...] = out.astype(o_ref.dtype)

    return kernel


# ----------------------------------- wrapper ------------------------------------

def basic_block_ws(x_nchw, params, *, stride, rho=1e-3, no_relu=False, groups=2):
    N, Cin, Hin, Win = map(int, x_nchw.shape)
    w1 = params["conv1_w"]                    # (Cout, Cin, 3, 3)
    Cout = int(w1.shape[0])
    s = int(stride)
    has_ds = (s != 1) or (Cin != Cout)

    Ho = (Hin - 1) // s + 1
    Wo = (Win - 1) // s + 1
    Wq = Wo + 2                               # parity sub-grid width == flat row width
    # rows of the parity sub-grid: Ho output rows + max tap row offset (2//s) + 1 spill
    # row for the flattened +kw reads (intentional over-allocation for s>=3).
    Hq = Ho + (2 // s) + 1
    Lo = Ho * (Wo + 2)                        # flattened (row-padded) output slab length
    n_scr = (Ho + 2) * (Wo + 2) + 8           # conv2 staging scratch rows

    # lane-dense, group-contiguous channel padding (multiple of 128)
    cg = Cout // groups
    Cpad = ((Cout + 127) // 128) * 128
    cgp = Cpad // groups
    assert cgp * groups == Cpad and cgp >= cg

    # --- weights: standardize ONCE on the wrapper side (grid-invariant), group-pad
    #     the channel axes, reorder to tap-major bf16 matrices.
    w1s = _pad_group_channels(_ws_standardize_oihw(w1.astype(jnp.float32), rho),
                              0, groups, cg, cgp)
    w2s = _ws_standardize_oihw(params["conv2_w"].astype(jnp.float32), rho)
    w2s = _pad_group_channels(_pad_group_channels(w2s, 0, groups, cg, cgp),
                              1, groups, cg, cgp)
    if not has_ds:
        # identity residual: x is presented in the padded channel layout, so conv1's
        # input channels follow the same layout.
        w1s = _pad_group_channels(w1s, 1, groups, Cin // groups, cgp)
    w1m = _to_tap_matrix(w1s).astype(jnp.bfloat16)          # (9, Cin_eff, Cpad)
    w2m = _to_tap_matrix(w2s).astype(jnp.bfloat16)          # (9, Cpad, Cpad)

    def _pad_vec(v):
        return _pad_group_channels(v.astype(jnp.float32), 0, groups, cg, cgp)

    zeros_c = jnp.zeros((Cpad,), jnp.float32)
    rows = [_pad_vec(params["bn1_g"]), _pad_vec(params["bn1_b"]),
            _pad_vec(params["bn2_g"]), _pad_vec(params["bn2_b"])]
    if has_ds:
        rows += [_pad_vec(params["ds_g"]), _pad_vec(params["ds_b"])]
    else:
        rows += [zeros_c, zeros_c]
    rows += [zeros_c, zeros_c]
    gb = jnp.stack(rows, axis=0)                            # (8, Cpad) f32

    # --- input: NCHW -> NHWC (+ channel padding on the identity path), 1-px halo pad,
    #     stride-parity (space-to-depth) re-layout and spatial flattening so the kernel
    #     only ever takes unit-stride 2-D slices.
    x = jnp.transpose(x_nchw, (0, 2, 3, 1))
    if not has_ds:
        x = _pad_group_channels(x, 3, groups, Cin // groups, cgp)
    Cin_eff = int(x.shape[3])
    xp = jnp.pad(x.astype(jnp.bfloat16),
                 ((0, 0), (1, s * Hq - Hin - 1), (1, s * Wq - Win - 1), (0, 0)))
    xr = xp.reshape(N, Hq, s, Wq, s, Cin_eff).transpose(0, 2, 4, 1, 3, 5)
    xr = xr.reshape(N, s * s, Hq * Wq, Cin_eff)

    # spatial validity mask over the flattened output slab (wrap columns = 0)
    smask = jnp.asarray(
        (np.arange(Lo) % (Wo + 2) < Wo).astype(np.float32).reshape(Lo, 1))

    kernel = _make_kernel(Ho=Ho, Wo=Wo, Lo=Lo, Wq=Wq, Cin_eff=Cin_eff, Cpad=Cpad,
                          cg=cg, cgp=cgp, stride=s, groups=groups,
                          no_relu=no_relu, has_ds=has_ds, n_scr_rows=n_scr)

    inputs = [xr, smask, w1m, w2m]
    in_specs = [
        pl.BlockSpec((None, s * s, Hq * Wq, Cin_eff), lambda n: (n, 0, 0, 0)),
        pl.BlockSpec((Lo, 1), lambda n: (0, 0)),
        pl.BlockSpec((9, Cin_eff, Cpad), lambda n: (0, 0, 0)),
        pl.BlockSpec((9, Cpad, Cpad), lambda n: (0, 0, 0)),
    ]
    if has_ds:
        wds = _pad_group_channels(
            _ws_standardize_oihw(params["ds_w"].astype(jnp.float32), rho),
            0, groups, cg, cgp)
        wdm = _to_tap_matrix(wds)[0].astype(jnp.bfloat16)   # (Cin, Cpad)
        inputs.append(wdm)
        in_specs.append(pl.BlockSpec((Cin, Cpad), lambda n: (0, 0)))
    inputs.append(gb)
    in_specs.append(pl.BlockSpec((8, Cpad), lambda n: (0, 0)))

    # --- VMEM limit derived from the actual per-step (double-buffered) block sizes,
    #     plus headroom for live f32 intermediates and compiler scratch.
    bs = 2  # bf16 bytes
    blk_bytes = (
        2 * (s * s) * (Hq * Wq) * Cin_eff * bs      # x parity slab
        + 2 * Lo * 1 * 4                            # smask
        + 2 * 9 * Cin_eff * Cpad * bs               # w1m
        + 2 * 9 * Cpad * Cpad * bs                  # w2m
        + (2 * Cin * Cpad * bs if has_ds else 0)    # wd
        + 2 * 8 * Cpad * 4                          # gamma/beta rows
        + 2 * Lo * Cpad * bs                        # bf16 output
        + n_scr * Cpad * bs                         # conv2 staging scratch
    )
    vmem_limit = int(min(blk_bytes + 8 * Lo * Cpad * 4 + (8 << 20), 48 << 20))

    out_flat = pl.pallas_call(
        kernel,
        out_shape=jax.ShapeDtypeStruct((N, Lo, Cpad), jnp.bfloat16),   # bf16 writeback
        grid_spec=pltpu.PrefetchScalarGridSpec(
            num_scalar_prefetch=0,
            grid=(N,),
            in_specs=in_specs,
            out_specs=pl.BlockSpec((None, Lo, Cpad), lambda n: (n, 0, 0)),
            scratch_shapes=[pltpu.VMEM((n_scr, Cpad), jnp.bfloat16)],
        ),
        compiler_params=pltpu.CompilerParams(
            dimension_semantics=("parallel",),      # samples independent -> megacore
            vmem_limit_bytes=vmem_limit,
        ),
    )(*inputs)

    # drop the wrap columns and the per-group channel padding, return NCHW in input dtype
    out = out_flat.reshape(N, Ho, Wo + 2, Cpad)[:, :, :Wo, :]
    out = out.reshape(N, Ho, Wo, groups, cgp)[..., :cg].reshape(N, Ho, Wo, Cout)
    return jnp.transpose(out, (0, 3, 1, 2)).astype(x_nchw.dtype)


# ---------------- pure-JAX reference (for verification) ----------------

def _ws_ref(w, rho):
    mean = w.mean(axis=(1, 2, 3), keepdims=True)
    wc = w - mean
    std = jnp.std(wc.reshape(w.shape[0], -1), axis=1, ddof=1).reshape(-1, 1, 1, 1) + 1e-5
    return wc / std * rho


def _gn_ref(x, gamma, beta, groups=2, eps=1e-5):
    N, C, H, W = x.shape
    xg = x.reshape(N, groups, C // groups, H, W)
    m = xg.mean(axis=(2, 3, 4), keepdims=True)
    v = ((xg - m) ** 2).mean(axis=(2, 3, 4), keepdims=True)
    xn = ((xg - m) / jnp.sqrt(v + eps)).reshape(N, C, H, W)
    return xn * gamma.reshape(1, C, 1, 1) + beta.reshape(1, C, 1, 1)


def _conv_ref(x, w, stride, pad):
    return jax.lax.conv_general_dilated(
        x, w, (stride, stride), [(pad, pad), (pad, pad)],
        dimension_numbers=("NCHW", "OIHW", "NCHW"),
        precision=jax.lax.Precision.HIGHEST)


def basic_block_ws_ref(x, params, *, stride, rho=1e-3, no_relu=False):
    Cin = x.shape[1]
    Cout = params["conv1_w"].shape[0]
    out = _gn_ref(_conv_ref(x, _ws_ref(params["conv1_w"], rho), stride, 1),
                  params["bn1_g"], params["bn1_b"])
    out = jax.nn.relu(out)
    out = _gn_ref(_conv_ref(out, _ws_ref(params["conv2_w"], rho), 1, 1),
                  params["bn2_g"], params["bn2_b"])
    if stride != 1 or Cin != Cout:
        ds = _gn_ref(_conv_ref(x, _ws_ref(params["ds_w"], rho), stride, 0),
                     params["ds_g"], params["ds_b"])
    else:
        ds = x
    out = out + ds
    return out if no_relu else jax.nn.relu(out)


if __name__ == "__main__":
    key = jax.random.PRNGKey(0)

    def kaiming_uniform(k, shape):
        fan_in = shape[1] * shape[2] * shape[3]
        bound = float(np.sqrt(6.0 / fan_in))
        return jax.random.uniform(k, shape, jnp.float32, -bound, bound)

    def make_params(k, Cin, Cout):
        ks = jax.random.split(k, 9)
        return {
            "conv1_w": kaiming_uniform(ks[0], (Cout, Cin, 3, 3)),
            "conv2_w": kaiming_uniform(ks[1], (Cout, Cout, 3, 3)),
            "ds_w":    kaiming_uniform(ks[2], (Cout, Cin, 1, 1)),
            "bn1_g": 1.0 + 0.1 * jax.random.normal(ks[3], (Cout,), jnp.float32),
            "bn1_b": 0.1 * jax.random.normal(ks[4], (Cout,), jnp.float32),
            "bn2_g": 1.0 + 0.1 * jax.random.normal(ks[5], (Cout,), jnp.float32),
            "bn2_b": 0.1 * jax.random.normal(ks[6], (Cout,), jnp.float32),
            "ds_g": 1.0 + 0.1 * jax.random.normal(ks[7], (Cout,), jnp.float32),
            "ds_b": 0.1 * jax.random.normal(ks[8], (Cout,), jnp.float32),
        }

    k1, k2, kx1, kx2 = jax.random.split(key, 4)

    # config 1: downsample path (stride 2, Cin != Cout)
    N, Cin, H, W, Cout, stride = 2, 4, 16, 16, 8, 2
    params1 = make_params(k1, Cin, Cout)
    x1 = jax.random.normal(kx1, (N, Cin, H, W), jnp.float32)
    out1 = jax.block_until_ready(basic_block_ws(x1, params1, stride=stride, rho=1e-3))
    ref1 = jax.block_until_ready(basic_block_ws_ref(x1, params1, stride=stride, rho=1e-3))
    assert out1.shape == (N, Cout, H // stride, W // stride), out1.shape
    np.testing.assert_allclose(np.asarray(out1), np.asarray(ref1), rtol=7e-2, atol=7e-2)

    # config 2: identity residual path (stride 1, Cin == Cout), no_relu branch
    N2, C2, H2 = 2, 8, 8
    params2 = make_params(k2, C2, C2)
    x2 = jax.random.normal(kx2, (N2, C2, H2, H2), jnp.float32)
    out2 = jax.block_until_ready(
        basic_block_ws(x2, params2, stride=1, rho=1e-3, no_relu=True))
    ref2 = jax.block_until_ready(
        basic_block_ws_ref(x2, params2, stride=1, rho=1e-3, no_relu=True))
    assert out2.shape == (N2, C2, H2, H2), out2.shape
    np.testing.assert_allclose(np.asarray(out2), np.asarray(ref2), rtol=7e-2, atol=7e-2)

    print("KERNEL_OK")
</pallas_src>

<mosaic_0001>
module attributes {stable_mosaic.version = 11 : i64} {
  func.func @kernel(%arg0: i32, %arg1: memref<1x4x100x4xbf16, #tpu.memory_space<vmem>>, %arg2: memref<80x1xf32, #tpu.memory_space<vmem>>, %arg3: memref<9x4x128xbf16, #tpu.memory_space<vmem>>, %arg4: memref<9x128x128xbf16, #tpu.memory_space<vmem>>, %arg5: memref<4x128xbf16, #tpu.memory_space<vmem>>, %arg6: memref<8x128xf32, #tpu.memory_space<vmem>>, %arg7: memref<1x80x128xbf16, #tpu.memory_space<vmem>>, %arg8: memref<108x128xbf16, #tpu.memory_space<vmem>>) attributes {dimension_semantics = [#tpu.dimension_semantics<parallel>], iteration_bounds = array<i64: 2>, scalar_prefetch = 0 : i64, scratch_operands = 1 : i64, tpu.core_type = #tpu.core_type<tc>, window_params = [{transform_indices = @transform_0, window_bounds = array<i64: 1, 4, 100, 4>}, {pipeline_mode = #tpu.pipeline_mode<synchronous>, transform_indices = @transform_1, window_bounds = array<i64: 80, 1>}, {pipeline_mode = #tpu.pipeline_mode<synchronous>, transform_indices = @transform_2, window_bounds = array<i64: 9, 4, 128>}, {pipeline_mode = #tpu.pipeline_mode<synchronous>, transform_indices = @transform_3, window_bounds = array<i64: 9, 128, 128>}, {pipeline_mode = #tpu.pipeline_mode<synchronous>, transform_indices = @transform_4, window_bounds = array<i64: 4, 128>}, {pipeline_mode = #tpu.pipeline_mode<synchronous>, transform_indices = @transform_5, window_bounds = array<i64: 8, 128>}, {transform_indices = @transform_6, window_bounds = array<i64: 1, 80, 128>}]} {
    %c0 = arith.constant 0 : index
    %c0_0 = arith.constant 0 : index
    %0 = vector.load %arg6[%c0, %c0_0] : memref<8x128xf32, #tpu.memory_space<vmem>>, vector<8x128xf32>
    %c0_1 = arith.constant 0 : index
    %c0_2 = arith.constant 0 : index
    %1 = vector.load %arg2[%c0_1, %c0_2] : memref<80x1xf32, #tpu.memory_space<vmem>>, vector<80x1xf32>
    %2 = vector.shape_cast %1 : vector<80x1xf32> to vector<80x1xf32>
    %3 = vector.broadcast %2 : vector<80x1xf32> to vector<80x128xf32>
    %4 = tpu.iota {dimensions = array<i32: 1>} : vector<1x128xi32>
    %c0_i32 = arith.constant 0 : i32
    %5 = vector.broadcast %c0_i32 : i32 to vector<1x128xi32>
    %6 = arith.cmpi sge, %4, %5 : vector<1x128xi32>
    %c4_i32 = arith.constant 4 : i32
    %7 = vector.broadcast %c4_i32 : i32 to vector<1x128xi32>
    %8 = arith.cmpi slt, %4, %7 : vector<1x128xi32>
    %9 = arith.andi %6, %8 : vector<1x128xi1>
    %10 = arith.extui %9 : vector<1x128xi1> to vector<1x128xi32>
    %11 = arith.sitofp %10 : vector<1x128xi32> to vector<1x128xf32>
    %c64_i32 = arith.constant 64 : i32
    %12 = vector.broadcast %c64_i32 : i32 to vector<1x128xi32>
    %13 = arith.cmpi sge, %4, %12 : vector<1x128xi32>
    %c68_i32 = arith.constant 68 : i32
    %14 = vector.broadcast %c68_i32 : i32 to vector<1x128xi32>
    %15 = arith.cmpi slt, %4, %14 : vector<1x128xi32>
    %16 = arith.andi %13, %15 : vector<1x128xi1>
    %17 = arith.extui %16 : vector<1x128xi1> to vector<1x128xi32>
    %18 = arith.sitofp %17 : vector<1x128xi32> to vector<1x128xf32>
    %c0_3 = arith.constant 0 : index
    %c0_4 = arith.constant 0 : index
    %c0_5 = arith.constant 0 : index
    %c0_6 = arith.constant 0 : index
    %19 = vector.load %arg1[%c0_3, %c0_4, %c0_5, %c0_6] : memref<1x4x100x4xbf16, #tpu.memory_space<vmem>>, vector<1x1x80x4xbf16>
    %20 = vector.shape_cast %19 : vector<1x1x80x4xbf16> to vector<80x4xbf16>
    %c0_7 = arith.constant 0 : index
    %c0_8 = arith.constant 0 : index
    %c0_9 = arith.constant 0 : index
    %21 = vector.load %arg3[%c0_7, %c0_8, %c0_9] : memref<9x4x128xbf16, #tpu.memory_space<vmem>>, vector<1x4x128xbf16>
    %22 = vector.shape_cast %21 : vector<1x4x128xbf16> to vector<4x128xbf16>
    %cst = arith.constant dense<0.000000e+00> : vector<80x128xf32>
    %23 = tpu.matmul %20, %22, %cst {dimension_numbers = #tpu.dot_dimension_numbers<[1], [0], [0], [1], [0, 0, 1, 1], [], []>} : vector<80x4xbf16>, vector<4x128xbf16>, vector<80x128xf32> -> vector<80x128xf32>
    %c0_10 = arith.constant 0 : index
    %c1 = arith.constant 1 : index
    %c0_11 = arith.constant 0 : index
    %c0_12 = arith.constant 0 : index
    %24 = vector.load %arg1[%c0_10, %c1, %c0_11, %c0_12] : memref<1x4x100x4xbf16, #tpu.memory_space<vmem>>, vector<1x1x80x4xbf16>
    %25 = vector.shape_cast %24 : vector<1x1x80x4xbf16> to vector<80x4xbf16>
    %c1_13 = arith.constant 1 : index
    %c0_14 = arith.constant 0 : index
    %c0_15 = arith.constant 0 : index
    %26 = vector.load %arg3[%c1_13, %c0_14, %c0_15] : memref<9x4x128xbf16, #tpu.memory_space<vmem>>, vector<1x4x128xbf16>
    %27 = vector.shape_cast %26 : vector<1x4x128xbf16> to vector<4x128xbf16>
    %cst_16 = arith.constant dense<0.000000e+00> : vector<80x128xf32>
    %28 = tpu.matmul %25, %27, %cst_16 {dimension_numbers = #tpu.dot_dimension_numbers<[1], [0], [0], [1], [0, 0, 1, 1], [], []>} : vector<80x4xbf16>, vector<4x128xbf16>, vector<80x128xf32> -> vector<80x128xf32>
    %29 = arith.addf %23, %28 : vector<80x128xf32>
    %c0_17 = arith.constant 0 : index
    %c0_18 = arith.constant 0 : index
    %c1_19 = arith.constant 1 : index
    %c0_20 = arith.constant 0 : index
    %30 = vector.load %arg1[%c0_17, %c0_18, %c1_19, %c0_20] : memref<1x4x100x4xbf16, #tpu.memory_space<vmem>>, vector<1x1x80x4xbf16>
    %31 = vector.shape_cast %30 : vector<1x1x80x4xbf16> to vector<80x4xbf16>
    %c2 = arith.constant 2 : index
    %c0_21 = arith.constant 0 : index
    %c0_22 = arith.constant 0 : index
    %32 = vector.load %arg3[%c2, %c0_21, %c0_22] : memref<9x4x128xbf16, #tpu.memory_space<vmem>>, vector<1x4x128xbf16>
    %33 = vector.shape_cast %32 : vector<1x4x128xbf16> to vector<4x128xbf16>
    %cst_23 = arith.constant dense<0.000000e+00> : vector<80x128xf32>
    %34 = tpu.matmul %31, %33, %cst_23 {dimension_numbers = #tpu.dot_dimension_numbers<[1], [0], [0], [1], [0, 0, 1, 1], [], []>} : vector<80x4xbf16>, vector<4x128xbf16>, vector<80x128xf32> -> vector<80x128xf32>
    %35 = arith.addf %29, %34 : vector<80x128xf32>
    %c0_24 = arith.constant 0 : index
    %c2_25 = arith.constant 2 : index
    %c0_26 = arith.constant 0 : index
    %c0_27 = arith.constant 0 : index
    %36 = vector.load %arg1[%c0_24, %c2_25, %c0_26, %c0_27] : memref<1x4x100x4xbf16, #tpu.memory_space<vmem>>, vector<1x1x80x4xbf16>
    %37 = vector.shape_cast %36 : vector<1x1x80x4xbf16> to vector<80x4xbf16>
    %c3 = arith.constant 3 : index
    %c0_28 = arith.constant 0 : index
    %c0_29 = arith.constant 0 : index
    %38 = vector.load %arg3[%c3, %c0_28, %c0_29] : memref<9x4x128xbf16, #tpu.memory_space<vmem>>, vector<1x4x128xbf16>
    %39 = vector.shape_cast %38 : vector<1x4x128xbf16> to vector<4x128xbf16>
    %cst_30 = arith.constant dense<0.000000e+00> : vector<80x128xf32>
    %40 = tpu.matmul %37, %39, %cst_30 {dimension_numbers = #tpu.dot_dimension_numbers<[1], [0], [0], [1], [0, 0, 1, 1], [], []>} : vector<80x4xbf16>, vector<4x128xbf16>, vector<80x128xf32> -> vector<80x128xf32>
    %41 = arith.addf %35, %40 : vector<80x128xf32>
    %c0_31 = arith.constant 0 : index
    %c3_32 = arith.constant 3 : index
    %c0_33 = arith.constant 0 : index
    %c0_34 = arith.constant 0 : index
    %42 = vector.load %arg1[%c0_31, %c3_32, %c0_33, %c0_34] : memref<1x4x100x4xbf16, #tpu.memory_space<vmem>>, vector<1x1x80x4xbf16>
    %43 = vector.shape_cast %42 : vector<1x1x80x4xbf16> to vector<80x4xbf16>
    %c4 = arith.constant 4 : index
    %c0_35 = arith.constant 0 : index
    %c0_36 = arith.constant 0 : index
    %44 = vector.load %arg3[%c4, %c0_35, %c0_36] : memref<9x4x128xbf16, #tpu.memory_space<vmem>>, vector<1x4x128xbf16>
    %45 = vector.shape_cast %44 : vector<1x4x128xbf16> to vector<4x128xbf16>
    %cst_37 = arith.constant dense<0.000000e+00> : vector<80x128xf32>
    %46 = tpu.matmul %43, %45, %cst_37 {dimension_numbers = #tpu.dot_dimension_numbers<[1], [0], [0], [1], [0, 0, 1, 1], [], []>} : vector<80x4xbf16>, vector<4x128xbf16>, vector<80x128xf32> -> vector<80x128xf32>
    %47 = arith.addf %41, %46 : vector<80x128xf32>
    %c0_38 = arith.constant 0 : index
    %c2_39 = arith.constant 2 : index
    %c1_40 = arith.constant 1 : index
    %c0_41 = arith.constant 0 : index
    %48 = vector.load %arg1[%c0_38, %c2_39, %c1_40, %c0_41] : memref<1x4x100x4xbf16, #tpu.memory_space<vmem>>, vector<1x1x80x4xbf16>
    %49 = vector.shape_cast %48 : vector<1x1x80x4xbf16> to vector<80x4xbf16>
    %c5 = arith.constant 5 : index
    %c0_42 = arith.constant 0 : index
    %c0_43 = arith.constant 0 : index
    %50 = vector.load %arg3[%c5, %c0_42, %c0_43] : memref<9x4x128xbf16, #tpu.memory_space<vmem>>, vector<1x4x128xbf16>
    %51 = vector.shape_cast %50 : vector<1x4x128xbf16> to vector<4x128xbf16>
    %cst_44 = arith.constant dense<0.000000e+00> : vector<80x128xf32>
    %52 = tpu.matmul %49, %51, %cst_44 {dimension_numbers = #tpu.dot_dimension_numbers<[1], [0], [0], [1], [0, 0, 1, 1], [], []>} : vector<80x4xbf16>, vector<4x128xbf16>, vector<80x128xf32> -> vector<80x128xf32>
    %53 = arith.addf %47, %52 : vector<80x128xf32>
    %c0_45 = arith.constant 0 : index
    %c0_46 = arith.constant 0 : index
    %c10 = arith.constant 10 : index
    %c0_47 = arith.constant 0 : index
    %54 = vector.load %arg1[%c0_45, %c0_46, %c10, %c0_47] : memref<1x4x100x4xbf16, #tpu.memory_space<vmem>>, vector<1x1x80x4xbf16>
    %55 = vector.shape_cast %54 : vector<1x1x80x4xbf16> to vector<80x4xbf16>
    %c6 = arith.constant 6 : index
    %c0_48 = arith.constant 0 : index
    %c0_49 = arith.constant 0 : index
    %56 = vector.load %arg3[%c6, %c0_48, %c0_49] : memref<9x4x128xbf16, #tpu.memory_space<vmem>>, vector<1x4x128xbf16>
    %57 = vector.shape_cast %56 : vector<1x4x128xbf16> to vector<4x128xbf16>
    %cst_50 = arith.constant dense<0.000000e+00> : vector<80x128xf32>
    %58 = tpu.matmul %55, %57, %cst_50 {dimension_numbers = #tpu.dot_dimension_numbers<[1], [0], [0], [1], [0, 0, 1, 1], [], []>} : vector<80x4xbf16>, vector<4x128xbf16>, vector<80x128xf32> -> vector<80x128xf32>
    %59 = arith.addf %53, %58 : vector<80x128xf32>
    %c0_51 = arith.constant 0 : index
    %c1_52 = arith.constant 1 : index
    %c10_53 = arith.constant 10 : index
    %c0_54 = arith.constant 0 : index
    %60 = vector.load %arg1[%c0_51, %c1_52, %c10_53, %c0_54] : memref<1x4x100x4xbf16, #tpu.memory_space<vmem>>, vector<1x1x80x4xbf16>
    %61 = vector.shape_cast %60 : vector<1x1x80x4xbf16> to vector<80x4xbf16>
    %c7 = arith.constant 7 : index
    %c0_55 = arith.constant 0 : index
    %c0_56 = arith.constant 0 : index
    %62 = vector.load %arg3[%c7, %c0_55, %c0_56] : memref<9x4x128xbf16, #tpu.memory_space<vmem>>, vector<1x4x128xbf16>
    %63 = vector.shape_cast %62 : vector<1x4x128xbf16> to vector<4x128xbf16>
    %cst_57 = arith.constant dense<0.000000e+00> : vector<80x128xf32>
    %64 = tpu.matmul %61, %63, %cst_57 {dimension_numbers = #tpu.dot_dimension_numbers<[1], [0], [0], [1], [0, 0, 1, 1], [], []>} : vector<80x4xbf16>, vector<4x128xbf16>, vector<80x128xf32> -> vector<80x128xf32>
    %65 = arith.addf %59, %64 : vector<80x128xf32>
    %c0_58 = arith.constant 0 : index
    %c0_59 = arith.constant 0 : index
    %c11 = arith.constant 11 : index
    %c0_60 = arith.constant 0 : index
    %66 = vector.load %arg1[%c0_58, %c0_59, %c11, %c0_60] : memref<1x4x100x4xbf16, #tpu.memory_space<vmem>>, vector<1x1x80x4xbf16>
    %67 = vector.shape_cast %66 : vector<1x1x80x4xbf16> to vector<80x4xbf16>
    %c8 = arith.constant 8 : index
    %c0_61 = arith.constant 0 : index
    %c0_62 = arith.constant 0 : index
    %68 = vector.load %arg3[%c8, %c0_61, %c0_62] : memref<9x4x128xbf16, #tpu.memory_space<vmem>>, vector<1x4x128xbf16>
    %69 = vector.shape_cast %68 : vector<1x4x128xbf16> to vector<4x128xbf16>
    %cst_63 = arith.constant dense<0.000000e+00> : vector<80x128xf32>
    %70 = tpu.matmul %67, %69, %cst_63 {dimension_numbers = #tpu.dot_dimension_numbers<[1], [0], [0], [1], [0, 0, 1, 1], [], []>} : vector<80x4xbf16>, vector<4x128xbf16>, vector<80x128xf32> -> vector<80x128xf32>
    %71 = arith.addf %65, %70 : vector<80x128xf32>
    %72 = arith.mulf %71, %3 : vector<80x128xf32>
    %73 = vector.extract_strided_slice %0 {offsets = [0, 0], sizes = [1, 128], strides = [1, 1]} : vector<8x128xf32> to vector<1x128xf32>
    %74 = vector.extract_strided_slice %0 {offsets = [1, 0], sizes = [1, 128], strides = [1, 1]} : vector<8x128xf32> to vector<1x128xf32>
    %cst_64 = arith.constant dense<0.000000e+00> : vector<128xf32>
    %75 = vector.multi_reduction <add>, %72, %cst_64 [0] : vector<80x128xf32> to vector<128xf32>
    %76 = vector.shape_cast %75 : vector<128xf32> to vector<1x128xf32>
    %77 = arith.mulf %72, %72 : vector<80x128xf32>
    %cst_65 = arith.constant dense<0.000000e+00> : vector<128xf32>
    %78 = vector.multi_reduction <add>, %77, %cst_65 [0] : vector<80x128xf32> to vector<128xf32>
    %79 = vector.shape_cast %78 : vector<128xf32> to vector<1x128xf32>
    %cst_66 = arith.constant 0.000000e+00 : f32
    %80 = vector.broadcast %cst_66 : f32 to vector<1x128xf32>
    %cst_67 = arith.constant 0.000000e+00 : f32
    %81 = vector.broadcast %cst_67 : f32 to vector<1x128xf32>
    %82 = arith.mulf %76, %11 : vector<1x128xf32>
    %83 = vector.shape_cast %82 : vector<1x128xf32> to vector<1x1x128xf32>
    %cst_68 = arith.constant dense<0.000000e+00> : vector<1xf32>
    %84 = vector.multi_reduction <add>, %83, %cst_68 [1, 2] : vector<1x1x128xf32> to vector<1xf32>
    %85 = vector.shape_cast %84 : vector<1xf32> to vector<1x1x1xf32>
    %86 = vector.extract %85[0, 0, 0] : f32 from vector<1x1x1xf32>
    %cst_69 = arith.constant 3.906250e-03 : f32
    %87 = arith.mulf %86, %cst_69 : f32
    %88 = arith.mulf %79, %11 : vector<1x128xf32>
    %89 = vector.shape_cast %88 : vector<1x128xf32> to vector<1x1x128xf32>
    %cst_70 = arith.constant dense<0.000000e+00> : vector<1xf32>
    %90 = vector.multi_reduction <add>, %89, %cst_70 [1, 2] : vector<1x1x128xf32> to vector<1xf32>
    %91 = vector.shape_cast %90 : vector<1xf32> to vector<1x1x1xf32>
    %92 = vector.extract %91[0, 0, 0] : f32 from vector<1x1x1xf32>
    %cst_71 = arith.constant 3.906250e-03 : f32
    %93 = arith.mulf %92, %cst_71 : f32
    %94 = vector.broadcast %87 : f32 to vector<1x128xf32>
    %95 = arith.mulf %94, %11 : vector<1x128xf32>
    %96 = arith.addf %80, %95 : vector<1x128xf32>
    %97 = arith.mulf %87, %87 : f32
    %98 = arith.subf %93, %97 : f32
    %99 = vector.broadcast %98 : f32 to vector<1x128xf32>
    %100 = arith.mulf %99, %11 : vector<1x128xf32>
    %101 = arith.addf %81, %100 : vector<1x128xf32>
    %102 = arith.mulf %76, %18 : vector<1x128xf32>
    %103 = vector.shape_cast %102 : vector<1x128xf32> to vector<1x1x128xf32>
    %cst_72 = arith.constant dense<0.000000e+00> : vector<1xf32>
    %104 = vector.multi_reduction <add>, %103, %cst_72 [1, 2] : vector<1x1x128xf32> to vector<1xf32>
    %105 = vector.shape_cast %104 : vector<1xf32> to vector<1x1x1xf32>
    %106 = vector.extract %105[0, 0, 0] : f32 from vector<1x1x1xf32>
    %cst_73 = arith.constant 3.906250e-03 : f32
    %107 = arith.mulf %106, %cst_73 : f32
    %108 = arith.mulf %79, %18 : vector<1x128xf32>
    %109 = vector.shape_cast %108 : vector<1x128xf32> to vector<1x1x128xf32>
    %cst_74 = arith.constant dense<0.000000e+00> : vector<1xf32>
    %110 = vector.multi_reduction <add>, %109, %cst_74 [1, 2] : vector<1x1x128xf32> to vector<1xf32>
    %111 = vector.shape_cast %110 : vector<1xf32> to vector<1x1x1xf32>
    %112 = vector.extract %111[0, 0, 0] : f32 from vector<1x1x1xf32>
    %cst_75 = arith.constant 3.906250e-03 : f32
    %113 = arith.mulf %112, %cst_75 : f32
    %114 = vector.broadcast %107 : f32 to vector<1x128xf32>
    %115 = arith.mulf %114, %18 : vector<1x128xf32>
    %116 = arith.addf %96, %115 : vector<1x128xf32>
    %117 = arith.mulf %107, %107 : f32
    %118 = arith.subf %113, %117 : f32
    %119 = vector.broadcast %118 : f32 to vector<1x128xf32>
    %120 = arith.mulf %119, %18 : vector<1x128xf32>
    %121 = arith.addf %101, %120 : vector<1x128xf32>
    %122 = vector.broadcast %116 : vector<1x128xf32> to vector<80x128xf32>
    %123 = arith.subf %72, %122 : vector<80x128xf32>
    %cst_76 = arith.constant 9.99999974E-6 : f32
    %124 = vector.broadcast %cst_76 : f32 to vector<1x128xf32>
    %125 = arith.addf %121, %124 : vector<1x128xf32>
    %126 = math.rsqrt %125 : vector<1x128xf32>
    %127 = vector.broadcast %126 : vector<1x128xf32> to vector<80x128xf32>
    %128 = arith.mulf %123, %127 : vector<80x128xf32>
    %129 = vector.broadcast %73 : vector<1x128xf32> to vector<80x128xf32>
    %130 = arith.mulf %128, %129 : vector<80x128xf32>
    %131 = vector.broadcast %74 : vector<1x128xf32> to vector<80x128xf32>
    %132 = arith.addf %130, %131 : vector<80x128xf32>
    %cst_77 = arith.constant 0.000000e+00 : f32
    %133 = vector.broadcast %cst_77 : f32 to vector<80x128xf32>
    %134 = arith.maximumf %132, %133 : vector<80x128xf32>
    %135 = arith.mulf %134, %3 : vector<80x128xf32>
    %cst_78 = arith.constant 0.000000e+00 : bf16
    %136 = vector.broadcast %cst_78 : bf16 to vector<11x128xbf16>
    %c0_79 = arith.constant 0 : index
    %c0_80 = arith.constant 0 : index
    %137 = vector.load %arg8[%c0_79, %c0_80] : memref<108x128xbf16, #tpu.memory_space<vmem>>, vector<11x128xbf16>
    tpu.vector_store %arg8[%c0_79, %c0_80], %136 {strides = array<i32>} : memref<108x128xbf16, #tpu.memory_space<vmem>>, vector<11x128xbf16>,
    %cst_81 = arith.constant 0.000000e+00 : bf16
    %138 = vector.broadcast %cst_81 : bf16 to vector<17x128xbf16>
    %c91 = arith.constant 91 : index
    %c0_82 = arith.constant 0 : index
    %139 = vector.load %arg8[%c91, %c0_82] : memref<108x128xbf16, #tpu.memory_space<vmem>>, vector<17x128xbf16>
    tpu.vector_store %arg8[%c91, %c0_82], %138 {strides = array<i32>} : memref<108x128xbf16, #tpu.memory_space<vmem>>, vector<17x128xbf16>,
    %140 = arith.truncf %135 : vector<80x128xf32> to vector<80x128xbf16>
    %c11_83 = arith.constant 11 : index
    %c0_84 = arith.constant 0 : index
    %141 = vector.load %arg8[%c11_83, %c0_84] : memref<108x128xbf16, #tpu.memory_space<vmem>>, vector<80x128xbf16>
    tpu.vector_store %arg8[%c11_83, %c0_84], %140 {strides = array<i32>} : memref<108x128xbf16, #tpu.memory_space<vmem>>, vector<80x128xbf16>,
    %c0_85 = arith.constant 0 : index
    %c0_86 = arith.constant 0 : index
    %142 = vector.load %arg8[%c0_85, %c0_86] : memref<108x128xbf16, #tpu.memory_space<vmem>>, vector<80x128xbf16>
    %c0_87 = arith.constant 0 : index
    %c0_88 = arith.constant 0 : index
    %c0_89 = arith.constant 0 : index
    %143 = vector.load %arg4[%c0_87, %c0_88, %c0_89] : memref<9x128x128xbf16, #tpu.memory_space<vmem>>, vector<1x128x128xbf16>
    %144 = vector.shape_cast %143 : vector<1x128x128xbf16> to vector<128x128xbf16>
    %cst_90 = arith.constant dense<0.000000e+00> : vector<80x128xf32>
    %145 = tpu.matmul %142, %144, %cst_90 {dimension_numbers = #tpu.dot_dimension_numbers<[1], [0], [0], [1], [0, 0, 1, 1], [], []>} : vector<80x128xbf16>, vector<128x128xbf16>, vector<80x128xf32> -> vector<80x128xf32>
    %c1_91 = arith.constant 1 : index
    %c0_92 = arith.constant 0 : index
    %146 = vector.load %arg8[%c1_91, %c0_92] : memref<108x128xbf16, #tpu.memory_space<vmem>>, vector<80x128xbf16>
    %c1_93 = arith.constant 1 : index
    %c0_94 = arith.constant 0 : index
    %c0_95 = arith.constant 0 : index
    %147 = vector.load %arg4[%c1_93, %c0_94, %c0_95] : memref<9x128x128xbf16, #tpu.memory_space<vmem>>, vector<1x128x128xbf16>
    %148 = vector.shape_cast %147 : vector<1x128x128xbf16> to vector<128x128xbf16>
    %cst_96 = arith.constant dense<0.000000e+00> : vector<80x128xf32>
    %149 = tpu.matmul %146, %148, %cst_96 {dimension_numbers = #tpu.dot_dimension_numbers<[1], [0], [0], [1], [0, 0, 1, 1], [], []>} : vector<80x128xbf16>, vector<128x128xbf16>, vector<80x128xf32> -> vector<80x128xf32>
    %150 = arith.addf %145, %149 : vector<80x128xf32>
    %c2_97 = arith.constant 2 : index
    %c0_98 = arith.constant 0 : index
    %151 = vector.load %arg8[%c2_97, %c0_98] : memref<108x128xbf16, #tpu.memory_space<vmem>>, vector<80x128xbf16>
    %c2_99 = arith.constant 2 : index
    %c0_100 = arith.constant 0 : index
    %c0_101 = arith.constant 0 : index
    %152 = vector.load %arg4[%c2_99, %c0_100, %c0_101] : memref<9x128x128xbf16, #tpu.memory_space<vmem>>, vector<1x128x128xbf16>
    %153 = vector.shape_cast %152 : vector<1x128x128xbf16> to vector<128x128xbf16>
    %cst_102 = arith.constant dense<0.000000e+00> : vector<80x128xf32>
    %154 = tpu.matmul %151, %153, %cst_102 {dimension_numbers = #tpu.dot_dimension_numbers<[1], [0], [0], [1], [0, 0, 1, 1], [], []>} : vector<80x128xbf16>, vector<128x128xbf16>, vector<80x128xf32> -> vector<80x128xf32>
    %155 = arith.addf %150, %154 : vector<80x128xf32>
    %c10_103 = arith.constant 10 : index
    %c0_104 = arith.constant 0 : index
    %156 = vector.load %arg8[%c10_103, %c0_104] : memref<108x128xbf16, #tpu.memory_space<vmem>>, vector<80x128xbf16>
    %c3_105 = arith.constant 3 : index
    %c0_106 = arith.constant 0 : index
    %c0_107 = arith.constant 0 : index
    %157 = vector.load %arg4[%c3_105, %c0_106, %c0_107] : memref<9x128x128xbf16, #tpu.memory_space<vmem>>, vector<1x128x128xbf16>
    %158 = vector.shape_cast %157 : vector<1x128x128xbf16> to vector<128x128xbf16>
    %cst_108 = arith.constant dense<0.000000e+00> : vector<80x128xf32>
    %159 = tpu.matmul %156, %158, %cst_108 {dimension_numbers = #tpu.dot_dimension_numbers<[1], [0], [0], [1], [0, 0, 1, 1], [], []>} : vector<80x128xbf16>, vector<128x128xbf16>, vector<80x128xf32> -> vector<80x128xf32>
    %160 = arith.addf %155, %159 : vector<80x128xf32>
    %c11_109 = arith.constant 11 : index
    %c0_110 = arith.constant 0 : index
    %161 = vector.load %arg8[%c11_109, %c0_110] : memref<108x128xbf16, #tpu.memory_space<vmem>>, vector<80x128xbf16>
    %c4_111 = arith.constant 4 : index
    %c0_112 = arith.constant 0 : index
    %c0_113 = arith.constant 0 : index
    %162 = vector.load %arg4[%c4_111, %c0_112, %c0_113] : memref<9x128x128xbf16, #tpu.memory_space<vmem>>, vector<1x128x128xbf16>
    %163 = vector.shape_cast %162 : vector<1x128x128xbf16> to vector<128x128xbf16>
    %cst_114 = arith.constant dense<0.000000e+00> : vector<80x128xf32>
    %164 = tpu.matmul %161, %163, %cst_114 {dimension_numbers = #tpu.dot_dimension_numbers<[1], [0], [0], [1], [0, 0, 1, 1], [], []>} : vector<80x128xbf16>, vector<128x128xbf16>, vector<80x128xf32> -> vector<80x128xf32>
    %165 = arith.addf %160, %164 : vector<80x128xf32>
    %c12 = arith.constant 12 : index
    %c0_115 = arith.constant 0 : index
    %166 = vector.load %arg8[%c12, %c0_115] : memref<108x128xbf16, #tpu.memory_space<vmem>>, vector<80x128xbf16>
    %c5_116 = arith.constant 5 : index
    %c0_117 = arith.constant 0 : index
    %c0_118 = arith.constant 0 : index
    %167 = vector.load %arg4[%c5_116, %c0_117, %c0_118] : memref<9x128x128xbf16, #tpu.memory_space<vmem>>, vector<1x128x128xbf16>
    %168 = vector.shape_cast %167 : vector<1x128x128xbf16> to vector<128x128xbf16>
    %cst_119 = arith.constant dense<0.000000e+00> : vector<80x128xf32>
    %169 = tpu.matmul %166, %168, %cst_119 {dimension_numbers = #tpu.dot_dimension_numbers<[1], [0], [0], [1], [0, 0, 1, 1], [], []>} : vector<80x128xbf16>, vector<128x128xbf16>, vector<80x128xf32> -> vector<80x128xf32>
    %170 = arith.addf %165, %169 : vector<80x128xf32>
    %c20 = arith.constant 20 : index
    %c0_120 = arith.constant 0 : index
    %171 = vector.load %arg8[%c20, %c0_120] : memref<108x128xbf16, #tpu.memory_space<vmem>>, vector<80x128xbf16>
    %c6_121 = arith.constant 6 : index
    %c0_122 = arith.constant 0 : index
    %c0_123 = arith.constant 0 : index
    %172 = vector.load %arg4[%c6_121, %c0_122, %c0_123] : memref<9x128x128xbf16, #tpu.memory_space<vmem>>, vector<1x128x128xbf16>
    %173 = vector.shape_cast %172 : vector<1x128x128xbf16> to vector<128x128xbf16>
    %cst_124 = arith.constant dense<0.000000e+00> : vector<80x128xf32>
    %174 = tpu.matmul %171, %173, %cst_124 {dimension_numbers = #tpu.dot_dimension_numbers<[1], [0], [0], [1], [0, 0, 1, 1], [], []>} : vector<80x128xbf16>, vector<128x128xbf16>, vector<80x128xf32> -> vector<80x128xf32>
    %175 = arith.addf %170, %174 : vector<80x128xf32>
    %c21 = arith.constant 21 : index
    %c0_125 = arith.constant 0 : index
    %176 = vector.load %arg8[%c21, %c0_125] : memref<108x128xbf16, #tpu.memory_space<vmem>>, vector<80x128xbf16>
    %c7_126 = arith.constant 7 : index
    %c0_127 = arith.constant 0 : index
    %c0_128 = arith.constant 0 : index
    %177 = vector.load %arg4[%c7_126, %c0_127, %c0_128] : memref<9x128x128xbf16, #tpu.memory_space<vmem>>, vector<1x128x128xbf16>
    %178 = vector.shape_cast %177 : vector<1x128x128xbf16> to vector<128x128xbf16>
    %cst_129 = arith.constant dense<0.000000e+00> : vector<80x128xf32>
    %179 = tpu.matmul %176, %178, %cst_129 {dimension_numbers = #tpu.dot_dimension_numbers<[1], [0], [0], [1], [0, 0, 1, 1], [], []>} : vector<80x128xbf16>, vector<128x128xbf16>, vector<80x128xf32> -> vector<80x128xf32>
    %180 = arith.addf %175, %179 : vector<80x128xf32>
    %c22 = arith.constant 22 : index
    %c0_130 = arith.constant 0 : index
    %181 = vector.load %arg8[%c22, %c0_130] : memref<108x128xbf16, #tpu.memory_space<vmem>>, vector<80x128xbf16>
    %c8_131 = arith.constant 8 : index
    %c0_132 = arith.constant 0 : index
    %c0_133 = arith.constant 0 : index
    %182 = vector.load %arg4[%c8_131, %c0_132, %c0_133] : memref<9x128x128xbf16, #tpu.memory_space<vmem>>, vector<1x128x128xbf16>
    %183 = vector.shape_cast %182 : vector<1x128x128xbf16> to vector<128x128xbf16>
    %cst_134 = arith.constant dense<0.000000e+00> : vector<80x128xf32>
    %184 = tpu.matmul %181, %183, %cst_134 {dimension_numbers = #tpu.dot_dimension_numbers<[1], [0], [0], [1], [0, 0, 1, 1], [], []>} : vector<80x128xbf16>, vector<128x128xbf16>, vector<80x128xf32> -> vector<80x128xf32>
    %185 = arith.addf %180, %184 : vector<80x128xf32>
    %186 = arith.mulf %185, %3 : vector<80x128xf32>
    %187 = vector.extract_strided_slice %0 {offsets = [2, 0], sizes = [1, 128], strides = [1, 1]} : vector<8x128xf32> to vector<1x128xf32>
    %188 = vector.extract_strided_slice %0 {offsets = [3, 0], sizes = [1, 128], strides = [1, 1]} : vector<8x128xf32> to vector<1x128xf32>
    %cst_135 = arith.constant dense<0.000000e+00> : vector<128xf32>
    %189 = vector.multi_reduction <add>, %186, %cst_135 [0] : vector<80x128xf32> to vector<128xf32>
    %190 = vector.shape_cast %189 : vector<128xf32> to vector<1x128xf32>
    %191 = arith.mulf %186, %186 : vector<80x128xf32>
    %cst_136 = arith.constant dense<0.000000e+00> : vector<128xf32>
    %192 = vector.multi_reduction <add>, %191, %cst_136 [0] : vector<80x128xf32> to vector<128xf32>
    %193 = vector.shape_cast %192 : vector<128xf32> to vector<1x128xf32>
    %cst_137 = arith.constant 0.000000e+00 : f32
    %194 = vector.broadcast %cst_137 : f32 to vector<1x128xf32>
    %cst_138 = arith.constant 0.000000e+00 : f32
    %195 = vector.broadcast %cst_138 : f32 to vector<1x128xf32>
    %196 = arith.mulf %190, %11 : vector<1x128xf32>
    %197 = vector.shape_cast %196 : vector<1x128xf32> to vector<1x1x128xf32>
    %cst_139 = arith.constant dense<0.000000e+00> : vector<1xf32>
    %198 = vector.multi_reduction <add>, %197, %cst_139 [1, 2] : vector<1x1x128xf32> to vector<1xf32>
    %199 = vector.shape_cast %198 : vector<1xf32> to vector<1x1x1xf32>
    %200 = vector.extract %199[0, 0, 0] : f32 from vector<1x1x1xf32>
    %cst_140 = arith.constant 3.906250e-03 : f32
    %201 = arith.mulf %200, %cst_140 : f32
    %202 = arith.mulf %193, %11 : vector<1x128xf32>
    %203 = vector.shape_cast %202 : vector<1x128xf32> to vector<1x1x128xf32>
    %cst_141 = arith.constant dense<0.000000e+00> : vector<1xf32>
    %204 = vector.multi_reduction <add>, %203, %cst_141 [1, 2] : vector<1x1x128xf32> to vector<1xf32>
    %205 = vector.shape_cast %204 : vector<1xf32> to vector<1x1x1xf32>
    %206 = vector.extract %205[0, 0, 0] : f32 from vector<1x1x1xf32>
    %cst_142 = arith.constant 3.906250e-03 : f32
    %207 = arith.mulf %206, %cst_142 : f32
    %208 = vector.broadcast %201 : f32 to vector<1x128xf32>
    %209 = arith.mulf %208, %11 : vector<1x128xf32>
    %210 = arith.addf %194, %209 : vector<1x128xf32>
    %211 = arith.mulf %201, %201 : f32
    %212 = arith.subf %207, %211 : f32
    %213 = vector.broadcast %212 : f32 to vector<1x128xf32>
    %214 = arith.mulf %213, %11 : vector<1x128xf32>
    %215 = arith.addf %195, %214 : vector<1x128xf32>
    %216 = arith.mulf %190, %18 : vector<1x128xf32>
    %217 = vector.shape_cast %216 : vector<1x128xf32> to vector<1x1x128xf32>
    %cst_143 = arith.constant dense<0.000000e+00> : vector<1xf32>
    %218 = vector.multi_reduction <add>, %217, %cst_143 [1, 2] : vector<1x1x128xf32> to vector<1xf32>
    %219 = vector.shape_cast %218 : vector<1xf32> to vector<1x1x1xf32>
    %220 = vector.extract %219[0, 0, 0] : f32 from vector<1x1x1xf32>
    %cst_144 = arith.constant 3.906250e-03 : f32
    %221 = arith.mulf %220, %cst_144 : f32
    %222 = arith.mulf %193, %18 : vector<1x128xf32>
    %223 = vector.shape_cast %222 : vector<1x128xf32> to vector<1x1x128xf32>
    %cst_145 = arith.constant dense<0.000000e+00> : vector<1xf32>
    %224 = vector.multi_reduction <add>, %223, %cst_145 [1, 2] : vector<1x1x128xf32> to vector<1xf32>
    %225 = vector.shape_cast %224 : vector<1xf32> to vector<1x1x1xf32>
    %226 = vector.extract %225[0, 0, 0] : f32 from vector<1x1x1xf32>
    %cst_146 = arith.constant 3.906250e-03 : f32
    %227 = arith.mulf %226, %cst_146 : f32
    %228 = vector.broadcast %221 : f32 to vector<1x128xf32>
    %229 = arith.mulf %228, %18 : vector<1x128xf32>
    %230 = arith.addf %210, %229 : vector<1x128xf32>
    %231 = arith.mulf %221, %221 : f32
    %232 = arith.subf %227, %231 : f32
    %233 = vector.broadcast %232 : f32 to vector<1x128xf32>
    %234 = arith.mulf %233, %18 : vector<1x128xf32>
    %235 = arith.addf %215, %234 : vector<1x128xf32>
    %236 = vector.broadcast %230 : vector<1x128xf32> to vector<80x128xf32>
    %237 = arith.subf %186, %236 : vector<80x128xf32>
    %cst_147 = arith.constant 9.99999974E-6 : f32
    %238 = vector.broadcast %cst_147 : f32 to vector<1x128xf32>
    %239 = arith.addf %235, %238 : vector<1x128xf32>
    %240 = math.rsqrt %239 : vector<1x128xf32>
    %241 = vector.broadcast %240 : vector<1x128xf32> to vector<80x128xf32>
    %242 = arith.mulf %237, %241 : vector<80x128xf32>
    %243 = vector.broadcast %187 : vector<1x128xf32> to vector<80x128xf32>
    %244 = arith.mulf %242, %243 : vector<80x128xf32>
    %245 = vector.broadcast %188 : vector<1x128xf32> to vector<80x128xf32>
    %246 = arith.addf %244, %245 : vector<80x128xf32>
    %c0_148 = arith.constant 0 : index
    %c3_149 = arith.constant 3 : index
    %c0_150 = arith.constant 0 : index
    %c0_151 = arith.constant 0 : index
    %247 = vector.load %arg1[%c0_148, %c3_149, %c0_150, %c0_151] : memref<1x4x100x4xbf16, #tpu.memory_space<vmem>>, vector<1x1x80x4xbf16>
    %248 = vector.shape_cast %247 : vector<1x1x80x4xbf16> to vector<80x4xbf16>
    %c0_152 = arith.constant 0 : index
    %c0_153 = arith.constant 0 : index
    %249 = vector.load %arg5[%c0_152, %c0_153] : memref<4x128xbf16, #tpu.memory_space<vmem>>, vector<4x128xbf16>
    %cst_154 = arith.constant dense<0.000000e+00> : vector<80x128xf32>
    %250 = tpu.matmul %248, %249, %cst_154 {dimension_numbers = #tpu.dot_dimension_numbers<[1], [0], [0], [1], [0, 0, 1, 1], [], []>} : vector<80x4xbf16>, vector<4x128xbf16>, vector<80x128xf32> -> vector<80x128xf32>
    %251 = vector.extract_strided_slice %0 {offsets = [4, 0], sizes = [1, 128], strides = [1, 1]} : vector<8x128xf32> to vector<1x128xf32>
    %252 = vector.extract_strided_slice %0 {offsets = [5, 0], sizes = [1, 128], strides = [1, 1]} : vector<8x128xf32> to vector<1x128xf32>
    %cst_155 = arith.constant dense<0.000000e+00> : vector<128xf32>
    %253 = vector.multi_reduction <add>, %250, %cst_155 [0] : vector<80x128xf32> to vector<128xf32>
    %254 = vector.shape_cast %253 : vector<128xf32> to vector<1x128xf32>
    %255 = arith.mulf %250, %250 : vector<80x128xf32>
    %cst_156 = arith.constant dense<0.000000e+00> : vector<128xf32>
    %256 = vector.multi_reduction <add>, %255, %cst_156 [0] : vector<80x128xf32> to vector<128xf32>
    %257 = vector.shape_cast %256 : vector<128xf32> to vector<1x128xf32>
    %cst_157 = arith.constant 0.000000e+00 : f32
    %258 = vector.broadcast %cst_157 : f32 to vector<1x128xf32>
    %cst_158 = arith.constant 0.000000e+00 : f32
    %259 = vector.broadcast %cst_158 : f32 to vector<1x128xf32>
    %260 = arith.mulf %254, %11 : vector<1x128xf32>
    %261 = vector.shape_cast %260 : vector<1x128xf32> to vector<1x1x128xf32>
    %cst_159 = arith.constant dense<0.000000e+00> : vector<1xf32>
    %262 = vector.multi_reduction <add>, %261, %cst_159 [1, 2] : vector<1x1x128xf32> to vector<1xf32>
    %263 = vector.shape_cast %262 : vector<1xf32> to vector<1x1x1xf32>
    %264 = vector.extract %263[0, 0, 0] : f32 from vector<1x1x1xf32>
    %cst_160 = arith.constant 3.906250e-03 : f32
    %265 = arith.mulf %264, %cst_160 : f32
    %266 = arith.mulf %257, %11 : vector<1x128xf32>
    %267 = vector.shape_cast %266 : vector<1x128xf32> to vector<1x1x128xf32>
    %cst_161 = arith.constant dense<0.000000e+00> : vector<1xf32>
    %268 = vector.multi_reduction <add>, %267, %cst_161 [1, 2] : vector<1x1x128xf32> to vector<1xf32>
    %269 = vector.shape_cast %268 : vector<1xf32> to vector<1x1x1xf32>
    %270 = vector.extract %269[0, 0, 0] : f32 from vector<1x1x1xf32>
    %cst_162 = arith.constant 3.906250e-03 : f32
    %271 = arith.mulf %270, %cst_162 : f32
    %272 = vector.broadcast %265 : f32 to vector<1x128xf32>
    %273 = arith.mulf %272, %11 : vector<1x128xf32>
    %274 = arith.addf %258, %273 : vector<1x128xf32>
    %275 = arith.mulf %265, %265 : f32
    %276 = arith.subf %271, %275 : f32
    %277 = vector.broadcast %276 : f32 to vector<1x128xf32>
    %278 = arith.mulf %277, %11 : vector<1x128xf32>
    %279 = arith.addf %259, %278 : vector<1x128xf32>
    %280 = arith.mulf %254, %18 : vector<1x128xf32>
    %281 = vector.shape_cast %280 : vector<1x128xf32> to vector<1x1x128xf32>
    %cst_163 = arith.constant dense<0.000000e+00> : vector<1xf32>
    %282 = vector.multi_reduction <add>, %281, %cst_163 [1, 2] : vector<1x1x128xf32> to vector<1xf32>
    %283 = vector.shape_cast %282 : vector<1xf32> to vector<1x1x1xf32>
    %284 = vector.extract %283[0, 0, 0] : f32 from vector<1x1x1xf32>
    %cst_164 = arith.constant 3.906250e-03 : f32
    %285 = arith.mulf %284, %cst_164 : f32
    %286 = arith.mulf %257, %18 : vector<1x128xf32>
    %287 = vector.shape_cast %286 : vector<1x128xf32> to vector<1x1x128xf32>
    %cst_165 = arith.constant dense<0.000000e+00> : vector<1xf32>
    %288 = vector.multi_reduction <add>, %287, %cst_165 [1, 2] : vector<1x1x128xf32> to vector<1xf32>
    %289 = vector.shape_cast %288 : vector<1xf32> to vector<1x1x1xf32>
    %290 = vector.extract %289[0, 0, 0] : f32 from vector<1x1x1xf32>
    %cst_166 = arith.constant 3.906250e-03 : f32
    %291 = arith.mulf %290, %cst_166 : f32
    %292 = vector.broadcast %285 : f32 to vector<1x128xf32>
    %293 = arith.mulf %292, %18 : vector<1x128xf32>
    %294 = arith.addf %274, %293 : vector<1x128xf32>
    %295 = arith.mulf %285, %285 : f32
    %296 = arith.subf %291, %295 : f32
    %297 = vector.broadcast %296 : f32 to vector<1x128xf32>
    %298 = arith.mulf %297, %18 : vector<1x128xf32>
    %299 = arith.addf %279, %298 : vector<1x128xf32>
    %300 = vector.broadcast %294 : vector<1x128xf32> to vector<80x128xf32>
    %301 = arith.subf %250, %300 : vector<80x128xf32>
    %cst_167 = arith.constant 9.99999974E-6 : f32
    %302 = vector.broadcast %cst_167 : f32 to vector<1x128xf32>
    %303 = arith.addf %299, %302 : vector<1x128xf32>
    %304 = math.rsqrt %303 : vector<1x128xf32>
    %305 = vector.broadcast %304 : vector<1x128xf32> to vector<80x128xf32>
    %306 = arith.mulf %301, %305 : vector<80x128xf32>
    %307 = vector.broadcast %251 : vector<1x128xf32> to vector<80x128xf32>
    %308 = arith.mulf %306, %307 : vector<80x128xf32>
    %309 = vector.broadcast %252 : vector<1x128xf32> to vector<80x128xf32>
    %310 = arith.addf %308, %309 : vector<80x128xf32>
    %311 = arith.addf %246, %310 : vector<80x128xf32>
    %cst_168 = arith.constant 0.000000e+00 : f32
    %312 = vector.broadcast %cst_168 : f32 to vector<80x128xf32>
    %313 = arith.maximumf %311, %312 : vector<80x128xf32>
    %314 = arith.truncf %313 : vector<80x128xf32> to vector<80x128xbf16>
    %c0_169 = arith.constant 0 : index
    %c0_170 = arith.constant 0 : index
    %c0_171 = arith.constant 0 : index
    %315 = vector.load %arg7[%c0_169, %c0_170, %c0_171] : memref<1x80x128xbf16, #tpu.memory_space<vmem>>, vector<1x80x128xbf16>
    %316 = vector.shape_cast %315 : vector<1x80x128xbf16> to vector<80x128xbf16>
    %317 = vector.shape_cast %314 : vector<80x128xbf16> to vector<1x80x128xbf16>
    tpu.vector_store %arg7[%c0_169, %c0_170, %c0_171], %317 {strides = array<i32>} : memref<1x80x128xbf16, #tpu.memory_space<vmem>>, vector<1x80x128xbf16>,
    return
  }
  func.func @transform_0(%arg0: i32) -> (i32, i32, i32, i32) {
    %c0_i32 = arith.constant 0 : i32
    %c0_i32_0 = arith.constant 0 : i32
    %c0_i32_1 = arith.constant 0 : i32
    %c0_i32_2 = arith.constant 0 : i32
    return %arg0, %c0_i32, %c0_i32_0, %c0_i32_1 : i32, i32, i32, i32
  }
  func.func @transform_1(%arg0: i32) -> (i32, i32) {
    %c0_i32 = arith.constant 0 : i32
    %c0_i32_0 = arith.constant 0 : i32
    %c0_i32_1 = arith.constant 0 : i32
    return %c0_i32, %c0_i32_0 : i32, i32
  }
  func.func @transform_2(%arg0: i32) -> (i32, i32, i32) {
    %c0_i32 = arith.constant 0 : i32
    %c0_i32_0 = arith.constant 0 : i32
    %c0_i32_1 = arith.constant 0 : i32
    %c0_i32_2 = arith.constant 0 : i32
    return %c0_i32, %c0_i32_0, %c0_i32_1 : i32, i32, i32
  }
  func.func @transform_3(%arg0: i32) -> (i32, i32, i32) {
    %c0_i32 = arith.constant 0 : i32
    %c0_i32_0 = arith.constant 0 : i32
    %c0_i32_1 = arith.constant 0 : i32
    %c0_i32_2 = arith.constant 0 : i32
    return %c0_i32, %c0_i32_0, %c0_i32_1 : i32, i32, i32
  }
  func.func @transform_4(%arg0: i32) -> (i32, i32) {
    %c0_i32 = arith.constant 0 : i32
    %c0_i32_0 = arith.constant 0 : i32
    %c0_i32_1 = arith.constant 0 : i32
    return %c0_i32, %c0_i32_0 : i32, i32
  }
  func.func @transform_5(%arg0: i32) -> (i32, i32) {
    %c0_i32 = arith.constant 0 : i32
    %c0_i32_0 = arith.constant 0 : i32
    %c0_i32_1 = arith.constant 0 : i32
    return %c0_i32, %c0_i32_0 : i32, i32
  }
  func.func @transform_6(%arg0: i32) -> (i32, i32, i32) {
    %c0_i32 = arith.constant 0 : i32
    %c0_i32_0 = arith.constant 0 : i32
    %c0_i32_1 = arith.constant 0 : i32
    return %arg0, %c0_i32, %c0_i32_0 : i32, i32, i32
  }
}

</mosaic_0001>

<llo_original>
// kernel: tpu_custom_call.1
$region0: #{tpu_custom_call.1}
  #allocation0 [shape = 'u32[]', space=smem, size = 0x4, offset = 0x4, fixed_abs, tag = 'smem constant byte address 0x4 - core index']
  #allocation1 [shape = 'u32[144,128]{1,0:T(1,128)}', space=vmem, size = 0x12000, scoped, tag = 'internal scratch']
  #allocation2 [shape = 'bf16[108,128]{1,0:T(8,128)(2,1)}', space=vmem, size = 0x7000, scoped, tag = 'scratch operand']
  %s0 = inlined_call_operand.vmem [shape: bf16[2,4,100,4], index: 0, kind: input, shape index: {}]
  %s1 = inlined_call_operand.vmem [shape: f32[80,1], index: 1, kind: input, shape index: {}]
  %s2 = inlined_call_operand.vmem [shape: bf16[9,4,128], index: 2, kind: input, shape index: {}]
  %s3 = inlined_call_operand.hbm [shape: bf16[9,128,128], index: 3, kind: input, shape index: {}]
  %s4 = inlined_call_operand.vmem [shape: bf16[4,128], index: 4, kind: input, shape index: {}]
  %s5 = inlined_call_operand.vmem [shape: f32[8,128], index: 5, kind: input, shape index: {}]
  %s6 = inlined_call_operand.hbm [shape: bf16[2,80,128], index: 6, kind: output, shape index: {}]
  %s7 = sld [smem:[#allocation0]]
  $region61: #{tpu_custom_call.1} parent=0
    _
  %s9 = ssub.s32 1, %s7
  %s10 = scalar_select 0, %s9, %s7
  $region1: #{tpu_custom_call.1} parent=0
    #allocation3 [shape = 'u8[294912]{0}', space=vmem, size = 0x48000, scoped, tag = 'input window, operand 3, single buffered']
    #allocation4 [shape = 's32[2]{0}', space=sflag, size = 0x8, scoped, tag = 'scoped memory for tpu_custom_call.1']
    #allocation5 [shape = 's32[2]{0}', space=sflag, size = 0x8, scoped, tag = 'scoped memory for tpu_custom_call.1']
    #allocation6 [shape = 'u8[40960]{0}', space=vmem, size = 0xa000, scoped, tag = 'output window, operand 0']
    %11 = vsyncpa [#allocation4], 0
    %12 = vsyncpa [#allocation5], 0
    %s13 = scalar_lea.sflag [#allocation5], 1
    %14 = vsyncpa %s13, 0
    loop: start=0, step=1, limit=4
    $region2: #{tpu_custom_call.1} parent=1 // loop_pre_header
      _
    $region3: #{tpu_custom_call.1} parent=1 // loop_header
      %s16 = sphi 0, %s20
      %p17 = scmp.ge.s32.totalorder %s16, 4
      %s26 = sphi 0, %s28
      %s29 = sphi 0, %s26
      %s30 = sphi 0, %s29
      %s46 = sphi 0, %s30
      %s50 = sphi 0, %s50
      %s52 = sphi 0, %s50
      %s53 = sphi 0, %s52
      %s67 = sphi 0, %s53
      %s71 = sphi 0, %s71
      %s73 = sphi 0, %s71
      %s74 = sphi 0, %s73
      %s88 = sphi 0, %s74
      %s92 = sphi 0, %s92
      %s94 = sphi 0, %s92
      %s95 = sphi 0, %s94
      %s109 = sphi 0, %s95
      %s113 = sphi 0, %s113
      %s115 = sphi 0, %s113
      %s116 = sphi 0, %s115
      %s130 = sphi 0, %s116
      %s134 = sphi 0, %s134
      %s136 = sphi 0, %s134
      %s137 = sphi 0, %s136
      %s151 = sphi 0, %s137
      %s157 = sphi 0, %s159
      %s160 = sphi 0, %s157
      %s161 = sphi 0, %s160
      %s177 = sphi 0, %s161
    $region4: #{tpu_custom_call.1} parent=1 // loop_header_branch
      %19 = sbr.rel (%p17) target = $region8
    $region5: #{tpu_custom_call.1} parent=1 // loop_body
      %s21 = ssub.s32 %s16, 1
      %s22 = ssub.s32 %s16, 2
      %s23 = sadd.s32 %s16, 1
      %s24 = ssub.s32 %s16, %s23
      %p25 = scmp.eq.s32.totalorder %s24, 0
      %s27 = sadd.s32 %s26, 1
      %s28 = scalar_select %p25, %s26, %s27
      %p31 = pneg %p25
      %p32 = scmp.eq.s32.totalorder %s16, 1
      %p33 = por %p31, %p32
      %p34 = scmp.ne.s32.totalorder %s26, %s29
      %p35 = scmp.eq.s32.totalorder %s16, 0
      %p36 = por %p34, %p35
      %p37 = scmp.ne.s32.totalorder %s26, %s29
      %p38 = scmp.eq.s32.totalorder %s21, 1
      %p39 = por %p37, %p38
      %p40 = scmp.ne.s32.totalorder %s29, %s30
      %p41 = scmp.eq.s32.totalorder %s21, 0
      %p42 = por %p40, %p41
      %p43 = scmp.ne.s32.totalorder %s29, %s30
      %p44 = scmp.eq.s32.totalorder %s22, 1
      %p45 = por %p43, %p44
      %p47 = scmp.ne.s32.totalorder %s30, %s46
      %p48 = scmp.eq.s32.totalorder %s22, 0
      %p49 = por %p47, %p48
      %s51 = sadd.s32 %s50, 1
      %p54 = scmp.eq.s32.totalorder %s16, 1
      %p55 = scmp.ne.s32.totalorder %s50, %s52
      %p56 = scmp.eq.s32.totalorder %s16, 0
      %p57 = por %p55, %p56
      %p58 = scmp.ne.s32.totalorder %s50, %s52
      %p59 = scmp.eq.s32.totalorder %s21, 1
      %p60 = por %p58, %p59
      %p61 = scmp.ne.s32.totalorder %s52, %s53
      %p62 = scmp.eq.s32.totalorder %s21, 0
      %p63 = por %p61, %p62
      %p64 = scmp.ne.s32.totalorder %s52, %s53
      %p65 = scmp.eq.s32.totalorder %s22, 1
      %p66 = por %p64, %p65
      %p68 = scmp.ne.s32.totalorder %s53, %s67
      %p69 = scmp.eq.s32.totalorder %s22, 0
      %p70 = por %p68, %p69
      %s72 = sadd.s32 %s71, 1
      %p75 = scmp.eq.s32.totalorder %s16, 1
      %p76 = scmp.ne.s32.totalorder %s71, %s73
      %p77 = scmp.eq.s32.totalorder %s16, 0
      %p78 = por %p76, %p77
      %p79 = scmp.ne.s32.totalorder %s71, %s73
      %p80 = scmp.eq.s32.totalorder %s21, 1
      %p81 = por %p79, %p80
      %p82 = scmp.ne.s32.totalorder %s73, %s74
      %p83 = scmp.eq.s32.totalorder %s21, 0
      %p84 = por %p82, %p83
      %p85 = scmp.ne.s32.totalorder %s73, %s74
      %p86 = scmp.eq.s32.totalorder %s22, 1
      %p87 = por %p85, %p86
      %p89 = scmp.ne.s32.totalorder %s74, %s88
      %p90 = scmp.eq.s32.totalorder %s22, 0
      %p91 = por %p89, %p90
      %s93 = sadd.s32 %s92, 1
      %p96 = scmp.eq.s32.totalorder %s16, 1
      %p97 = scmp.ne.s32.totalorder %s92, %s94
      %p98 = scmp.eq.s32.totalorder %s16, 0
      %p99 = por %p97, %p98
      %p100 = scmp.ne.s32.totalorder %s92, %s94
      %p101 = scmp.eq.s32.totalorder %s21, 1
      %p102 = por %p100, %p101
      %p103 = scmp.ne.s32.totalorder %s94, %s95
      %p104 = scmp.eq.s32.totalorder %s21, 0
      %p105 = por %p103, %p104
      %p106 = scmp.ne.s32.totalorder %s94, %s95
      %p107 = scmp.eq.s32.totalorder %s22, 1
      %p108 = por %p106, %p107
      %p110 = scmp.ne.s32.totalorder %s95, %s109
      %p111 = scmp.eq.s32.totalorder %s22, 0
      %p112 = por %p110, %p111
      %s114 = sadd.s32 %s113, 1
      %p117 = scmp.eq.s32.totalorder %s16, 1
      %p118 = scmp.ne.s32.totalorder %s113, %s115
      %p119 = scmp.eq.s32.totalorder %s16, 0
      %p120 = por %p118, %p119
      %p121 = scmp.ne.s32.totalorder %s113, %s115
      %p122 = scmp.eq.s32.totalorder %s21, 1
      %p123 = por %p121, %p122
      %p124 = scmp.ne.s32.totalorder %s115, %s116
      %p125 = scmp.eq.s32.totalorder %s21, 0
      %p126 = por %p124, %p125
      %p127 = scmp.ne.s32.totalorder %s115, %s116
      %p128 = scmp.eq.s32.totalorder %s22, 1
      %p129 = por %p127, %p128
      %p131 = scmp.ne.s32.totalorder %s116, %s130
      %p132 = scmp.eq.s32.totalorder %s22, 0
      %p133 = por %p131, %p132
      %s135 = sadd.s32 %s134, 1
      %p138 = scmp.eq.s32.totalorder %s16, 1
      %p139 = scmp.ne.s32.totalorder %s134, %s136
      %p140 = scmp.eq.s32.totalorder %s16, 0
      %p141 = por %p139, %p140
      %p142 = scmp.ne.s32.totalorder %s134, %s136
      %p143 = scmp.eq.s32.totalorder %s21, 1
      %p144 = por %p142, %p143
      %p145 = scmp.ne.s32.totalorder %s136, %s137
      %p146 = scmp.eq.s32.totalorder %s21, 0
      %p147 = por %p145, %p146
      %p148 = scmp.ne.s32.totalorder %s136, %s137
      %p149 = scmp.eq.s32.totalorder %s22, 1
      %p150 = por %p148, %p149
      %p152 = scmp.ne.s32.totalorder %s137, %s151
      %p153 = scmp.eq.s32.totalorder %s22, 0
      %p154 = por %p152, %p153
      %s155 = ssub.s32 %s16, %s23
      %p156 = scmp.eq.s32.totalorder %s155, 0
      %s158 = sadd.s32 %s157, 1
      %s159 = scalar_select %p156, %s157, %s158
      %p162 = pneg %p156
      %p163 = scmp.eq.s32.totalorder %s16, 1
      %p164 = por %p162, %p163
      %p165 = scmp.ne.s32.totalorder %s157, %s160
      %p166 = scmp.eq.s32.totalorder %s16, 0
      %p167 = por %p165, %p166
      %p168 = scmp.ne.s32.totalorder %s157, %s160
      %p169 = scmp.eq.s32.totalorder %s21, 1
      %p170 = por %p168, %p169
      %p171 = scmp.ne.s32.totalorder %s160, %s161
      %p172 = scmp.eq.s32.totalorder %s21, 0
      %p173 = por %p171, %p172
      %p174 = scmp.ne.s32.totalorder %s160, %s161
      %p175 = scmp.eq.s32.totalorder %s22, 1
      %p176 = por %p174, %p175
      %p178 = scmp.ne.s32.totalorder %s161, %s177
      %p179 = scmp.eq.s32.totalorder %s22, 0
      %p180 = por %p178, %p179
      %p181 = scmp.le.s32.totalorder 1, %s16
      %p182 = scmp.lt.s32.totalorder %s16, 3
      %p183 = pnand %p181, %p182
      %p184 = pneg %p183
      // Predicated region
      $region9: #{tpu_custom_call.1} parent=5 // pred_check
        _
      $region10: #{tpu_custom_call.1} parent=5 // pred_check_branch
        %186 = sbr.rel (%p183) target = $region12
      $region11: #{tpu_custom_call.1} parent=5 // pred_region
        %s187 = ssub.s32 %s16, 1
        // Predicated region
        $region13: #{tpu_custom_call.1} parent=11 // pred_check
          %p188 = pneg %p63
        $region14: #{tpu_custom_call.1} parent=11 // pred_check_branch
          %190 = sbr.rel (%p188) target = $region16
        $region15: #{tpu_custom_call.1} parent=11 // pred_region
          _
        $region16: #{tpu_custom_call.1} parent=11 // pred_fallthru
          _
        // Predicated region
        $region17: #{tpu_custom_call.1} parent=11 // pred_check
          %p191 = pneg %p84
        $region18: #{tpu_custom_call.1} parent=11 // pred_check_branch
          %193 = sbr.rel (%p191) target = $region20
        $region19: #{tpu_custom_call.1} parent=11 // pred_region
          _
        $region20: #{tpu_custom_call.1} parent=11 // pred_fallthru
          _
        // Predicated region
        $region21: #{tpu_custom_call.1} parent=11 // pred_check
          %p194 = pneg %p105
        $region22: #{tpu_custom_call.1} parent=11 // pred_check_branch
          %196 = sbr.rel (%p194) target = $region24
        $region23: #{tpu_custom_call.1} parent=11 // pred_region
          %s198 = ssub.s32 9216, 9216
          %199 = vsyncadd [#allocation4], %s198
          %s200 = sshll.u32 [#allocation3], 4
          %s201 = int_to_ptr.vmem [resolvable:$true] %s200
          %206 = dma.hbm_to_vmem [thread:$0]  %s3, 9216, %s201, [#allocation4], 64, 64, 4
        $region24: #{tpu_custom_call.1} parent=11 // pred_fallthru
          _
        // Predicated region
        $region25: #{tpu_custom_call.1} parent=11 // pred_check
          %p207 = pneg %p126
        $region26: #{tpu_custom_call.1} parent=11 // pred_check_branch
          %209 = sbr.rel (%p207) target = $region28
        $region27: #{tpu_custom_call.1} parent=11 // pred_region
          _
        $region28: #{tpu_custom_call.1} parent=11 // pred_fallthru
          _
        // Predicated region
        $region29: #{tpu_custom_call.1} parent=11 // pred_check
          %p210 = pneg %p147
        $region30: #{tpu_custom_call.1} parent=11 // pred_check_branch
          %212 = sbr.rel (%p210) target = $region32
        $region31: #{tpu_custom_call.1} parent=11 // pred_region
          _
        $region32: #{tpu_custom_call.1} parent=11 // pred_fallthru
          _
      $region12: #{tpu_custom_call.1} parent=5 // pred_fallthru
        _
      %p213 = scmp.lt.s32.totalorder %s16, 2
      // Predicated region
      $region33: #{tpu_custom_call.1} parent=5 // pred_check
        %p214 = pneg %p213
      $region34: #{tpu_custom_call.1} parent=5 // pred_check_branch
        %216 = sbr.rel (%p214) target = $region36
      $region35: #{tpu_custom_call.1} parent=5 // pred_region
        // Predicated region
        $region37: #{tpu_custom_call.1} parent=35 // pred_check
          %p217 = pneg %p36
        $region38: #{tpu_custom_call.1} parent=35 // pred_check_branch
          %219 = sbr.rel (%p217) target = $region40
        $region39: #{tpu_custom_call.1} parent=35 // pred_region
          %p220 = scmp.lt.s32.totalorder %s16, 1
          %s221 = scalar_select %p220, %s16, 1
          %s222 = smul.addr %s221, 52
          %s223 = smul.addr %s222, 4
          %s224 = scalar_lea.vmem %s0, %s223
        $region40: #{tpu_custom_call.1} parent=35 // pred_fallthru
          _
      $region36: #{tpu_custom_call.1} parent=5 // pred_fallthru
        _
      %p225 = scmp.le.s32.totalorder 1, %s16
      %p226 = scmp.lt.s32.totalorder %s16, 3
      %p227 = pnand %p225, %p226
      %p228 = pneg %p227
      // Predicated region
      $region41: #{tpu_custom_call.1} parent=5 // pred_check
        _
      $region42: #{tpu_custom_call.1} parent=5 // pred_check_branch
        %230 = sbr.rel (%p227) target = $region44
      $region43: #{tpu_custom_call.1} parent=5 // pred_region
        %s231 = ssub.s32 %s16, 1
        // Predicated region
        $region45: #{tpu_custom_call.1} parent=43 // pred_check
          %p232 = pneg %p105
        $region46: #{tpu_custom_call.1} parent=43 // pred_check_branch
          %234 = sbr.rel (%p232) target = $region48
        $region47: #{tpu_custom_call.1} parent=43 // pred_region
          %235 = dma.done [#allocation4], 9216
        $region48: #{tpu_custom_call.1} parent=43 // pred_fallthru
          _
        %p236 = scmp.lt.s32.totalorder %s21, 1
        %s237 = scalar_select %p236, %s21, 1
        %s238 = smul.addr %s237, 52
        %s239 = smul.addr %s238, 4
        %s240 = scalar_lea.vmem %s0, %s239
        %p241 = pneg %p42
        %p242 = pneg %p39
        %p243 = pneg %p63
        %p244 = pneg %p60
        %p245 = pneg %p84
        %p246 = pneg %p81
        %p247 = pneg %p105
        %p248 = pneg %p102
        %p249 = pneg %p126
        %p250 = pneg %p123
        %p251 = pneg %p147
        %p252 = pneg %p144
        %p253 = pneg %p173
        %p254 = pneg %p170
        %s255 = sand.u32 %s160, 1
        %s256 = scalar_lea.sflag [#allocation5], %s255
        %s257 = sand.u32 %s160, 1
        %s258 = smul.addr %s257, 40
        %s259 = scalar_lea.vmem [#allocation6], %s258
        %p260 = scmp.lt.s32.totalorder %s21, 1
        %s261 = scalar_select %p260, %s21, 1
        %s262 = smul.addr %s261, 52
        %s263 = smul.addr %s262, 4
        %s264 = scalar_lea.vmem %s0, %s263
        %v266 = vld [vmem:[%s5] sm:$0xff]
        %v267 = vld [vmem:[%s1] sm:$0xff]
        %v268 = vld [vmem:[%s1 + $0x8] sm:$0xff]
        %v269 = vld [vmem:[%s1 + $0x10] sm:$0xff]
        %v270 = vld [vmem:[%s1 + $0x18] sm:$0xff]
        %v271 = vld [vmem:[%s1 + $0x20] sm:$0xff]
        %v272 = vld [vmem:[%s1 + $0x28] sm:$0xff]
        %v273 = vld [vmem:[%s1 + $0x30] sm:$0xff]
        %v274 = vld [vmem:[%s1 + $0x38] sm:$0xff]
        %v275 = vld [vmem:[%s1 + $0x40] sm:$0xff]
        %v276 = vld [vmem:[%s1 + $0x48] sm:$0xff]
        %278 = vset.pattern.permute.xlu0 0
        %279 = vperm.xlu0 %278, %v267
        %v280 = vpop.permute.xlu0 %279
        %283 = vset.pattern.permute.xlu0 0
        %284 = vperm.xlu0 %283, %v268
        %v285 = vpop.permute.xlu0 %284
        %288 = vset.pattern.permute.xlu0 0
        %289 = vperm.xlu0 %288, %v269
        %v290 = vpop.permute.xlu0 %289
        %293 = vset.pattern.permute.xlu0 0
        %294 = vperm.xlu0 %293, %v270
        %v295 = vpop.permute.xlu0 %294
        %298 = vset.pattern.permute.xlu0 0
        %299 = vperm.xlu0 %298, %v271
        %v300 = vpop.permute.xlu0 %299
        %303 = vset.pattern.permute.xlu0 0
        %304 = vperm.xlu0 %303, %v272
        %v305 = vpop.permute.xlu0 %304
        %308 = vset.pattern.permute.xlu0 0
        %309 = vperm.xlu0 %308, %v273
        %v310 = vpop.permute.xlu0 %309
        %313 = vset.pattern.permute.xlu0 0
        %314 = vperm.xlu0 %313, %v274
        %v315 = vpop.permute.xlu0 %314
        %318 = vset.pattern.permute.xlu0 0
        %319 = vperm.xlu0 %318, %v275
        %v320 = vpop.permute.xlu0 %319
        %323 = vset.pattern.permute.xlu0 0
        %324 = vperm.xlu0 %323, %v276
        %v325 = vpop.permute.xlu0 %324
        %v327 = vlaneseq
        %v328 = vand.u32 %v327, 127
        %vm329 = vcmp.ge.s32.totalorder %v328, 0
        %vm330 = vcmp.lt.s32.totalorder %v328, 4
        %vm331 = vmand %vm329, %vm330
        %v332 = vsel %vm331, 1, 0
        %v333 = vcvt.s32.f32 %v332
        %vm334 = vcmp.ge.s32.totalorder %v328, 64
        %vm335 = vcmp.lt.s32.totalorder %v328, 68
        %vm336 = vmand %vm334, %vm335
        %v337 = vsel %vm336, 1, 0
        %v338 = vcvt.s32.f32 %v337
        %v339 = vld [vmem:[%s264] sm:$0xf]
        %v340 = vld [vmem:[%s264 + $0x4] sm:$0xf]
        %v341 = vld [vmem:[%s264 + $0x8] sm:$0xf]
        %v342 = vld [vmem:[%s264 + $0xc] sm:$0xf]
        %v343 = vld [vmem:[%s264 + $0x10] sm:$0xf]
        %v344 = vld [vmem:[%s264 + $0x14] sm:$0xf]
        %v345 = vld [vmem:[%s264 + $0x18] sm:$0xf]
        %v346 = vld [vmem:[%s264 + $0x1c] sm:$0xf]
        %v347 = vld [vmem:[%s264 + $0x20] sm:$0xf]
        %v348 = vld [vmem:[%s264 + $0x24] sm:$0xf]
        %v349 = vld [vmem:[%s2] sm:$0x3]
        %s350 = scalar_lea.vmem %s264, 52
        %v351 = vld [vmem:[%s350] sm:$0xf]
        %v352 = vld [vmem:[%s350 + $0x4] sm:$0xf]
        %v353 = vld [vmem:[%s350 + $0x8] sm:$0xf]
        %v354 = vld [vmem:[%s350 + $0xc] sm:$0xf]
        %v355 = vld [vmem:[%s350 + $0x10] sm:$0xf]
        %v356 = vld [vmem:[%s350 + $0x14] sm:$0xf]
        %v357 = vld [vmem:[%s350 + $0x18] sm:$0xf]
        %v358 = vld [vmem:[%s350 + $0x1c] sm:$0xf]
        %v359 = vld [vmem:[%s350 + $0x20] sm:$0xf]
        %v360 = vld [vmem:[%s350 + $0x24] sm:$0xf]
        %s361 = scalar_lea.vmem %s2, 2
        %v362 = vld [vmem:[%s361] sm:$0x3]
        %v373 = vunpack.c.l.b16 %v351
        %v374 = vunpack.c.l.b16 %v352
        %v375 = vunpack.c.l.b16 %v353
        %v376 = vunpack.c.l.b16 %v354
        %v377 = vunpack.c.l.b16 %v355
        %v378 = vunpack.c.l.b16 %v356
        %v379 = vunpack.c.l.b16 %v357
        %v380 = vunpack.c.l.b16 %v358
        %v381 = vunpack.c.l.b16 %v359
        %v382 = vunpack.c.l.b16 %v360
        %v383 = vpack.c.b16 %v374, %v373
        %v384 = vpack.c.b16 %v376, %v375
        %v385 = vpack.c.b16 %v378, %v377
        %v386 = vpack.c.b16 %v380, %v379
        %v387 = vpack.c.b16 %v382, %v381
        %vm388 = vcmask 31744
        %v390 = vsel %vm388, %v383, 0
        %v393 = vsel %vm388, %v384, 0
        %v396 = vsel %vm388, %v385, 0
        %v399 = vsel %vm388, %v386, 0
        %v402 = vsel %vm388, %v387, 0
        %vm404 = vcmask 1041408
        %v406 = vsel %vm404, %v362, 0
        %408 = vmatprep.subr.bf16.mxu0 0
        %409 = vmatpush1.bf16.msra.mxu0 %v406
        %410 = vmatprep.subr.bf16.mxu0 0
        %411 = vmatpush1.bf16.msra.mxu0 0
        %412 = vmatprep.subr.bf16.mxu0 0
        %413 = vmatpush1.bf16.msra.mxu0 0
        %414 = vmatprep.subr.bf16.mxu0 0
        %415 = vmatpush1.bf16.msra.mxu0 0
        %416 = vmatprep.subr.bf16.mxu0 0
        %417 = vmatpush1.bf16.msra.mxu0 0
        %418 = vmatprep.subr.bf16.mxu0 0
        %419 = vmatpush1.bf16.msra.mxu0 0
        %420 = vmatprep.subr.bf16.mxu0 0
        %421 = vmatpush1.bf16.msra.mxu0 0
        %422 = vmatprep.subr.bf16.mxu0 0
        %423 = vmatpush1.bf16.msra.mxu0 0
        %424 = vmatprep.subr.bf16.mxu0 0
        %425 = vmatpush1.bf16.msra.mxu0 0
        %426 = vmatprep.subr.bf16.mxu0 0
        %427 = vmatpush1.bf16.msra.mxu0 0
        %428 = vmatprep.subr.bf16.mxu0 0
        %429 = vmatpush1.bf16.msra.mxu0 0
        %430 = vmatprep.subr.bf16.mxu0 0
        %431 = vmatpush1.bf16.msra.mxu0 0
        %432 = vmatprep.subr.bf16.mxu0 0
        %433 = vmatpush1.bf16.msra.mxu0 0
        %434 = vmatprep.subr.bf16.mxu0 0
        %435 = vmatpush1.bf16.msra.mxu0 0
        %436 = vmatprep.subr.bf16.mxu0 0
        %437 = vmatpush1.bf16.msra.mxu0 0
        %438 = vmatprep.subr.bf16.mxu0 0
        %439 = vmatpush1.bf16.msra.mxu0 0
        %440 = vmatprep.mubr.bf16.mxu0 0
        %441 = vmatmul.mubr.bf16.gmra.mrb[0].mxu0 %v390
        %v442 = vpop.f32.mrb[0].mxu0
        %v443 = vadd.f32 0.0, %v442
        %v444 = vpop.f32.mrb[0].mxu0
        %v445 = vpop.f32.mrb[0].mxu0
        %v446 = vadd.f32 0.0, %v445
        %v447 = vpop.f32.mrb[0].mxu0
        %448 = vmatprep.mubr.bf16.mxu0 0
        %449 = vmatmul.mubr.bf16.gmra.mrb[0].mxu0 %v393
        %v450 = vpop.f32.mrb[0].mxu0
        %v451 = vadd.f32 0.0, %v450
        %v452 = vpop.f32.mrb[0].mxu0
        %v453 = vpop.f32.mrb[0].mxu0
        %v454 = vadd.f32 0.0, %v453
        %v455 = vpop.f32.mrb[0].mxu0
        %456 = vmatprep.mubr.bf16.mxu0 0
        %457 = vmatmul.mubr.bf16.gmra.mrb[0].mxu0 %v396
        %v458 = vpop.f32.mrb[0].mxu0
        %v459 = vadd.f32 0.0, %v458
        %v460 = vpop.f32.mrb[0].mxu0
        %v461 = vpop.f32.mrb[0].mxu0
        %v462 = vadd.f32 0.0, %v461
        %v463 = vpop.f32.mrb[0].mxu0
        %464 = vmatprep.mubr.bf16.mxu0 0
        %465 = vmatmul.mubr.bf16.gmra.mrb[0].mxu0 %v399
        %v466 = vpop.f32.mrb[0].mxu0
        %v467 = vadd.f32 0.0, %v466
        %v468 = vpop.f32.mrb[0].mxu0
        %v469 = vpop.f32.mrb[0].mxu0
        %v470 = vadd.f32 0.0, %v469
        %v471 = vpop.f32.mrb[0].mxu0
        %472 = vmatprep.mubr.bf16.mxu0 0
        %473 = vmatmul.mubr.bf16.gmra.mrb[0].mxu0 %v402
        %v474 = vpop.f32.mrb[0].mxu0
        %v475 = vadd.f32 0.0, %v474
        %v476 = vpop.f32.mrb[0].mxu0
        %v477 = vpop.f32.mrb[0].mxu0
        %v478 = vadd.f32 0.0, %v477
        %v479 = vpop.f32.mrb[0].mxu0
        %480 = vdwg.mxu0
        %v491 = vunpack.c.l.b16 %v339
        %v492 = vunpack.c.l.b16 %v340
        %v493 = vunpack.c.l.b16 %v341
        %v494 = vunpack.c.l.b16 %v342
        %v495 = vunpack.c.l.b16 %v343
        %v496 = vunpack.c.l.b16 %v344
        %v497 = vunpack.c.l.b16 %v345
        %v498 = vunpack.c.l.b16 %v346
        %v499 = vunpack.c.l.b16 %v347
        %v500 = vunpack.c.l.b16 %v348
        %v501 = vpack.c.b16 %v492, %v491
        %v502 = vpack.c.b16 %v494, %v493
        %v503 = vpack.c.b16 %v496, %v495
        %v504 = vpack.c.b16 %v498, %v497
        %v505 = vpack.c.b16 %v500, %v499
        %v507 = vsel %vm388, %v501, 0
        %v510 = vsel %vm388, %v502, 0
        %v513 = vsel %vm388, %v503, 0
        %v516 = vsel %vm388, %v504, 0
        %v519 = vsel %vm388, %v505, 0
        %v522 = vsel %vm404, %v349, 0
        %524 = vmatprep.subr.bf16.mxu0 0
        %525 = vmatpush1.bf16.msra.mxu0 %v522
        %526 = vmatprep.subr.bf16.mxu0 0
        %527 = vmatpush1.bf16.msra.mxu0 0
        %528 = vmatprep.subr.bf16.mxu0 0
        %529 = vmatpush1.bf16.msra.mxu0 0
        %530 = vmatprep.subr.bf16.mxu0 0
        %531 = vmatpush1.bf16.msra.mxu0 0
        %532 = vmatprep.subr.bf16.mxu0 0
        %533 = vmatpush1.bf16.msra.mxu0 0
        %534 = vmatprep.subr.bf16.mxu0 0
        %535 = vmatpush1.bf16.msra.mxu0 0
        %536 = vmatprep.subr.bf16.mxu0 0
        %537 = vmatpush1.bf16.msra.mxu0 0
        %538 = vmatprep.subr.bf16.mxu0 0
        %539 = vmatpush1.bf16.msra.mxu0 0
        %540 = vmatprep.subr.bf16.mxu0 0
        %541 = vmatpush1.bf16.msra.mxu0 0
        %542 = vmatprep.subr.bf16.mxu0 0
        %543 = vmatpush1.bf16.msra.mxu0 0
        %544 = vmatprep.subr.bf16.mxu0 0
        %545 = vmatpush1.bf16.msra.mxu0 0
        %546 = vmatprep.subr.bf16.mxu0 0
        %547 = vmatpush1.bf16.msra.mxu0 0
        %548 = vmatprep.subr.bf16.mxu0 0
        %549 = vmatpush1.bf16.msra.mxu0 0
        %550 = vmatprep.subr.bf16.mxu0 0
        %551 = vmatpush1.bf16.msra.mxu0 0
        %552 = vmatprep.subr.bf16.mxu0 0
        %553 = vmatpush1.bf16.msra.mxu0 0
        %554 = vmatprep.subr.bf16.mxu0 0
        %555 = vmatpush1.bf16.msra.mxu0 0
        %556 = vmatprep.mubr.bf16.mxu0 0
        %557 = vmatmul.mubr.bf16.gmra.mrb[0].mxu0 %v507
        %v558 = vpop.f32.mrb[0].mxu0
        %v559 = vadd.f32 %v443, %v558
        %v560 = vpop.f32.mrb[0].mxu0
        %v561 = vpop.f32.mrb[0].mxu0
        %v562 = vadd.f32 %v446, %v561
        %v563 = vpop.f32.mrb[0].mxu0
        %564 = vmatprep.mubr.bf16.mxu0 0
        %565 = vmatmul.mubr.bf16.gmra.mrb[0].mxu0 %v510
        %v566 = vpop.f32.mrb[0].mxu0
        %v567 = vadd.f32 %v451, %v566
        %v568 = vpop.f32.mrb[0].mxu0
        %v569 = vpop.f32.mrb[0].mxu0
        %v570 = vadd.f32 %v454, %v569
        %v571 = vpop.f32.mrb[0].mxu0
        %572 = vmatprep.mubr.bf16.mxu0 0
        %573 = vmatmul.mubr.bf16.gmra.mrb[0].mxu0 %v513
        %v574 = vpop.f32.mrb[0].mxu0
        %v575 = vadd.f32 %v459, %v574
        %v576 = vpop.f32.mrb[0].mxu0
        %v577 = vpop.f32.mrb[0].mxu0
        %v578 = vadd.f32 %v462, %v577
        %v579 = vpop.f32.mrb[0].mxu0
        %580 = vmatprep.mubr.bf16.mxu0 0
        %581 = vmatmul.mubr.bf16.gmra.mrb[0].mxu0 %v516
        %v582 = vpop.f32.mrb[0].mxu0
        %v583 = vadd.f32 %v467, %v582
        %v584 = vpop.f32.mrb[0].mxu0
        %v585 = vpop.f32.mrb[0].mxu0
        %v586 = vadd.f32 %v470, %v585
        %v587 = vpop.f32.mrb[0].mxu0
        %588 = vmatprep.mubr.bf16.mxu0 0
        %589 = vmatmul.mubr.bf16.gmra.mrb[0].mxu0 %v519
        %v590 = vpop.f32.mrb[0].mxu0
        %v591 = vadd.f32 %v475, %v590
        %v592 = vpop.f32.mrb[0].mxu0
        %v593 = vpop.f32.mrb[0].mxu0
        %v594 = vadd.f32 %v478, %v593
        %v595 = vpop.f32.mrb[0].mxu0
        %596 = vdwg.mxu0
        %v597 = vld [vmem:[%s264] sm:$0xf]
        %v598 = vld [vmem:[%s264 + $0x4] sm:$0xf]
        %v599 = vld [vmem:[%s264 + $0x8] sm:$0xf]
        %v600 = vld [vmem:[%s264 + $0xc] sm:$0xf]
        %v601 = vld [vmem:[%s264 + $0x10] sm:$0xf]
        %v602 = vld [vmem:[%s264 + $0x14] sm:$0xf]
        %v603 = vld [vmem:[%s264 + $0x18] sm:$0xf]
        %v604 = vld [vmem:[%s264 + $0x1c] sm:$0xf]
        %v605 = vld [vmem:[%s264 + $0x20] sm:$0xf]
        %v606 = vld [vmem:[%s264 + $0x24] sm:$0xf]
        %v607 = vld [vmem:[%s264 + $0x28] sm:$0x1]
        %s608 = scalar_lea.vmem %s2, 4
        %v609 = vld [vmem:[%s608] sm:$0x3]
        %v621 = vunpack.c.l.b16 %v597
        %v622 = vunpack.c.l.b16 %v598
        %v623 = vunpack.c.l.b16 %v599
        %v624 = vunpack.c.l.b16 %v600
        %v625 = vunpack.c.l.b16 %v601
        %v626 = vunpack.c.l.b16 %v602
        %v627 = vunpack.c.l.b16 %v603
        %v628 = vunpack.c.l.b16 %v604
        %v629 = vunpack.c.l.b16 %v605
        %v630 = vunpack.c.l.b16 %v606
        %v631 = vunpack.c.l.b16 %v607
        %v632 = vpack.c.b16 %v622, %v621
        %v633 = vpack.c.b16 %v624, %v623
        %v634 = vpack.c.b16 %v626, %v625
        %v635 = vpack.c.b16 %v628, %v627
        %v636 = vpack.c.b16 %v630, %v629
        %v637 = vpack.c.b16 %v631, %v631
        %vm638 = vsmask.f32 7424
        %v640 = vshrl.u32 %v632, 16
        %v642 = vshll.u32 %v632, 16
        %v644 = vrot.slane %v642, 1
        %v645 = vor.u32 %v640, %v644
        %v647 = vshll.u32 %v633, 16
        %v649 = vrot.slane %v647, 1
        %v650 = vsel %vm638, %v645, %v649
        %v651 = vshrl.u32 %v633, 16
        %v653 = vor.u32 %v651, %v649
        %v655 = vshll.u32 %v634, 16
        %v657 = vrot.slane %v655, 1
        %v658 = vsel %vm638, %v653, %v657
        %v659 = vshrl.u32 %v634, 16
        %v661 = vor.u32 %v659, %v657
        %v663 = vshll.u32 %v635, 16
        %v665 = vrot.slane %v663, 1
        %v666 = vsel %vm638, %v661, %v665
        %v667 = vshrl.u32 %v635, 16
        %v669 = vor.u32 %v667, %v665
        %v671 = vshll.u32 %v636, 16
        %v673 = vrot.slane %v671, 1
        %v674 = vsel %vm638, %v669, %v673
        %v675 = vshrl.u32 %v636, 16
        %v677 = vor.u32 %v675, %v673
        %v679 = vshll.u32 %v637, 16
        %v681 = vrot.slane %v679, 1
        %v682 = vsel %vm638, %v677, %v681
        %v684 = vsel %vm388, %v650, 0
        %v687 = vsel %vm388, %v658, 0
        %v690 = vsel %vm388, %v666, 0
        %v693 = vsel %vm388, %v674, 0
        %v696 = vsel %vm388, %v682, 0
        %v699 = vsel %vm404, %v609, 0
        %701 = vmatprep.subr.bf16.mxu0 0
        %702 = vmatpush1.bf16.msra.mxu0 %v699
        %703 = vmatprep.subr.bf16.mxu0 0
        %704 = vmatpush1.bf16.msra.mxu0 0
        %705 = vmatprep.subr.bf16.mxu0 0
        %706 = vmatpush1.bf16.msra.mxu0 0
        %707 = vmatprep.subr.bf16.mxu0 0
        %708 = vmatpush1.bf16.msra.mxu0 0
        %709 = vmatprep.subr.bf16.mxu0 0
        %710 = vmatpush1.bf16.msra.mxu0 0
        %711 = vmatprep.subr.bf16.mxu0 0
        %712 = vmatpush1.bf16.msra.mxu0 0
        %713 = vmatprep.subr.bf16.mxu0 0
        %714 = vmatpush1.bf16.msra.mxu0 0
        %715 = vmatprep.subr.bf16.mxu0 0
        %716 = vmatpush1.bf16.msra.mxu0 0
        %717 = vmatprep.subr.bf16.mxu0 0
        %718 = vmatpush1.bf16.msra.mxu0 0
        %719 = vmatprep.subr.bf16.mxu0 0
        %720 = vmatpush1.bf16.msra.mxu0 0
        %721 = vmatprep.subr.bf16.mxu0 0
        %722 = vmatpush1.bf16.msra.mxu0 0
        %723 = vmatprep.subr.bf16.mxu0 0
        %724 = vmatpush1.bf16.msra.mxu0 0
        %725 = vmatprep.subr.bf16.mxu0 0
        %726 = vmatpush1.bf16.msra.mxu0 0
        %727 = vmatprep.subr.bf16.mxu0 0
        %728 = vmatpush1.bf16.msra.mxu0 0
        %729 = vmatprep.subr.bf16.mxu0 0
        %730 = vmatpush1.bf16.msra.mxu0 0
        %731 = vmatprep.subr.bf16.mxu0 0
        %732 = vmatpush1.bf16.msra.mxu0 0
        %733 = vmatprep.mubr.bf16.mxu0 0
        %734 = vmatmul.mubr.bf16.gmra.mrb[0].mxu0 %v684
        %v735 = vpop.f32.mrb[0].mxu0
        %v736 = vadd.f32 0.0, %v735
        %v737 = vpop.f32.mrb[0].mxu0
        %v738 = vpop.f32.mrb[0].mxu0
        %v739 = vadd.f32 0.0, %v738
        %v740 = vpop.f32.mrb[0].mxu0
        %741 = vmatprep.mubr.bf16.mxu0 0
        %742 = vmatmul.mubr.bf16.gmra.mrb[0].mxu0 %v687
        %v743 = vpop.f32.mrb[0].mxu0
        %v744 = vadd.f32 0.0, %v743
        %v745 = vpop.f32.mrb[0].mxu0
        %v746 = vpop.f32.mrb[0].mxu0
        %v747 = vadd.f32 0.0, %v746
        %v748 = vpop.f32.mrb[0].mxu0
        %749 = vmatprep.mubr.bf16.mxu0 0
        %750 = vmatmul.mubr.bf16.gmra.mrb[0].mxu0 %v690
        %v751 = vpop.f32.mrb[0].mxu0
        %v752 = vadd.f32 0.0, %v751
        %v753 = vpop.f32.mrb[0].mxu0
        %v754 = vpop.f32.mrb[0].mxu0
        %v755 = vadd.f32 0.0, %v754
        %v756 = vpop.f32.mrb[0].mxu0
        %757 = vmatprep.mubr.bf16.mxu0 0
        %758 = vmatmul.mubr.bf16.gmra.mrb[0].mxu0 %v693
        %v759 = vpop.f32.mrb[0].mxu0
        %v760 = vadd.f32 0.0, %v759
        %v761 = vpop.f32.mrb[0].mxu0
        %v762 = vpop.f32.mrb[0].mxu0
        %v763 = vadd.f32 0.0, %v762
        %v764 = vpop.f32.mrb[0].mxu0
        %765 = vmatprep.mubr.bf16.mxu0 0
        %766 = vmatmul.mubr.bf16.gmra.mrb[0].mxu0 %v696
        %v767 = vpop.f32.mrb[0].mxu0
        %v768 = vadd.f32 0.0, %v767
        %v769 = vpop.f32.mrb[0].mxu0
        %v770 = vpop.f32.mrb[0].mxu0
        %v771 = vadd.f32 0.0, %v770
        %v772 = vpop.f32.mrb[0].mxu0
        %773 = vdwg.mxu0
        %v774 = vadd.f32 %v559, %v736
        %v775 = vadd.f32 %v562, %v739
        %v776 = vadd.f32 %v567, %v744
        %v777 = vadd.f32 %v570, %v747
        %v778 = vadd.f32 %v575, %v752
        %v779 = vadd.f32 %v578, %v755
        %v780 = vadd.f32 %v583, %v760
        %v781 = vadd.f32 %v586, %v763
        %v782 = vadd.f32 %v591, %v768
        %v783 = vadd.f32 %v594, %v771
        %s784 = scalar_lea.vmem %s264, 104
        %v785 = vld [vmem:[%s784] sm:$0xf]
        %v786 = vld [vmem:[%s784 + $0x4] sm:$0xf]
        %v787 = vld [vmem:[%s784 + $0x8] sm:$0xf]
        %v788 = vld [vmem:[%s784 + $0xc] sm:$0xf]
        %v789 = vld [vmem:[%s784 + $0x10] sm:$0xf]
        %v790 = vld [vmem:[%s784 + $0x14] sm:$0xf]
        %v791 = vld [vmem:[%s784 + $0x18] sm:$0xf]
        %v792 = vld [vmem:[%s784 + $0x1c] sm:$0xf]
        %v793 = vld [vmem:[%s784 + $0x20] sm:$0xf]
        %v794 = vld [vmem:[%s784 + $0x24] sm:$0xf]
        %s795 = scalar_lea.vmem %s2, 6
        %v796 = vld [vmem:[%s795] sm:$0x3]
        %v807 = vunpack.c.l.b16 %v785
        %v808 = vunpack.c.l.b16 %v786
        %v809 = vunpack.c.l.b16 %v787
        %v810 = vunpack.c.l.b16 %v788
        %v811 = vunpack.c.l.b16 %v789
        %v812 = vunpack.c.l.b16 %v790
        %v813 = vunpack.c.l.b16 %v791
        %v814 = vunpack.c.l.b16 %v792
        %v815 = vunpack.c.l.b16 %v793
        %v816 = vunpack.c.l.b16 %v794
        %v817 = vpack.c.b16 %v808, %v807
        %v818 = vpack.c.b16 %v810, %v809
        %v819 = vpack.c.b16 %v812, %v811
        %v820 = vpack.c.b16 %v814, %v813
        %v821 = vpack.c.b16 %v816, %v815
        %v823 = vsel %vm388, %v817, 0
        %v826 = vsel %vm388, %v818, 0
        %v829 = vsel %vm388, %v819, 0
        %v832 = vsel %vm388, %v820, 0
        %v835 = vsel %vm388, %v821, 0
        %v838 = vsel %vm404, %v796, 0
        %840 = vmatprep.subr.bf16.mxu0 0
        %841 = vmatpush1.bf16.msra.mxu0 %v838
        %842 = vmatprep.subr.bf16.mxu0 0
        %843 = vmatpush1.bf16.msra.mxu0 0
        %844 = vmatprep.subr.bf16.mxu0 0
        %845 = vmatpush1.bf16.msra.mxu0 0
        %846 = vmatprep.subr.bf16.mxu0 0
        %847 = vmatpush1.bf16.msra.mxu0 0
        %848 = vmatprep.subr.bf16.mxu0 0
        %849 = vmatpush1.bf16.msra.mxu0 0
        %850 = vmatprep.subr.bf16.mxu0 0
        %851 = vmatpush1.bf16.msra.mxu0 0
        %852 = vmatprep.subr.bf16.mxu0 0
        %853 = vmatpush1.bf16.msra.mxu0 0
        %854 = vmatprep.subr.bf16.mxu0 0
        %855 = vmatpush1.bf16.msra.mxu0 0
        %856 = vmatprep.subr.bf16.mxu0 0
        %857 = vmatpush1.bf16.msra.mxu0 0
        %858 = vmatprep.subr.bf16.mxu0 0
        %859 = vmatpush1.bf16.msra.mxu0 0
        %860 = vmatprep.subr.bf16.mxu0 0
        %861 = vmatpush1.bf16.msra.mxu0 0
        %862 = vmatprep.subr.bf16.mxu0 0
        %863 = vmatpush1.bf16.msra.mxu0 0
        %864 = vmatprep.subr.bf16.mxu0 0
        %865 = vmatpush1.bf16.msra.mxu0 0
        %866 = vmatprep.subr.bf16.mxu0 0
        %867 = vmatpush1.bf16.msra.mxu0 0
        %868 = vmatprep.subr.bf16.mxu0 0
        %869 = vmatpush1.bf16.msra.mxu0 0
        %870 = vmatprep.subr.bf16.mxu0 0
        %871 = vmatpush1.bf16.msra.mxu0 0
        %872 = vmatprep.mubr.bf16.mxu0 0
        %873 = vmatmul.mubr.bf16.gmra.mrb[0].mxu0 %v823
        %v874 = vpop.f32.mrb[0].mxu0
        %v875 = vadd.f32 0.0, %v874
        %v876 = vpop.f32.mrb[0].mxu0
        %v877 = vpop.f32.mrb[0].mxu0
        %v878 = vadd.f32 0.0, %v877
        %v879 = vpop.f32.mrb[0].mxu0
        %880 = vmatprep.mubr.bf16.mxu0 0
        %881 = vmatmul.mubr.bf16.gmra.mrb[0].mxu0 %v826
        %v882 = vpop.f32.mrb[0].mxu0
        %v883 = vadd.f32 0.0, %v882
        %v884 = vpop.f32.mrb[0].mxu0
        %v885 = vpop.f32.mrb[0].mxu0
        %v886 = vadd.f32 0.0, %v885
        %v887 = vpop.f32.mrb[0].mxu0
        %888 = vmatprep.mubr.bf16.mxu0 0
        %889 = vmatmul.mubr.bf16.gmra.mrb[0].mxu0 %v829
        %v890 = vpop.f32.mrb[0].mxu0
        %v891 = vadd.f32 0.0, %v890
        %v892 = vpop.f32.mrb[0].mxu0
        %v893 = vpop.f32.mrb[0].mxu0
        %v894 = vadd.f32 0.0, %v893
        %v895 = vpop.f32.mrb[0].mxu0
        %896 = vmatprep.mubr.bf16.mxu0 0
        %897 = vmatmul.mubr.bf16.gmra.mrb[0].mxu0 %v832
        %v898 = vpop.f32.mrb[0].mxu0
        %v899 = vadd.f32 0.0, %v898
        %v900 = vpop.f32.mrb[0].mxu0
        %v901 = vpop.f32.mrb[0].mxu0
        %v902 = vadd.f32 0.0, %v901
        %v903 = vpop.f32.mrb[0].mxu0
        %904 = vmatprep.mubr.bf16.mxu0 0
        %905 = vmatmul.mubr.bf16.gmra.mrb[0].mxu0 %v835
        %v906 = vpop.f32.mrb[0].mxu0
        %v907 = vadd.f32 0.0, %v906
        %v908 = vpop.f32.mrb[0].mxu0
        %v909 = vpop.f32.mrb[0].mxu0
        %v910 = vadd.f32 0.0, %v909
        %v911 = vpop.f32.mrb[0].mxu0
        %912 = vdwg.mxu0
        %v913 = vadd.f32 %v774, %v875
        %v914 = vadd.f32 %v775, %v878
        %v915 = vadd.f32 %v776, %v883
        %v916 = vadd.f32 %v777, %v886
        %v917 = vadd.f32 %v778, %v891
        %v918 = vadd.f32 %v779, %v894
        %v919 = vadd.f32 %v780, %v899
        %v920 = vadd.f32 %v781, %v902
        %v921 = vadd.f32 %v782, %v907
        %v922 = vadd.f32 %v783, %v910
        %s923 = scalar_lea.vmem %s264, 156
        %v924 = vld [vmem:[%s923] sm:$0xf]
        %v925 = vld [vmem:[%s923 + $0x4] sm:$0xf]
        %v926 = vld [vmem:[%s923 + $0x8] sm:$0xf]
        %v927 = vld [vmem:[%s923 + $0xc] sm:$0xf]
        %v928 = vld [vmem:[%s923 + $0x10] sm:$0xf]
        %v929 = vld [vmem:[%s923 + $0x14] sm:$0xf]
        %v930 = vld [vmem:[%s923 + $0x18] sm:$0xf]
        %v931 = vld [vmem:[%s923 + $0x1c] sm:$0xf]
        %v932 = vld [vmem:[%s923 + $0x20] sm:$0xf]
        %v933 = vld [vmem:[%s923 + $0x24] sm:$0xf]
        %s934 = scalar_lea.vmem %s2, 8
        %v935 = vld [vmem:[%s934] sm:$0x3]
        %v946 = vunpack.c.l.b16 %v924
        %v947 = vunpack.c.l.b16 %v925
        %v948 = vunpack.c.l.b16 %v926
        %v949 = vunpack.c.l.b16 %v927
        %v950 = vunpack.c.l.b16 %v928
        %v951 = vunpack.c.l.b16 %v929
        %v952 = vunpack.c.l.b16 %v930
        %v953 = vunpack.c.l.b16 %v931
        %v954 = vunpack.c.l.b16 %v932
        %v955 = vunpack.c.l.b16 %v933
        %v956 = vpack.c.b16 %v947, %v946
        %v957 = vpack.c.b16 %v949, %v948
        %v958 = vpack.c.b16 %v951, %v950
        %v959 = vpack.c.b16 %v953, %v952
        %v960 = vpack.c.b16 %v955, %v954
        %v962 = vsel %vm388, %v956, 0
        %v965 = vsel %vm388, %v957, 0
        %v968 = vsel %vm388, %v958, 0
        %v971 = vsel %vm388, %v959, 0
        %v974 = vsel %vm388, %v960, 0
        %v977 = vsel %vm404, %v935, 0
        %979 = vmatprep.subr.bf16.mxu0 0
        %980 = vmatpush1.bf16.msra.mxu0 %v977
        %981 = vmatprep.subr.bf16.mxu0 0
        %982 = vmatpush1.bf16.msra.mxu0 0
        %983 = vmatprep.subr.bf16.mxu0 0
        %984 = vmatpush1.bf16.msra.mxu0 0
        %985 = vmatprep.subr.bf16.mxu0 0
        %986 = vmatpush1.bf16.msra.mxu0 0
        %987 = vmatprep.subr.bf16.mxu0 0
        %988 = vmatpush1.bf16.msra.mxu0 0
        %989 = vmatprep.subr.bf16.mxu0 0
        %990 = vmatpush1.bf16.msra.mxu0 0
        %991 = vmatprep.subr.bf16.mxu0 0
        %992 = vmatpush1.bf16.msra.mxu0 0
        %993 = vmatprep.subr.bf16.mxu0 0
        %994 = vmatpush1.bf16.msra.mxu0 0
        %995 = vmatprep.subr.bf16.mxu0 0
        %996 = vmatpush1.bf16.msra.mxu0 0
        %997 = vmatprep.subr.bf16.mxu0 0
        %998 = vmatpush1.bf16.msra.mxu0 0
        %999 = vmatprep.subr.bf16.mxu0 0
        %1000 = vmatpush1.bf16.msra.mxu0 0
        %1001 = vmatprep.subr.bf16.mxu0 0
        %1002 = vmatpush1.bf16.msra.mxu0 0
        %1003 = vmatprep.subr.bf16.mxu0 0
        %1004 = vmatpush1.bf16.msra.mxu0 0
        %1005 = vmatprep.subr.bf16.mxu0 0
        %1006 = vmatpush1.bf16.msra.mxu0 0
        %1007 = vmatprep.subr.bf16.mxu0 0
        %1008 = vmatpush1.bf16.msra.mxu0 0
        %1009 = vmatprep.subr.bf16.mxu0 0
        %1010 = vmatpush1.bf16.msra.mxu0 0
        %1011 = vmatprep.mubr.bf16.mxu0 0
        %1012 = vmatmul.mubr.bf16.gmra.mrb[0].mxu0 %v962
        %v1013 = vpop.f32.mrb[0].mxu0
        %v1014 = vadd.f32 0.0, %v1013
        %v1015 = vpop.f32.mrb[0].mxu0
        %v1016 = vpop.f32.mrb[0].mxu0
        %v1017 = vadd.f32 0.0, %v1016
        %v1018 = vpop.f32.mrb[0].mxu0
        %1019 = vmatprep.mubr.bf16.mxu0 0
        %1020 = vmatmul.mubr.bf16.gmra.mrb[0].mxu0 %v965
        %v1021 = vpop.f32.mrb[0].mxu0
        %v1022 = vadd.f32 0.0, %v1021
        %v1023 = vpop.f32.mrb[0].mxu0
        %v1024 = vpop.f32.mrb[0].mxu0
        %v1025 = vadd.f32 0.0, %v1024
        %v1026 = vpop.f32.mrb[0].mxu0
        %1027 = vmatprep.mubr.bf16.mxu0 0
        %1028 = vmatmul.mubr.bf16.gmra.mrb[0].mxu0 %v968
        %v1029 = vpop.f32.mrb[0].mxu0
        %v1030 = vadd.f32 0.0, %v1029
        %v1031 = vpop.f32.mrb[0].mxu0
        %v1032 = vpop.f32.mrb[0].mxu0
        %v1033 = vadd.f32 0.0, %v1032
        %v1034 = vpop.f32.mrb[0].mxu0
        %1035 = vmatprep.mubr.bf16.mxu0 0
        %1036 = vmatmul.mubr.bf16.gmra.mrb[0].mxu0 %v971
        %v1037 = vpop.f32.mrb[0].mxu0
        %v1038 = vadd.f32 0.0, %v1037
        %v1039 = vpop.f32.mrb[0].mxu0
        %v1040 = vpop.f32.mrb[0].mxu0
        %v1041 = vadd.f32 0.0, %v1040
        %v1042 = vpop.f32.mrb[0].mxu0
        %1043 = vmatprep.mubr.bf16.mxu0 0
        %1044 = vmatmul.mubr.bf16.gmra.mrb[0].mxu0 %v974
        %v1045 = vpop.f32.mrb[0].mxu0
        %v1046 = vadd.f32 0.0, %v1045
        %v1047 = vpop.f32.mrb[0].mxu0
        %v1048 = vpop.f32.mrb[0].mxu0
        %v1049 = vadd.f32 0.0, %v1048
        %v1050 = vpop.f32.mrb[0].mxu0
        %1051 = vdwg.mxu0
        %v1052 = vadd.f32 %v913, %v1014
        %v1053 = vadd.f32 %v914, %v1017
        %v1054 = vadd.f32 %v915, %v1022
        %v1055 = vadd.f32 %v916, %v1025
        %v1056 = vadd.f32 %v917, %v1030
        %v1057 = vadd.f32 %v918, %v1033
        %v1058 = vadd.f32 %v919, %v1038
        %v1059 = vadd.f32 %v920, %v1041
        %v1060 = vadd.f32 %v921, %v1046
        %v1061 = vadd.f32 %v922, %v1049
        %v1062 = vld [vmem:[%s784] sm:$0xf]
        %v1063 = vld [vmem:[%s784 + $0x4] sm:$0xf]
        %v1064 = vld [vmem:[%s784 + $0x8] sm:$0xf]
        %v1065 = vld [vmem:[%s784 + $0xc] sm:$0xf]
        %v1066 = vld [vmem:[%s784 + $0x10] sm:$0xf]
        %v1067 = vld [vmem:[%s784 + $0x14] sm:$0xf]
        %v1068 = vld [vmem:[%s784 + $0x18] sm:$0xf]
        %v1069 = vld [vmem:[%s784 + $0x1c] sm:$0xf]
        %v1070 = vld [vmem:[%s784 + $0x20] sm:$0xf]
        %v1071 = vld [vmem:[%s784 + $0x24] sm:$0xf]
        %v1072 = vld [vmem:[%s784 + $0x28] sm:$0x1]
        %s1073 = scalar_lea.vmem %s2, 10
        %v1074 = vld [vmem:[%s1073] sm:$0x3]
        %v1086 = vunpack.c.l.b16 %v1062
        %v1087 = vunpack.c.l.b16 %v1063
        %v1088 = vunpack.c.l.b16 %v1064
        %v1089 = vunpack.c.l.b16 %v1065
        %v1090 = vunpack.c.l.b16 %v1066
        %v1091 = vunpack.c.l.b16 %v1067
        %v1092 = vunpack.c.l.b16 %v1068
        %v1093 = vunpack.c.l.b16 %v1069
        %v1094 = vunpack.c.l.b16 %v1070
        %v1095 = vunpack.c.l.b16 %v1071
        %v1096 = vunpack.c.l.b16 %v1072
        %v1097 = vpack.c.b16 %v1087, %v1086
        %v1098 = vpack.c.b16 %v1089, %v1088
        %v1099 = vpack.c.b16 %v1091, %v1090
        %v1100 = vpack.c.b16 %v1093, %v1092
        %v1101 = vpack.c.b16 %v1095, %v1094
        %v1102 = vpack.c.b16 %v1096, %v1096
        %v1104 = vshrl.u32 %v1097, 16
        %v1106 = vshll.u32 %v1097, 16
        %v1108 = vrot.slane %v1106, 1
        %v1109 = vor.u32 %v1104, %v1108
        %v1111 = vshll.u32 %v1098, 16
        %v1113 = vrot.slane %v1111, 1
        %v1114 = vsel %vm638, %v1109, %v1113
        %v1115 = vshrl.u32 %v1098, 16
        %v1117 = vor.u32 %v1115, %v1113
        %v1119 = vshll.u32 %v1099, 16
        %v1121 = vrot.slane %v1119, 1
        %v1122 = vsel %vm638, %v1117, %v1121
        %v1123 = vshrl.u32 %v1099, 16
        %v1125 = vor.u32 %v1123, %v1121
        %v1127 = vshll.u32 %v1100, 16
        %v1129 = vrot.slane %v1127, 1
        %v1130 = vsel %vm638, %v1125, %v1129
        %v1131 = vshrl.u32 %v1100, 16
        %v1133 = vor.u32 %v1131, %v1129
        %v1135 = vshll.u32 %v1101, 16
        %v1137 = vrot.slane %v1135, 1
        %v1138 = vsel %vm638, %v1133, %v1137
        %v1139 = vshrl.u32 %v1101, 16
        %v1141 = vor.u32 %v1139, %v1137
        %v1143 = vshll.u32 %v1102, 16
        %v1145 = vrot.slane %v1143, 1
        %v1146 = vsel %vm638, %v1141, %v1145
        %v1148 = vsel %vm388, %v1114, 0
        %v1151 = vsel %vm388, %v1122, 0
        %v1154 = vsel %vm388, %v1130, 0
        %v1157 = vsel %vm388, %v1138, 0
        %v1160 = vsel %vm388, %v1146, 0
        %v1163 = vsel %vm404, %v1074, 0
        %1165 = vmatprep.subr.bf16.mxu0 0
        %1166 = vmatpush1.bf16.msra.mxu0 %v1163
        %1167 = vmatprep.subr.bf16.mxu0 0
        %1168 = vmatpush1.bf16.msra.mxu0 0
        %1169 = vmatprep.subr.bf16.mxu0 0
        %1170 = vmatpush1.bf16.msra.mxu0 0
        %1171 = vmatprep.subr.bf16.mxu0 0
        %1172 = vmatpush1.bf16.msra.mxu0 0
        %1173 = vmatprep.subr.bf16.mxu0 0
        %1174 = vmatpush1.bf16.msra.mxu0 0
        %1175 = vmatprep.subr.bf16.mxu0 0
        %1176 = vmatpush1.bf16.msra.mxu0 0
        %1177 = vmatprep.subr.bf16.mxu0 0
        %1178 = vmatpush1.bf16.msra.mxu0 0
        %1179 = vmatprep.subr.bf16.mxu0 0
        %1180 = vmatpush1.bf16.msra.mxu0 0
        %1181 = vmatprep.subr.bf16.mxu0 0
        %1182 = vmatpush1.bf16.msra.mxu0 0
        %1183 = vmatprep.subr.bf16.mxu0 0
        %1184 = vmatpush1.bf16.msra.mxu0 0
        %1185 = vmatprep.subr.bf16.mxu0 0
        %1186 = vmatpush1.bf16.msra.mxu0 0
        %1187 = vmatprep.subr.bf16.mxu0 0
        %1188 = vmatpush1.bf16.msra.mxu0 0
        %1189 = vmatprep.subr.bf16.mxu0 0
        %1190 = vmatpush1.bf16.msra.mxu0 0
        %1191 = vmatprep.subr.bf16.mxu0 0
        %1192 = vmatpush1.bf16.msra.mxu0 0
        %1193 = vmatprep.subr.bf16.mxu0 0
        %1194 = vmatpush1.bf16.msra.mxu0 0
        %1195 = vmatprep.subr.bf16.mxu0 0
        %1196 = vmatpush1.bf16.msra.mxu0 0
        %1197 = vmatprep.mubr.bf16.mxu0 0
        %1198 = vmatmul.mubr.bf16.gmra.mrb[0].mxu0 %v1148
        %v1199 = vpop.f32.mrb[0].mxu0
        %v1200 = vadd.f32 0.0, %v1199
        %v1201 = vpop.f32.mrb[0].mxu0
        %v1202 = vpop.f32.mrb[0].mxu0
        %v1203 = vadd.f32 0.0, %v1202
        %v1204 = vpop.f32.mrb[0].mxu0
        %1205 = vmatprep.mubr.bf16.mxu0 0
        %1206 = vmatmul.mubr.bf16.gmra.mrb[0].mxu0 %v1151
        %v1207 = vpop.f32.mrb[0].mxu0
        %v1208 = vadd.f32 0.0, %v1207
        %v1209 = vpop.f32.mrb[0].mxu0
        %v1210 = vpop.f32.mrb[0].mxu0
        %v1211 = vadd.f32 0.0, %v1210
        %v1212 = vpop.f32.mrb[0].mxu0
        %1213 = vmatprep.mubr.bf16.mxu0 0
        %1214 = vmatmul.mubr.bf16.gmra.mrb[0].mxu0 %v1154
        %v1215 = vpop.f32.mrb[0].mxu0
        %v1216 = vadd.f32 0.0, %v1215
        %v1217 = vpop.f32.mrb[0].mxu0
        %v1218 = vpop.f32.mrb[0].mxu0
        %v1219 = vadd.f32 0.0, %v1218
        %v1220 = vpop.f32.mrb[0].mxu0
        %1221 = vmatprep.mubr.bf16.mxu0 0
        %1222 = vmatmul.mubr.bf16.gmra.mrb[0].mxu0 %v1157
        %v1223 = vpop.f32.mrb[0].mxu0
        %v1224 = vadd.f32 0.0, %v1223
        %v1225 = vpop.f32.mrb[0].mxu0
        %v1226 = vpop.f32.mrb[0].mxu0
        %v1227 = vadd.f32 0.0, %v1226
        %v1228 = vpop.f32.mrb[0].mxu0
        %1229 = vmatprep.mubr.bf16.mxu0 0
        %1230 = vmatmul.mubr.bf16.gmra.mrb[0].mxu0 %v1160
        %v1231 = vpop.f32.mrb[0].mxu0
        %v1232 = vadd.f32 0.0, %v1231
        %v1233 = vpop.f32.mrb[0].mxu0
        %v1234 = vpop.f32.mrb[0].mxu0
        %v1235 = vadd.f32 0.0, %v1234
        %v1236 = vpop.f32.mrb[0].mxu0
        %1237 = vdwg.mxu0
        %v1238 = vadd.f32 %v1052, %v1200
        %v1239 = vadd.f32 %v1053, %v1203
        %v1240 = vadd.f32 %v1054, %v1208
        %v1241 = vadd.f32 %v1055, %v1211
        %v1242 = vadd.f32 %v1056, %v1216
        %v1243 = vadd.f32 %v1057, %v1219
        %v1244 = vadd.f32 %v1058, %v1224
        %v1245 = vadd.f32 %v1059, %v1227
        %v1246 = vadd.f32 %v1060, %v1232
        %v1247 = vadd.f32 %v1061, %v1235
        %v1248 = vld [vmem:[%s264 + $0x4] sm:$0xe]
        %v1249 = vld [vmem:[%s264 + $0x8] sm:$0xf]
        %v1250 = vld [vmem:[%s264 + $0xc] sm:$0xf]
        %v1251 = vld [vmem:[%s264 + $0x10] sm:$0xf]
        %v1252 = vld [vmem:[%s264 + $0x14] sm:$0xf]
        %v1253 = vld [vmem:[%s264 + $0x18] sm:$0xf]
        %v1254 = vld [vmem:[%s264 + $0x1c] sm:$0xf]
        %v1255 = vld [vmem:[%s264 + $0x20] sm:$0xf]
        %v1256 = vld [vmem:[%s264 + $0x24] sm:$0xf]
        %v1257 = vld [vmem:[%s264 + $0x28] sm:$0xf]
        %v1258 = vld [vmem:[%s264 + $0x2c] sm:$0x1]
        %s1259 = scalar_lea.vmem %s2, 12
        %v1260 = vld [vmem:[%s1259] sm:$0x3]
        %v1272 = vunpack.c.l.b16 %v1248
        %v1273 = vunpack.c.l.b16 %v1249
        %v1274 = vunpack.c.l.b16 %v1250
        %v1275 = vunpack.c.l.b16 %v1251
        %v1276 = vunpack.c.l.b16 %v1252
        %v1277 = vunpack.c.l.b16 %v1253
        %v1278 = vunpack.c.l.b16 %v1254
        %v1279 = vunpack.c.l.b16 %v1255
        %v1280 = vunpack.c.l.b16 %v1256
        %v1281 = vunpack.c.l.b16 %v1257
        %v1282 = vunpack.c.l.b16 %v1258
        %v1283 = vpack.c.b16 %v1273, %v1272
        %v1284 = vpack.c.b16 %v1275, %v1274
        %v1285 = vpack.c.b16 %v1277, %v1276
        %v1286 = vpack.c.b16 %v1279, %v1278
        %v1287 = vpack.c.b16 %v1281, %v1280
        %v1288 = vpack.c.b16 %v1282, %v1282
        %vm1289 = vcmask 1046528
        %v1290 = vrot.slane %v1283, 1
        %v1291 = vrot.slane %v1284, 1
        %v1292 = vsel %vm1289, %v1290, %v1291
        %v1293 = vrot.slane %v1285, 1
        %v1294 = vsel %vm1289, %v1291, %v1293
        %v1295 = vrot.slane %v1286, 1
        %v1296 = vsel %vm1289, %v1293, %v1295
        %v1297 = vrot.slane %v1287, 1
        %v1298 = vsel %vm1289, %v1295, %v1297
        %v1299 = vrot.slane %v1288, 1
        %v1300 = vsel %vm1289, %v1297, %v1299
        %v1302 = vsel %vm388, %v1292, 0
        %v1305 = vsel %vm388, %v1294, 0
        %v1308 = vsel %vm388, %v1296, 0
        %v1311 = vsel %vm388, %v1298, 0
        %v1314 = vsel %vm388, %v1300, 0
        %v1317 = vsel %vm404, %v1260, 0
        %1319 = vmatprep.subr.bf16.mxu0 0
        %1320 = vmatpush1.bf16.msra.mxu0 %v1317
        %1321 = vmatprep.subr.bf16.mxu0 0
        %1322 = vmatpush1.bf16.msra.mxu0 0
        %1323 = vmatprep.subr.bf16.mxu0 0
        %1324 = vmatpush1.bf16.msra.mxu0 0
        %1325 = vmatprep.subr.bf16.mxu0 0
        %1326 = vmatpush1.bf16.msra.mxu0 0
        %1327 = vmatprep.subr.bf16.mxu0 0
        %1328 = vmatpush1.bf16.msra.mxu0 0
        %1329 = vmatprep.subr.bf16.mxu0 0
        %1330 = vmatpush1.bf16.msra.mxu0 0
        %1331 = vmatprep.subr.bf16.mxu0 0
        %1332 = vmatpush1.bf16.msra.mxu0 0
        %1333 = vmatprep.subr.bf16.mxu0 0
        %1334 = vmatpush1.bf16.msra.mxu0 0
        %1335 = vmatprep.subr.bf16.mxu0 0
        %1336 = vmatpush1.bf16.msra.mxu0 0
        %1337 = vmatprep.subr.bf16.mxu0 0
        %1338 = vmatpush1.bf16.msra.mxu0 0
        %1339 = vmatprep.subr.bf16.mxu0 0
        %1340 = vmatpush1.bf16.msra.mxu0 0
        %1341 = vmatprep.subr.bf16.mxu0 0
        %1342 = vmatpush1.bf16.msra.mxu0 0
        %1343 = vmatprep.subr.bf16.mxu0 0
        %1344 = vmatpush1.bf16.msra.mxu0 0
        %1345 = vmatprep.subr.bf16.mxu0 0
        %1346 = vmatpush1.bf16.msra.mxu0 0
        %1347 = vmatprep.subr.bf16.mxu0 0
        %1348 = vmatpush1.bf16.msra.mxu0 0
        %1349 = vmatprep.subr.bf16.mxu0 0
        %1350 = vmatpush1.bf16.msra.mxu0 0
        %1351 = vmatprep.mubr.bf16.mxu0 0
        %1352 = vmatmul.mubr.bf16.gmra.mrb[0].mxu0 %v1302
        %v1353 = vpop.f32.mrb[0].mxu0
        %v1354 = vadd.f32 0.0, %v1353
        %v1355 = vpop.f32.mrb[0].mxu0
        %v1356 = vpop.f32.mrb[0].mxu0
        %v1357 = vadd.f32 0.0, %v1356
        %v1358 = vpop.f32.mrb[0].mxu0
        %1359 = vmatprep.mubr.bf16.mxu0 0
        %1360 = vmatmul.mubr.bf16.gmra.mrb[0].mxu0 %v1305
        %v1361 = vpop.f32.mrb[0].mxu0
        %v1362 = vadd.f32 0.0, %v1361
        %v1363 = vpop.f32.mrb[0].mxu0
        %v1364 = vpop.f32.mrb[0].mxu0
        %v1365 = vadd.f32 0.0, %v1364
        %v1366 = vpop.f32.mrb[0].mxu0
        %1367 = vmatprep.mubr.bf16.mxu0 0
        %1368 = vmatmul.mubr.bf16.gmra.mrb[0].mxu0 %v1308
        %v1369 = vpop.f32.mrb[0].mxu0
        %v1370 = vadd.f32 0.0, %v1369
        %v1371 = vpop.f32.mrb[0].mxu0
        %v1372 = vpop.f32.mrb[0].mxu0
        %v1373 = vadd.f32 0.0, %v1372
        %v1374 = vpop.f32.mrb[0].mxu0
        %1375 = vmatprep.mubr.bf16.mxu0 0
        %1376 = vmatmul.mubr.bf16.gmra.mrb[0].mxu0 %v1311
        %v1377 = vpop.f32.mrb[0].mxu0
        %v1378 = vadd.f32 0.0, %v1377
        %v1379 = vpop.f32.mrb[0].mxu0
        %v1380 = vpop.f32.mrb[0].mxu0
        %v1381 = vadd.f32 0.0, %v1380
        %v1382 = vpop.f32.mrb[0].mxu0
        %1383 = vmatprep.mubr.bf16.mxu0 0
        %1384 = vmatmul.mubr.bf16.gmra.mrb[0].mxu0 %v1314
        %v1385 = vpop.f32.mrb[0].mxu0
        %v1386 = vadd.f32 0.0, %v1385
        %v1387 = vpop.f32.mrb[0].mxu0
        %v1388 = vpop.f32.mrb[0].mxu0
        %v1389 = vadd.f32 0.0, %v1388
        %v1390 = vpop.f32.mrb[0].mxu0
        %1391 = vdwg.mxu0
        %v1392 = vadd.f32 %v1238, %v1354
        %v1393 = vadd.f32 %v1239, %v1357
        %v1394 = vadd.f32 %v1240, %v1362
        %v1395 = vadd.f32 %v1241, %v1365
        %v1396 = vadd.f32 %v1242, %v1370
        %v1397 = vadd.f32 %v1243, %v1373
        %v1398 = vadd.f32 %v1244, %v1378
        %v1399 = vadd.f32 %v1245, %v1381
        %v1400 = vadd.f32 %v1246, %v1386
        %v1401 = vadd.f32 %v1247, %v1389
        %v1402 = vld [vmem:[%s350 + $0x4] sm:$0xe]
        %v1403 = vld [vmem:[%s350 + $0x8] sm:$0xf]
        %v1404 = vld [vmem:[%s350 + $0xc] sm:$0xf]
        %v1405 = vld [vmem:[%s350 + $0x10] sm:$0xf]
        %v1406 = vld [vmem:[%s350 + $0x14] sm:$0xf]
        %v1407 = vld [vmem:[%s350 + $0x18] sm:$0xf]
        %v1408 = vld [vmem:[%s350 + $0x1c] sm:$0xf]
        %v1409 = vld [vmem:[%s350 + $0x20] sm:$0xf]
        %v1410 = vld [vmem:[%s350 + $0x24] sm:$0xf]
        %v1411 = vld [vmem:[%s350 + $0x28] sm:$0xf]
        %v1412 = vld [vmem:[%s350 + $0x2c] sm:$0x1]
        %s1413 = scalar_lea.vmem %s2, 14
        %v1414 = vld [vmem:[%s1413] sm:$0x3]
        %v1426 = vunpack.c.l.b16 %v1402
        %v1427 = vunpack.c.l.b16 %v1403
        %v1428 = vunpack.c.l.b16 %v1404
        %v1429 = vunpack.c.l.b16 %v1405
        %v1430 = vunpack.c.l.b16 %v1406
        %v1431 = vunpack.c.l.b16 %v1407
        %v1432 = vunpack.c.l.b16 %v1408
        %v1433 = vunpack.c.l.b16 %v1409
        %v1434 = vunpack.c.l.b16 %v1410
        %v1435 = vunpack.c.l.b16 %v1411
        %v1436 = vunpack.c.l.b16 %v1412
        %v1437 = vpack.c.b16 %v1427, %v1426
        %v1438 = vpack.c.b16 %v1429, %v1428
        %v1439 = vpack.c.b16 %v1431, %v1430
        %v1440 = vpack.c.b16 %v1433, %v1432
        %v1441 = vpack.c.b16 %v1435, %v1434
        %v1442 = vpack.c.b16 %v1436, %v1436
        %v1443 = vrot.slane %v1437, 1
        %v1444 = vrot.slane %v1438, 1
        %v1445 = vsel %vm1289, %v1443, %v1444
        %v1446 = vrot.slane %v1439, 1
        %v1447 = vsel %vm1289, %v1444, %v1446
        %v1448 = vrot.slane %v1440, 1
        %v1449 = vsel %vm1289, %v1446, %v1448
        %v1450 = vrot.slane %v1441, 1
        %v1451 = vsel %vm1289, %v1448, %v1450
        %v1452 = vrot.slane %v1442, 1
        %v1453 = vsel %vm1289, %v1450, %v1452
        %v1455 = vsel %vm388, %v1445, 0
        %v1458 = vsel %vm388, %v1447, 0
        %v1461 = vsel %vm388, %v1449, 0
        %v1464 = vsel %vm388, %v1451, 0
        %v1467 = vsel %vm388, %v1453, 0
        %v1470 = vsel %vm404, %v1414, 0
        %1472 = vmatprep.subr.bf16.mxu0 0
        %1473 = vmatpush1.bf16.msra.mxu0 %v1470
        %1474 = vmatprep.subr.bf16.mxu0 0
        %1475 = vmatpush1.bf16.msra.mxu0 0
        %1476 = vmatprep.subr.bf16.mxu0 0
        %1477 = vmatpush1.bf16.msra.mxu0 0
        %1478 = vmatprep.subr.bf16.mxu0 0
        %1479 = vmatpush1.bf16.msra.mxu0 0
        %1480 = vmatprep.subr.bf16.mxu0 0
        %1481 = vmatpush1.bf16.msra.mxu0 0
        %1482 = vmatprep.subr.bf16.mxu0 0
        %1483 = vmatpush1.bf16.msra.mxu0 0
        %1484 = vmatprep.subr.bf16.mxu0 0
        %1485 = vmatpush1.bf16.msra.mxu0 0
        %1486 = vmatprep.subr.bf16.mxu0 0
        %1487 = vmatpush1.bf16.msra.mxu0 0
        %1488 = vmatprep.subr.bf16.mxu0 0
        %1489 = vmatpush1.bf16.msra.mxu0 0
        %1490 = vmatprep.subr.bf16.mxu0 0
        %1491 = vmatpush1.bf16.msra.mxu0 0
        %1492 = vmatprep.subr.bf16.mxu0 0
        %1493 = vmatpush1.bf16.msra.mxu0 0
        %1494 = vmatprep.subr.bf16.mxu0 0
        %1495 = vmatpush1.bf16.msra.mxu0 0
        %1496 = vmatprep.subr.bf16.mxu0 0
        %1497 = vmatpush1.bf16.msra.mxu0 0
        %1498 = vmatprep.subr.bf16.mxu0 0
        %1499 = vmatpush1.bf16.msra.mxu0 0
        %1500 = vmatprep.subr.bf16.mxu0 0
        %1501 = vmatpush1.bf16.msra.mxu0 0
        %1502 = vmatprep.subr.bf16.mxu0 0
        %1503 = vmatpush1.bf16.msra.mxu0 0
        %1504 = vmatprep.mubr.bf16.mxu0 0
        %1505 = vmatmul.mubr.bf16.gmra.mrb[0].mxu0 %v1455
        %v1506 = vpop.f32.mrb[0].mxu0
        %v1507 = vadd.f32 0.0, %v1506
        %v1508 = vpop.f32.mrb[0].mxu0
        %v1509 = vpop.f32.mrb[0].mxu0
        %v1510 = vadd.f32 0.0, %v1509
        %v1511 = vpop.f32.mrb[0].mxu0
        %1512 = vmatprep.mubr.bf16.mxu0 0
        %1513 = vmatmul.mubr.bf16.gmra.mrb[0].mxu0 %v1458
        %v1514 = vpop.f32.mrb[0].mxu0
        %v1515 = vadd.f32 0.0, %v1514
        %v1516 = vpop.f32.mrb[0].mxu0
        %v1517 = vpop.f32.mrb[0].mxu0
        %v1518 = vadd.f32 0.0, %v1517
        %v1519 = vpop.f32.mrb[0].mxu0
        %1520 = vmatprep.mubr.bf16.mxu0 0
        %1521 = vmatmul.mubr.bf16.gmra.mrb[0].mxu0 %v1461
        %v1522 = vpop.f32.mrb[0].mxu0
        %v1523 = vadd.f32 0.0, %v1522
        %v1524 = vpop.f32.mrb[0].mxu0
        %v1525 = vpop.f32.mrb[0].mxu0
        %v1526 = vadd.f32 0.0, %v1525
        %v1527 = vpop.f32.mrb[0].mxu0
        %1528 = vmatprep.mubr.bf16.mxu0 0
        %1529 = vmatmul.mubr.bf16.gmra.mrb[0].mxu0 %v1464
        %v1530 = vpop.f32.mrb[0].mxu0
        %v1531 = vadd.f32 0.0, %v1530
        %v1532 = vpop.f32.mrb[0].mxu0
        %v1533 = vpop.f32.mrb[0].mxu0
        %v1534 = vadd.f32 0.0, %v1533
        %v1535 = vpop.f32.mrb[0].mxu0
        %1536 = vmatprep.mubr.bf16.mxu0 0
        %1537 = vmatmul.mubr.bf16.gmra.mrb[0].mxu0 %v1467
        %v1538 = vpop.f32.mrb[0].mxu0
        %v1539 = vadd.f32 0.0, %v1538
        %v1540 = vpop.f32.mrb[0].mxu0
        %v1541 = vpop.f32.mrb[0].mxu0
        %v1542 = vadd.f32 0.0, %v1541
        %v1543 = vpop.f32.mrb[0].mxu0
        %1544 = vdwg.mxu0
        %v1545 = vadd.f32 %v1392, %v1507
        %v1546 = vadd.f32 %v1393, %v1510
        %v1547 = vadd.f32 %v1394, %v1515
        %v1548 = vadd.f32 %v1395, %v1518
        %v1549 = vadd.f32 %v1396, %v1523
        %v1550 = vadd.f32 %v1397, %v1526
        %v1551 = vadd.f32 %v1398, %v1531
        %v1552 = vadd.f32 %v1399, %v1534
        %v1553 = vadd.f32 %v1400, %v1539
        %v1554 = vadd.f32 %v1401, %v1542
        %v1555 = vld [vmem:[%s264 + $0x2c] sm:$0x3]
        %s1556 = scalar_lea.vmem %s2, 16
        %v1557 = vld [vmem:[%s1556] sm:$0x3]
        %v1559 = vunpack.c.l.b16 %v1555
        %v1560 = vpack.c.b16 %v1559, %v1559
        %vm1561 = vsmask.f32 6400
        %v1563 = vshrl.u32 %v1283, 16
        %v1565 = vrot.slane %v1563, 1
        %v1566 = vshll.u32 %v1283, 16
        %v1568 = vrot.slane %v1566, 2
        %v1569 = vor.u32 %v1565, %v1568
        %v1571 = vshrl.u32 %v1284, 16
        %v1573 = vrot.slane %v1571, 1
        %v1574 = vshll.u32 %v1284, 16
        %v1576 = vrot.slane %v1574, 2
        %v1577 = vor.u32 %v1573, %v1576
        %v1578 = vsel %vm1561, %v1569, %v1577
        %v1580 = vshrl.u32 %v1285, 16
        %v1582 = vrot.slane %v1580, 1
        %v1583 = vshll.u32 %v1285, 16
        %v1585 = vrot.slane %v1583, 2
        %v1586 = vor.u32 %v1582, %v1585
        %v1587 = vsel %vm1561, %v1577, %v1586
        %v1589 = vshrl.u32 %v1286, 16
        %v1591 = vrot.slane %v1589, 1
        %v1592 = vshll.u32 %v1286, 16
        %v1594 = vrot.slane %v1592, 2
        %v1595 = vor.u32 %v1591, %v1594
        %v1596 = vsel %vm1561, %v1586, %v1595
        %v1598 = vshrl.u32 %v1287, 16
        %v1600 = vrot.slane %v1598, 1
        %v1601 = vshll.u32 %v1287, 16
        %v1603 = vrot.slane %v1601, 2
        %v1604 = vor.u32 %v1600, %v1603
        %v1605 = vsel %vm1561, %v1595, %v1604
        %v1607 = vshrl.u32 %v1560, 16
        %v1609 = vrot.slane %v1607, 1
        %v1610 = vshll.u32 %v1560, 16
        %v1612 = vrot.slane %v1610, 2
        %v1613 = vor.u32 %v1609, %v1612
        %v1614 = vsel %vm1561, %v1604, %v1613
        %v1616 = vsel %vm388, %v1578, 0
        %v1619 = vsel %vm388, %v1587, 0
        %v1622 = vsel %vm388, %v1596, 0
        %v1625 = vsel %vm388, %v1605, 0
        %v1628 = vsel %vm388, %v1614, 0
        %v1631 = vsel %vm404, %v1557, 0
        %1633 = vmatprep.subr.bf16.mxu0 0
        %1634 = vmatpush1.bf16.msra.mxu0 %v1631
        %1635 = vmatprep.subr.bf16.mxu0 0
        %1636 = vmatpush1.bf16.msra.mxu0 0
        %1637 = vmatprep.subr.bf16.mxu0 0
        %1638 = vmatpush1.bf16.msra.mxu0 0
        %1639 = vmatprep.subr.bf16.mxu0 0
        %1640 = vmatpush1.bf16.msra.mxu0 0
        %1641 = vmatprep.subr.bf16.mxu0 0
        %1642 = vmatpush1.bf16.msra.mxu0 0
        %1643 = vmatprep.subr.bf16.mxu0 0
        %1644 = vmatpush1.bf16.msra.mxu0 0
        %1645 = vmatprep.subr.bf16.mxu0 0
        %1646 = vmatpush1.bf16.msra.mxu0 0
        %1647 = vmatprep.subr.bf16.mxu0 0
        %1648 = vmatpush1.bf16.msra.mxu0 0
        %1649 = vmatprep.subr.bf16.mxu0 0
        %1650 = vmatpush1.bf16.msra.mxu0 0
        %1651 = vmatprep.subr.bf16.mxu0 0
        %1652 = vmatpush1.bf16.msra.mxu0 0
        %1653 = vmatprep.subr.bf16.mxu0 0
        %1654 = vmatpush1.bf16.msra.mxu0 0
        %1655 = vmatprep.subr.bf16.mxu0 0
        %1656 = vmatpush1.bf16.msra.mxu0 0
        %1657 = vmatprep.subr.bf16.mxu0 0
        %1658 = vmatpush1.bf16.msra.mxu0 0
        %1659 = vmatprep.subr.bf16.mxu0 0
        %1660 = vmatpush1.bf16.msra.mxu0 0
        %1661 = vmatprep.subr.bf16.mxu0 0
        %1662 = vmatpush1.bf16.msra.mxu0 0
        %1663 = vmatprep.subr.bf16.mxu0 0
        %1664 = vmatpush1.bf16.msra.mxu0 0
        %1665 = vmatprep.mubr.bf16.mxu0 0
        %1666 = vmatmul.mubr.bf16.gmra.mrb[0].mxu0 %v1616
        %v1667 = vpop.f32.mrb[0].mxu0
        %v1668 = vadd.f32 0.0, %v1667
        %v1669 = vpop.f32.mrb[0].mxu0
        %v1670 = vpop.f32.mrb[0].mxu0
        %v1671 = vadd.f32 0.0, %v1670
        %v1672 = vpop.f32.mrb[0].mxu0
        %1673 = vmatprep.mubr.bf16.mxu0 0
        %1674 = vmatmul.mubr.bf16.gmra.mrb[0].mxu0 %v1619
        %v1675 = vpop.f32.mrb[0].mxu0
        %v1676 = vadd.f32 0.0, %v1675
        %v1677 = vpop.f32.mrb[0].mxu0
        %v1678 = vpop.f32.mrb[0].mxu0
        %v1679 = vadd.f32 0.0, %v1678
        %v1680 = vpop.f32.mrb[0].mxu0
        %1681 = vmatprep.mubr.bf16.mxu0 0
        %1682 = vmatmul.mubr.bf16.gmra.mrb[0].mxu0 %v1622
        %v1683 = vpop.f32.mrb[0].mxu0
        %v1684 = vadd.f32 0.0, %v1683
        %v1685 = vpop.f32.mrb[0].mxu0
        %v1686 = vpop.f32.mrb[0].mxu0
        %v1687 = vadd.f32 0.0, %v1686
        %v1688 = vpop.f32.mrb[0].mxu0
        %1689 = vmatprep.mubr.bf16.mxu0 0
        %1690 = vmatmul.mubr.bf16.gmra.mrb[0].mxu0 %v1625
        %v1691 = vpop.f32.mrb[0].mxu0
        %v1692 = vadd.f32 0.0, %v1691
        %v1693 = vpop.f32.mrb[0].mxu0
        %v1694 = vpop.f32.mrb[0].mxu0
        %v1695 = vadd.f32 0.0, %v1694
        %v1696 = vpop.f32.mrb[0].mxu0
        %1697 = vmatprep.mubr.bf16.mxu0 0
        %1698 = vmatmul.mubr.bf16.gmra.mrb[0].mxu0 %v1628
        %v1699 = vpop.f32.mrb[0].mxu0
        %v1700 = vadd.f32 0.0, %v1699
        %v1701 = vpop.f32.mrb[0].mxu0
        %v1702 = vpop.f32.mrb[0].mxu0
        %v1703 = vadd.f32 0.0, %v1702
        %v1704 = vpop.f32.mrb[0].mxu0
        %1705 = vdwg.mxu0
        %v1706 = vadd.f32 %v1545, %v1668
        %v1707 = vadd.f32 %v1546, %v1671
        %v1708 = vadd.f32 %v1547, %v1676
        %v1709 = vadd.f32 %v1548, %v1679
        %v1710 = vadd.f32 %v1549, %v1684
        %v1711 = vadd.f32 %v1550, %v1687
        %v1712 = vadd.f32 %v1551, %v1692
        %v1713 = vadd.f32 %v1552, %v1695
        %v1714 = vadd.f32 %v1553, %v1700
        %v1715 = vadd.f32 %v1554, %v1703
        %v1716 = vmul.f32 %v1706, %v280
        %v1717 = vmul.f32 %v1707, %v285
        %v1718 = vmul.f32 %v1708, %v290
        %v1719 = vmul.f32 %v1709, %v295
        %v1720 = vmul.f32 %v1710, %v300
        %v1721 = vmul.f32 %v1711, %v305
        %v1722 = vmul.f32 %v1712, %v310
        %v1723 = vmul.f32 %v1713, %v315
        %v1724 = vmul.f32 %v1714, %v320
        %v1725 = vmul.f32 %v1715, %v325
        %v1726 = vadd.f32 %v1716, %v1717
        %v1727 = vadd.f32 %v1726, %v1718
        %v1728 = vadd.f32 %v1727, %v1719
        %v1729 = vadd.f32 %v1728, %v1720
        %v1730 = vadd.f32 %v1729, %v1721
        %v1731 = vadd.f32 %v1730, %v1722
        %v1732 = vadd.f32 %v1731, %v1723
        %v1733 = vadd.f32 %v1732, %v1724
        %v1734 = vadd.f32 %v1733, %v1725
        %v1735 = vrot.slane %v1734, 4
        %v1736 = vadd.f32 %v1734, %v1735
        %v1737 = vrot.slane %v1736, 2
        %v1738 = vadd.f32 %v1736, %v1737
        %v1739 = vrot.slane %v1738, 1
        %v1740 = vadd.f32 %v1738, %v1739
        %v1741 = vmul.f32 %v1716, %v1716
        %v1742 = vmul.f32 %v1717, %v1717
        %v1743 = vmul.f32 %v1718, %v1718
        %v1744 = vmul.f32 %v1719, %v1719
        %v1745 = vmul.f32 %v1720, %v1720
        %v1746 = vmul.f32 %v1721, %v1721
        %v1747 = vmul.f32 %v1722, %v1722
        %v1748 = vmul.f32 %v1723, %v1723
        %v1749 = vmul.f32 %v1724, %v1724
        %v1750 = vmul.f32 %v1725, %v1725
        %v1751 = vadd.f32 %v1741, %v1742
        %v1752 = vadd.f32 %v1751, %v1743
        %v1753 = vadd.f32 %v1752, %v1744
        %v1754 = vadd.f32 %v1753, %v1745
        %v1755 = vadd.f32 %v1754, %v1746
        %v1756 = vadd.f32 %v1755, %v1747
        %v1757 = vadd.f32 %v1756, %v1748
        %v1758 = vadd.f32 %v1757, %v1749
        %v1759 = vadd.f32 %v1758, %v1750
        %v1760 = vrot.slane %v1759, 4
        %v1761 = vadd.f32 %v1759, %v1760
        %v1762 = vrot.slane %v1761, 2
        %v1763 = vadd.f32 %v1761, %v1762
        %v1764 = vrot.slane %v1763, 1
        %v1765 = vadd.f32 %v1763, %v1764
        %v1766 = vmul.f32 %v1740, %v333
        %vm1767 = vcmask 1040384
        %v1768 = vsel %vm1767, %v1766, 0.0
        %1769 = vadd.xlane.f32.xlu0 %v1768
        %v1770 = vpop.xlane.xlu0 %1769
        %v1771 = vrot.slane %v1770, 4
        %v1772 = vadd.f32 %v1770, %v1771
        %v1773 = vrot.slane %v1772, 2
        %v1774 = vadd.f32 %v1772, %v1773
        %v1775 = vrot.slane %v1774, 1
        %v1776 = vadd.f32 %v1774, %v1775
        %s1777 = vtos %v1776
        %s1778 = smul.f32 %s1777, 0.00390625
        %v1779 = vmul.f32 %v1765, %v333
        %v1780 = vsel %vm1767, %v1779, 0.0
        %1781 = vadd.xlane.f32.xlu0 %v1780
        %v1782 = vpop.xlane.xlu0 %1781
        %v1783 = vrot.slane %v1782, 4
        %v1784 = vadd.f32 %v1782, %v1783
        %v1785 = vrot.slane %v1784, 2
        %v1786 = vadd.f32 %v1784, %v1785
        %v1787 = vrot.slane %v1786, 1
        %v1788 = vadd.f32 %v1786, %v1787
        %s1789 = vtos %v1788
        %s1790 = smul.f32 %s1789, 0.00390625
        %v1791 = vstv %s1778
        %v1792 = vmul.f32 %v1791, %v333
        %v1793 = vadd.f32 %v1792, 0.0
        %s1794 = smul.f32 %s1778, %s1778
        %s1795 = ssub.f32 %s1790, %s1794
        %v1796 = vstv %s1795
        %v1797 = vmul.f32 %v1796, %v333
        %v1798 = vadd.f32 %v1797, 0.0
        %v1799 = vmul.f32 %v1740, %v338
        %v1800 = vsel %vm1767, %v1799, 0.0
        %1801 = vadd.xlane.f32.xlu0 %v1800
        %v1802 = vpop.xlane.xlu0 %1801
        %v1803 = vrot.slane %v1802, 4
        %v1804 = vadd.f32 %v1802, %v1803
        %v1805 = vrot.slane %v1804, 2
        %v1806 = vadd.f32 %v1804, %v1805
        %v1807 = vrot.slane %v1806, 1
        %v1808 = vadd.f32 %v1806, %v1807
        %s1809 = vtos %v1808
        %s1810 = smul.f32 %s1809, 0.00390625
        %v1811 = vmul.f32 %v1765, %v338
        %v1812 = vsel %vm1767, %v1811, 0.0
        %1813 = vadd.xlane.f32.xlu0 %v1812
        %v1814 = vpop.xlane.xlu0 %1813
        %v1815 = vrot.slane %v1814, 4
        %v1816 = vadd.f32 %v1814, %v1815
        %v1817 = vrot.slane %v1816, 2
        %v1818 = vadd.f32 %v1816, %v1817
        %v1819 = vrot.slane %v1818, 1
        %v1820 = vadd.f32 %v1818, %v1819
        %s1821 = vtos %v1820
        %s1822 = smul.f32 %s1821, 0.00390625
        %v1823 = vstv %s1810
        %v1824 = vmul.f32 %v1823, %v338
        %v1825 = vadd.f32 %v1793, %v1824
        %s1826 = smul.f32 %s1810, %s1810
        %s1827 = ssub.f32 %s1822, %s1826
        %v1828 = vstv %s1827
        %v1829 = vmul.f32 %v1828, %v338
        %v1830 = vadd.f32 %v1798, %v1829
        %v1831 = vsub.f32 %v1716, %v1825
        %v1832 = vsub.f32 %v1717, %v1825
        %v1833 = vsub.f32 %v1718, %v1825
        %v1834 = vsub.f32 %v1719, %v1825
        %v1835 = vsub.f32 %v1720, %v1825
        %v1836 = vsub.f32 %v1721, %v1825
        %v1837 = vsub.f32 %v1722, %v1825
        %v1838 = vsub.f32 %v1723, %v1825
        %v1839 = vsub.f32 %v1724, %v1825
        %v1840 = vsub.f32 %v1725, %v1825
        %v1841 = vadd.f32 %v1830, 1e-05
        %v1842 = vrsqrt.pop %v1841
        %v1843 = vmul.f32 %v1831, %v1842
        %v1844 = vmul.f32 %v1832, %v1842
        %v1845 = vmul.f32 %v1833, %v1842
        %v1846 = vmul.f32 %v1834, %v1842
        %v1847 = vmul.f32 %v1835, %v1842
        %v1848 = vmul.f32 %v1836, %v1842
        %v1849 = vmul.f32 %v1837, %v1842
        %v1850 = vmul.f32 %v1838, %v1842
        %v1851 = vmul.f32 %v1839, %v1842
        %v1852 = vmul.f32 %v1840, %v1842
        %v1853 = vlaneseq
        %v1854 = vshrl.u32 %v1853, 7
        %v1855 = vsub.s32 0, %v1854
        %v1856 = vrot.slane %v266, %v1855
        %v1857 = vmul.f32 %v1843, %v1856
        %v1858 = vmul.f32 %v1844, %v1856
        %v1859 = vmul.f32 %v1845, %v1856
        %v1860 = vmul.f32 %v1846, %v1856
        %v1861 = vmul.f32 %v1847, %v1856
        %v1862 = vmul.f32 %v1848, %v1856
        %v1863 = vmul.f32 %v1849, %v1856
        %v1864 = vmul.f32 %v1850, %v1856
        %v1865 = vmul.f32 %v1851, %v1856
        %v1866 = vmul.f32 %v1852, %v1856
        %v1867 = vlaneseq
        %v1868 = vshrl.u32 %v1867, 7
        %v1869 = vsub.s32 1, %v1868
        %v1870 = vrot.slane %v266, %v1869
        %v1871 = vadd.f32 %v1857, %v1870
        %v1872 = vadd.f32 %v1858, %v1870
        %v1873 = vadd.f32 %v1859, %v1870
        %v1874 = vadd.f32 %v1860, %v1870
        %v1875 = vadd.f32 %v1861, %v1870
        %v1876 = vadd.f32 %v1862, %v1870
        %v1877 = vadd.f32 %v1863, %v1870
        %v1878 = vadd.f32 %v1864, %v1870
        %v1879 = vadd.f32 %v1865, %v1870
        %v1880 = vadd.f32 %v1866, %v1870
        %v1881 = vmax.f32 %v1871, 0.0
        %v1882 = vmax.f32 %v1872, 0.0
        %v1883 = vmax.f32 %v1873, 0.0
        %v1884 = vmax.f32 %v1874, 0.0
        %v1885 = vmax.f32 %v1875, 0.0
        %v1886 = vmax.f32 %v1876, 0.0
        %v1887 = vmax.f32 %v1877, 0.0
        %v1888 = vmax.f32 %v1878, 0.0
        %v1889 = vmax.f32 %v1879, 0.0
        %v1890 = vmax.f32 %v1880, 0.0
        %v1891 = vmul.f32 %v1881, %v280
        %v1892 = vmul.f32 %v1882, %v285
        %v1893 = vmul.f32 %v1883, %v290
        %v1894 = vmul.f32 %v1884, %v295
        %v1895 = vmul.f32 %v1885, %v300
        %v1896 = vmul.f32 %v1886, %v305
        %v1897 = vmul.f32 %v1887, %v310
        %v1898 = vmul.f32 %v1888, %v315
        %v1899 = vmul.f32 %v1889, %v320
        %v1900 = vmul.f32 %v1890, %v325
        %1901 = vst [vmem:[#allocation2] sm:$0xf] 0
        %vm1902 = vcmask 1041408
        %vm1903 = vsmask.f32 1280
        %vm1904 = vmand %vm1902, %vm1903
        %v1905 = vld [vmem:[#allocation2 + $0x4] sm:$0x3]
        %v1906 = vsel %vm1904, 0, %v1905
        %1907 = vst [vmem:[#allocation2 + $0x4] sm:$0x3] %v1906
        %vm1908 = vcmask 1043457
        %vm1909 = vsmask.f32 7942
        %vm1910 = vmand %vm1908, %vm1909
        %v1911 = vld [vmem:[#allocation2 + $0x2c] sm:$0xe]
        %v1912 = vsel %vm1910, 0, %v1911
        %1913 = vst [vmem:[#allocation2 + $0x2c] sm:$0xe] %v1912
        %1914 = vst [vmem:[#allocation2 + $0x30] sm:$0xf] 0
        %1915 = vst [vmem:[#allocation2 + $0x34] sm:$0x3] 0
        %v1916 = vpack.c.bf16 %v1892, %v1891
        %v1917 = vpack.c.bf16 %v1894, %v1893
        %v1918 = vpack.c.bf16 %v1896, %v1895
        %v1919 = vpack.c.bf16 %v1898, %v1897
        %v1920 = vpack.c.bf16 %v1900, %v1899
        %v1926 = vunpack.c.l.b16 %v1916
        %v1927 = vunpack.c.h.b16 %v1916
        %v1928 = vunpack.c.l.b16 %v1917
        %v1929 = vunpack.c.h.b16 %v1917
        %v1930 = vunpack.c.l.b16 %v1918
        %v1931 = vunpack.c.h.b16 %v1918
        %v1932 = vunpack.c.l.b16 %v1919
        %v1933 = vunpack.c.h.b16 %v1919
        %v1934 = vunpack.c.l.b16 %v1920
        %v1935 = vunpack.c.h.b16 %v1920
        %v1936 = vpack.c.b16 %v1926, %v1926
        %v1937 = vpack.c.b16 %v1927, %v1927
        %v1938 = vpack.c.b16 %v1928, %v1928
        %v1939 = vpack.c.b16 %v1929, %v1929
        %v1940 = vpack.c.b16 %v1930, %v1930
        %v1941 = vpack.c.b16 %v1931, %v1931
        %v1942 = vpack.c.b16 %v1932, %v1932
        %v1943 = vpack.c.b16 %v1933, %v1933
        %v1944 = vpack.c.b16 %v1934, %v1934
        %v1945 = vpack.c.b16 %v1935, %v1935
        %vm1946 = vsmask.f32 5392
        %vm1947 = vmor %vm1903, %vm1946
        %v1949 = vshrl.u32 %v1936, 16
        %v1951 = vrot.slane %v1949, 6
        %v1952 = vshll.u32 %v1936, 16
        %v1954 = vrot.slane %v1952, 7
        %v1955 = vor.u32 %v1951, %v1954
        %v1956 = vrot.slane %v1955, 4
        %v1958 = vshrl.u32 %v1937, 16
        %v1960 = vrot.slane %v1958, 6
        %v1961 = vshll.u32 %v1937, 16
        %v1963 = vrot.slane %v1961, 7
        %v1964 = vor.u32 %v1960, %v1963
        %v1965 = vsel %vm1947, %v1956, %v1964
        %v1966 = vrot.slane %v1964, 4
        %v1968 = vshrl.u32 %v1938, 16
        %v1970 = vrot.slane %v1968, 6
        %v1971 = vshll.u32 %v1938, 16
        %v1973 = vrot.slane %v1971, 7
        %v1974 = vor.u32 %v1970, %v1973
        %v1975 = vsel %vm1947, %v1966, %v1974
        %v1976 = vrot.slane %v1974, 4
        %v1978 = vshrl.u32 %v1939, 16
        %v1980 = vrot.slane %v1978, 6
        %v1981 = vshll.u32 %v1939, 16
        %v1983 = vrot.slane %v1981, 7
        %v1984 = vor.u32 %v1980, %v1983
        %v1985 = vsel %vm1947, %v1976, %v1984
        %v1986 = vrot.slane %v1984, 4
        %v1988 = vshrl.u32 %v1940, 16
        %v1990 = vrot.slane %v1988, 6
        %v1991 = vshll.u32 %v1940, 16
        %v1993 = vrot.slane %v1991, 7
        %v1994 = vor.u32 %v1990, %v1993
        %v1995 = vsel %vm1947, %v1986, %v1994
        %v1996 = vrot.slane %v1994, 4
        %v1998 = vshrl.u32 %v1941, 16
        %v2000 = vrot.slane %v1998, 6
        %v2001 = vshll.u32 %v1941, 16
        %v2003 = vrot.slane %v2001, 7
        %v2004 = vor.u32 %v2000, %v2003
        %v2005 = vsel %vm1947, %v1996, %v2004
        %v2006 = vrot.slane %v2004, 4
        %v2008 = vshrl.u32 %v1942, 16
        %v2010 = vrot.slane %v2008, 6
        %v2011 = vshll.u32 %v1942, 16
        %v2013 = vrot.slane %v2011, 7
        %v2014 = vor.u32 %v2010, %v2013
        %v2015 = vsel %vm1947, %v2006, %v2014
        %v2016 = vrot.slane %v2014, 4
        %v2018 = vshrl.u32 %v1943, 16
        %v2020 = vrot.slane %v2018, 6
        %v2021 = vshll.u32 %v1943, 16
        %v2023 = vrot.slane %v2021, 7
        %v2024 = vor.u32 %v2020, %v2023
        %v2025 = vsel %vm1947, %v2016, %v2024
        %v2026 = vrot.slane %v2024, 4
        %v2028 = vshrl.u32 %v1944, 16
        %v2030 = vrot.slane %v2028, 6
        %v2031 = vshll.u32 %v1944, 16
        %v2033 = vrot.slane %v2031, 7
        %v2034 = vor.u32 %v2030, %v2033
        %v2035 = vsel %vm1947, %v2026, %v2034
        %v2036 = vrot.slane %v2034, 4
        %v2038 = vshrl.u32 %v1945, 16
        %v2040 = vrot.slane %v2038, 6
        %v2041 = vshll.u32 %v1945, 16
        %v2043 = vrot.slane %v2041, 7
        %v2044 = vor.u32 %v2040, %v2043
        %v2045 = vsel %vm1947, %v2036, %v2044
        %v2046 = vrot.slane %v2044, 4
        %v2058 = vld [vmem:[#allocation2 + $0x4] sm:$0xe]
        %v2059 = vsel %vm1910, %v1955, %v2058
        %2060 = vst [vmem:[#allocation2 + $0x4] sm:$0xe] %v2059
        %2061 = vst [vmem:[#allocation2 + $0x8] sm:$0xf] %v1965
        %2062 = vst [vmem:[#allocation2 + $0xc] sm:$0xf] %v1975
        %2063 = vst [vmem:[#allocation2 + $0x10] sm:$0xf] %v1985
        %2064 = vst [vmem:[#allocation2 + $0x14] sm:$0xf] %v1995
        %2065 = vst [vmem:[#allocation2 + $0x18] sm:$0xf] %v2005
        %2066 = vst [vmem:[#allocation2 + $0x1c] sm:$0xf] %v2015
        %2067 = vst [vmem:[#allocation2 + $0x20] sm:$0xf] %v2025
        %2068 = vst [vmem:[#allocation2 + $0x24] sm:$0xf] %v2035
        %2069 = vst [vmem:[#allocation2 + $0x28] sm:$0xf] %v2045
        %v2070 = vld [vmem:[#allocation2 + $0x2c] sm:$0x3]
        %v2071 = vsel %vm1904, %v2046, %v2070
        %2072 = vst [vmem:[#allocation2 + $0x2c] sm:$0x3] %v2071
        %v2073 = vld [vmem:[#allocation2] sm:$0xf]
        %v2074 = vld [vmem:[#allocation2 + $0x4] sm:$0xf]
        %v2075 = vld [vmem:[#allocation2 + $0x8] sm:$0xf]
        %v2076 = vld [vmem:[#allocation2 + $0xc] sm:$0xf]
        %v2077 = vld [vmem:[#allocation2 + $0x10] sm:$0xf]
        %v2078 = vld [vmem:[#allocation2 + $0x14] sm:$0xf]
        %v2079 = vld [vmem:[#allocation2 + $0x18] sm:$0xf]
        %v2080 = vld [vmem:[#allocation2 + $0x1c] sm:$0xf]
        %v2081 = vld [vmem:[#allocation2 + $0x20] sm:$0xf]
        %v2082 = vld [vmem:[#allocation2 + $0x24] sm:$0xf]
        %v2083 = vld [vmem:[#allocation3] sm:$0xf]
        %v2084 = vld [vmem:[#allocation3 + $0x4] sm:$0xf]
        %v2085 = vld [vmem:[#allocation3 + $0x8] sm:$0xf]
        %v2086 = vld [vmem:[#allocation3 + $0xc] sm:$0xf]
        %v2087 = vld [vmem:[#allocation3 + $0x10] sm:$0xf]
        %v2088 = vld [vmem:[#allocation3 + $0x14] sm:$0xf]
        %v2089 = vld [vmem:[#allocation3 + $0x18] sm:$0xf]
        %v2090 = vld [vmem:[#allocation3 + $0x1c] sm:$0xf]
        %v2091 = vld [vmem:[#allocation3 + $0x20] sm:$0xf]
        %v2092 = vld [vmem:[#allocation3 + $0x24] sm:$0xf]
        %v2093 = vld [vmem:[#allocation3 + $0x28] sm:$0xf]
        %v2094 = vld [vmem:[#allocation3 + $0x2c] sm:$0xf]
        %v2095 = vld [vmem:[#allocation3 + $0x30] sm:$0xf]
        %v2096 = vld [vmem:[#allocation3 + $0x34] sm:$0xf]
        %v2097 = vld [vmem:[#allocation3 + $0x38] sm:$0xf]
        %v2098 = vld [vmem:[#allocation3 + $0x3c] sm:$0xf]
        %v2099 = vld [vmem:[#allocation2 + $0x28] sm:$0x1]
        %s2100 = scalar_lea.vmem [#allocation3], 64
        %v2101 = vld [vmem:[%s2100] sm:$0xf]
        %v2102 = vld [vmem:[%s2100 + $0x4] sm:$0xf]
        %v2103 = vld [vmem:[%s2100 + $0x8] sm:$0xf]
        %v2104 = vld [vmem:[%s2100 + $0xc] sm:$0xf]
        %v2105 = vld [vmem:[%s2100 + $0x10] sm:$0xf]
        %v2106 = vld [vmem:[%s2100 + $0x14] sm:$0xf]
        %v2107 = vld [vmem:[%s2100 + $0x18] sm:$0xf]
        %v2108 = vld [vmem:[%s2100 + $0x1c] sm:$0xf]
        %v2109 = vld [vmem:[%s2100 + $0x20] sm:$0xf]
        %v2110 = vld [vmem:[%s2100 + $0x24] sm:$0xf]
        %v2111 = vld [vmem:[%s2100 + $0x28] sm:$0xf]
        %v2112 = vld [vmem:[%s2100 + $0x2c] sm:$0xf]
        %v2113 = vld [vmem:[%s2100 + $0x30] sm:$0xf]
        %v2114 = vld [vmem:[%s2100 + $0x34] sm:$0xf]
        %v2115 = vld [vmem:[%s2100 + $0x38] sm:$0xf]
        %v2116 = vld [vmem:[%s2100 + $0x3c] sm:$0xf]
        %v2128 = vunpack.c.l.b16 %v2073
        %v2129 = vunpack.c.l.b16 %v2074
        %v2130 = vunpack.c.l.b16 %v2075
        %v2131 = vunpack.c.l.b16 %v2076
        %v2132 = vunpack.c.l.b16 %v2077
        %v2133 = vunpack.c.l.b16 %v2078
        %v2134 = vunpack.c.l.b16 %v2079
        %v2135 = vunpack.c.l.b16 %v2080
        %v2136 = vunpack.c.l.b16 %v2081
        %v2137 = vunpack.c.l.b16 %v2082
        %v2138 = vunpack.c.l.b16 %v2099
        %v2139 = vpack.c.b16 %v2129, %v2128
        %v2140 = vpack.c.b16 %v2131, %v2130
        %v2141 = vpack.c.b16 %v2133, %v2132
        %v2142 = vpack.c.b16 %v2135, %v2134
        %v2143 = vpack.c.b16 %v2137, %v2136
        %v2144 = vpack.c.b16 %v2138, %v2138
        %v2146 = vshrl.u32 %v2139, 16
        %v2148 = vshll.u32 %v2139, 16
        %v2150 = vrot.slane %v2148, 1
        %v2151 = vor.u32 %v2146, %v2150
        %v2153 = vshll.u32 %v2140, 16
        %v2155 = vrot.slane %v2153, 1
        %v2156 = vsel %vm638, %v2151, %v2155
        %v2157 = vshrl.u32 %v2140, 16
        %v2159 = vor.u32 %v2157, %v2155
        %v2161 = vshll.u32 %v2141, 16
        %v2163 = vrot.slane %v2161, 1
        %v2164 = vsel %vm638, %v2159, %v2163
        %v2165 = vshrl.u32 %v2141, 16
        %v2167 = vor.u32 %v2165, %v2163
        %v2169 = vshll.u32 %v2142, 16
        %v2171 = vrot.slane %v2169, 1
        %v2172 = vsel %vm638, %v2167, %v2171
        %v2173 = vshrl.u32 %v2142, 16
        %v2175 = vor.u32 %v2173, %v2171
        %v2177 = vshll.u32 %v2143, 16
        %v2179 = vrot.slane %v2177, 1
        %v2180 = vsel %vm638, %v2175, %v2179
        %v2181 = vshrl.u32 %v2143, 16
        %v2183 = vor.u32 %v2181, %v2179
        %v2185 = vshll.u32 %v2144, 16
        %v2187 = vrot.slane %v2185, 1
        %v2188 = vsel %vm638, %v2183, %v2187
        %v2210 = vunpack.c.l.b16 %v2101
        %v2211 = vunpack.c.l.b16 %v2102
        %v2212 = vunpack.c.l.b16 %v2103
        %v2213 = vunpack.c.l.b16 %v2104
        %v2214 = vunpack.c.l.b16 %v2105
        %v2215 = vunpack.c.l.b16 %v2106
        %v2216 = vunpack.c.l.b16 %v2107
        %v2217 = vunpack.c.l.b16 %v2108
        %v2218 = vunpack.c.l.b16 %v2109
        %v2219 = vunpack.c.l.b16 %v2110
        %v2220 = vunpack.c.l.b16 %v2111
        %v2221 = vunpack.c.l.b16 %v2112
        %v2222 = vunpack.c.l.b16 %v2113
        %v2223 = vunpack.c.l.b16 %v2114
        %v2224 = vunpack.c.l.b16 %v2115
        %v2225 = vunpack.c.l.b16 %v2116
        %v2226 = vpack.c.b16 %v2211, %v2210
        %v2227 = vpack.c.b16 %v2213, %v2212
        %v2228 = vpack.c.b16 %v2215, %v2214
        %v2229 = vpack.c.b16 %v2217, %v2216
        %v2230 = vpack.c.b16 %v2219, %v2218
        %v2231 = vpack.c.b16 %v2221, %v2220
        %v2232 = vpack.c.b16 %v2223, %v2222
        %v2233 = vpack.c.b16 %v2225, %v2224
        %2242 = vmatprep.subr.bf16.mxu0 0
        %2243 = vmatpush1.bf16.msra.mxu0 %v2226
        %2244 = vmatprep.subr.bf16.mxu0 0
        %2245 = vmatpush1.bf16.msra.mxu0 %v2227
        %2246 = vmatprep.subr.bf16.mxu0 0
        %2247 = vmatpush1.bf16.msra.mxu0 %v2228
        %2248 = vmatprep.subr.bf16.mxu0 0
        %2249 = vmatpush1.bf16.msra.mxu0 %v2229
        %2250 = vmatprep.subr.bf16.mxu0 0
        %2251 = vmatpush1.bf16.msra.mxu0 %v2230
        %2252 = vmatprep.subr.bf16.mxu0 0
        %2253 = vmatpush1.bf16.msra.mxu0 %v2231
        %2254 = vmatprep.subr.bf16.mxu0 0
        %2255 = vmatpush1.bf16.msra.mxu0 %v2232
        %2256 = vmatprep.subr.bf16.mxu0 0
        %2257 = vmatpush1.bf16.msra.mxu0 %v2233
        %2258 = vmatprep.subr.bf16.mxu0 0
        %2259 = vmatpush1.bf16.msra.mxu0 0
        %2260 = vmatprep.subr.bf16.mxu0 0
        %2261 = vmatpush1.bf16.msra.mxu0 0
        %2262 = vmatprep.subr.bf16.mxu0 0
        %2263 = vmatpush1.bf16.msra.mxu0 0
        %2264 = vmatprep.subr.bf16.mxu0 0
        %2265 = vmatpush1.bf16.msra.mxu0 0
        %2266 = vmatprep.subr.bf16.mxu0 0
        %2267 = vmatpush1.bf16.msra.mxu0 0
        %2268 = vmatprep.subr.bf16.mxu0 0
        %2269 = vmatpush1.bf16.msra.mxu0 0
        %2270 = vmatprep.subr.bf16.mxu0 0
        %2271 = vmatpush1.bf16.msra.mxu0 0
        %2272 = vmatprep.subr.bf16.mxu0 0
        %2273 = vmatpush1.bf16.msra.mxu0 0
        %2274 = vmatprep.mubr.bf16.mxu0 0
        %2275 = vmatmul.mubr.bf16.gmra.mrb[0].mxu0 %v2156
        %v2276 = vpop.f32.mrb[0].mxu0
        %v2277 = vadd.f32 0.0, %v2276
        %v2278 = vpop.f32.mrb[0].mxu0
        %v2279 = vpop.f32.mrb[0].mxu0
        %v2280 = vadd.f32 0.0, %v2279
        %v2281 = vpop.f32.mrb[0].mxu0
        %2282 = vmatprep.mubr.bf16.mxu0 0
        %2283 = vmatmul.mubr.bf16.gmra.mrb[0].mxu0 %v2164
        %v2284 = vpop.f32.mrb[0].mxu0
        %v2285 = vadd.f32 0.0, %v2284
        %v2286 = vpop.f32.mrb[0].mxu0
        %v2287 = vpop.f32.mrb[0].mxu0
        %v2288 = vadd.f32 0.0, %v2287
        %v2289 = vpop.f32.mrb[0].mxu0
        %2290 = vmatprep.mubr.bf16.mxu0 0
        %2291 = vmatmul.mubr.bf16.gmra.mrb[0].mxu0 %v2172
        %v2292 = vpop.f32.mrb[0].mxu0
        %v2293 = vadd.f32 0.0, %v2292
        %v2294 = vpop.f32.mrb[0].mxu0
        %v2295 = vpop.f32.mrb[0].mxu0
        %v2296 = vadd.f32 0.0, %v2295
        %v2297 = vpop.f32.mrb[0].mxu0
        %2298 = vmatprep.mubr.bf16.mxu0 0
        %2299 = vmatmul.mubr.bf16.gmra.mrb[0].mxu0 %v2180
        %v2300 = vpop.f32.mrb[0].mxu0
        %v2301 = vadd.f32 0.0, %v2300
        %v2302 = vpop.f32.mrb[0].mxu0
        %v2303 = vpop.f32.mrb[0].mxu0
        %v2304 = vadd.f32 0.0, %v2303
        %v2305 = vpop.f32.mrb[0].mxu0
        %2306 = vmatprep.mubr.bf16.mxu0 0
        %2307 = vmatmul.mubr.bf16.gmra.mrb[0].mxu0 %v2188
        %v2308 = vpop.f32.mrb[0].mxu0
        %v2309 = vadd.f32 0.0, %v2308
        %v2310 = vpop.f32.mrb[0].mxu0
        %v2311 = vpop.f32.mrb[0].mxu0
        %v2312 = vadd.f32 0.0, %v2311
        %v2313 = vpop.f32.mrb[0].mxu0
        %2314 = vdwg.mxu0
        %v2336 = vunpack.c.l.b16 %v2083
        %v2337 = vunpack.c.l.b16 %v2084
        %v2338 = vunpack.c.l.b16 %v2085
        %v2339 = vunpack.c.l.b16 %v2086
        %v2340 = vunpack.c.l.b16 %v2087
        %v2341 = vunpack.c.l.b16 %v2088
        %v2342 = vunpack.c.l.b16 %v2089
        %v2343 = vunpack.c.l.b16 %v2090
        %v2344 = vunpack.c.l.b16 %v2091
        %v2345 = vunpack.c.l.b16 %v2092
        %v2346 = vunpack.c.l.b16 %v2093
        %v2347 = vunpack.c.l.b16 %v2094
        %v2348 = vunpack.c.l.b16 %v2095
        %v2349 = vunpack.c.l.b16 %v2096
        %v2350 = vunpack.c.l.b16 %v2097
        %v2351 = vunpack.c.l.b16 %v2098
        %v2352 = vpack.c.b16 %v2337, %v2336
        %v2353 = vpack.c.b16 %v2339, %v2338
        %v2354 = vpack.c.b16 %v2341, %v2340
        %v2355 = vpack.c.b16 %v2343, %v2342
        %v2356 = vpack.c.b16 %v2345, %v2344
        %v2357 = vpack.c.b16 %v2347, %v2346
        %v2358 = vpack.c.b16 %v2349, %v2348
        %v2359 = vpack.c.b16 %v2351, %v2350
        %2368 = vmatprep.subr.bf16.mxu0 0
        %2369 = vmatpush1.bf16.msra.mxu0 %v2352
        %2370 = vmatprep.subr.bf16.mxu0 0
        %2371 = vmatpush1.bf16.msra.mxu0 %v2353
        %2372 = vmatprep.subr.bf16.mxu0 0
        %2373 = vmatpush1.bf16.msra.mxu0 %v2354
        %2374 = vmatprep.subr.bf16.mxu0 0
        %2375 = vmatpush1.bf16.msra.mxu0 %v2355
        %2376 = vmatprep.subr.bf16.mxu0 0
        %2377 = vmatpush1.bf16.msra.mxu0 %v2356
        %2378 = vmatprep.subr.bf16.mxu0 0
        %2379 = vmatpush1.bf16.msra.mxu0 %v2357
        %2380 = vmatprep.subr.bf16.mxu0 0
        %2381 = vmatpush1.bf16.msra.mxu0 %v2358
        %2382 = vmatprep.subr.bf16.mxu0 0
        %2383 = vmatpush1.bf16.msra.mxu0 %v2359
        %2384 = vmatprep.subr.bf16.mxu0 0
        %2385 = vmatpush1.bf16.msra.mxu0 0
        %2386 = vmatprep.subr.bf16.mxu0 0
        %2387 = vmatpush1.bf16.msra.mxu0 0
        %2388 = vmatprep.subr.bf16.mxu0 0
        %2389 = vmatpush1.bf16.msra.mxu0 0
        %2390 = vmatprep.subr.bf16.mxu0 0
        %2391 = vmatpush1.bf16.msra.mxu0 0
        %2392 = vmatprep.subr.bf16.mxu0 0
        %2393 = vmatpush1.bf16.msra.mxu0 0
        %2394 = vmatprep.subr.bf16.mxu0 0
        %2395 = vmatpush1.bf16.msra.mxu0 0
        %2396 = vmatprep.subr.bf16.mxu0 0
        %2397 = vmatpush1.bf16.msra.mxu0 0
        %2398 = vmatprep.subr.bf16.mxu0 0
        %2399 = vmatpush1.bf16.msra.mxu0 0
        %2400 = vmatprep.mubr.bf16.mxu0 0
        %2401 = vmatmul.mubr.bf16.gmra.mrb[0].mxu0 %v2139
        %v2402 = vpop.f32.mrb[0].mxu0
        %v2403 = vadd.f32 %v2277, %v2402
        %v2404 = vpop.f32.mrb[0].mxu0
        %v2405 = vpop.f32.mrb[0].mxu0
        %v2406 = vadd.f32 %v2280, %v2405
        %v2407 = vpop.f32.mrb[0].mxu0
        %2408 = vmatprep.mubr.bf16.mxu0 0
        %2409 = vmatmul.mubr.bf16.gmra.mrb[0].mxu0 %v2140
        %v2410 = vpop.f32.mrb[0].mxu0
        %v2411 = vadd.f32 %v2285, %v2410
        %v2412 = vpop.f32.mrb[0].mxu0
        %v2413 = vpop.f32.mrb[0].mxu0
        %v2414 = vadd.f32 %v2288, %v2413
        %v2415 = vpop.f32.mrb[0].mxu0
        %2416 = vmatprep.mubr.bf16.mxu0 0
        %2417 = vmatmul.mubr.bf16.gmra.mrb[0].mxu0 %v2141
        %v2418 = vpop.f32.mrb[0].mxu0
        %v2419 = vadd.f32 %v2293, %v2418
        %v2420 = vpop.f32.mrb[0].mxu0
        %v2421 = vpop.f32.mrb[0].mxu0
        %v2422 = vadd.f32 %v2296, %v2421
        %v2423 = vpop.f32.mrb[0].mxu0
        %2424 = vmatprep.mubr.bf16.mxu0 0
        %2425 = vmatmul.mubr.bf16.gmra.mrb[0].mxu0 %v2142
        %v2426 = vpop.f32.mrb[0].mxu0
        %v2427 = vadd.f32 %v2301, %v2426
        %v2428 = vpop.f32.mrb[0].mxu0
        %v2429 = vpop.f32.mrb[0].mxu0
        %v2430 = vadd.f32 %v2304, %v2429
        %v2431 = vpop.f32.mrb[0].mxu0
        %2432 = vmatprep.mubr.bf16.mxu0 0
        %2433 = vmatmul.mubr.bf16.gmra.mrb[0].mxu0 %v2143
        %v2434 = vpop.f32.mrb[0].mxu0
        %v2435 = vadd.f32 %v2309, %v2434
        %v2436 = vpop.f32.mrb[0].mxu0
        %v2437 = vpop.f32.mrb[0].mxu0
        %v2438 = vadd.f32 %v2312, %v2437
        %v2439 = vpop.f32.mrb[0].mxu0
        %2440 = vdwg.mxu0
        %v2441 = vld [vmem:[#allocation2] sm:$0xe]
        %s2442 = scalar_lea.vmem [#allocation3], 128
        %v2443 = vld [vmem:[%s2442] sm:$0xf]
        %v2444 = vld [vmem:[%s2442 + $0x4] sm:$0xf]
        %v2445 = vld [vmem:[%s2442 + $0x8] sm:$0xf]
        %v2446 = vld [vmem:[%s2442 + $0xc] sm:$0xf]
        %v2447 = vld [vmem:[%s2442 + $0x10] sm:$0xf]
        %v2448 = vld [vmem:[%s2442 + $0x14] sm:$0xf]
        %v2449 = vld [vmem:[%s2442 + $0x18] sm:$0xf]
        %v2450 = vld [vmem:[%s2442 + $0x1c] sm:$0xf]
        %v2451 = vld [vmem:[%s2442 + $0x20] sm:$0xf]
        %v2452 = vld [vmem:[%s2442 + $0x24] sm:$0xf]
        %v2453 = vld [vmem:[%s2442 + $0x28] sm:$0xf]
        %v2454 = vld [vmem:[%s2442 + $0x2c] sm:$0xf]
        %v2455 = vld [vmem:[%s2442 + $0x30] sm:$0xf]
        %v2456 = vld [vmem:[%s2442 + $0x34] sm:$0xf]
        %v2457 = vld [vmem:[%s2442 + $0x38] sm:$0xf]
        %v2458 = vld [vmem:[%s2442 + $0x3c] sm:$0xf]
        %v2460 = vunpack.c.l.b16 %v2441
        %v2461 = vpack.c.b16 %v2129, %v2460
        %v2462 = vrot.slane %v2461, 1
        %v2463 = vrot.slane %v2140, 1
        %v2464 = vsel %vm1289, %v2462, %v2463
        %v2465 = vrot.slane %v2141, 1
        %v2466 = vsel %vm1289, %v2463, %v2465
        %v2467 = vrot.slane %v2142, 1
        %v2468 = vsel %vm1289, %v2465, %v2467
        %v2469 = vrot.slane %v2143, 1
        %v2470 = vsel %vm1289, %v2467, %v2469
        %v2471 = vrot.slane %v2144, 1
        %v2472 = vsel %vm1289, %v2469, %v2471
        %v2494 = vunpack.c.l.b16 %v2443
        %v2495 = vunpack.c.l.b16 %v2444
        %v2496 = vunpack.c.l.b16 %v2445
        %v2497 = vunpack.c.l.b16 %v2446
        %v2498 = vunpack.c.l.b16 %v2447
        %v2499 = vunpack.c.l.b16 %v2448
        %v2500 = vunpack.c.l.b16 %v2449
        %v2501 = vunpack.c.l.b16 %v2450
        %v2502 = vunpack.c.l.b16 %v2451
        %v2503 = vunpack.c.l.b16 %v2452
        %v2504 = vunpack.c.l.b16 %v2453
        %v2505 = vunpack.c.l.b16 %v2454
        %v2506 = vunpack.c.l.b16 %v2455
        %v2507 = vunpack.c.l.b16 %v2456
        %v2508 = vunpack.c.l.b16 %v2457
        %v2509 = vunpack.c.l.b16 %v2458
        %v2510 = vpack.c.b16 %v2495, %v2494
        %v2511 = vpack.c.b16 %v2497, %v2496
        %v2512 = vpack.c.b16 %v2499, %v2498
        %v2513 = vpack.c.b16 %v2501, %v2500
        %v2514 = vpack.c.b16 %v2503, %v2502
        %v2515 = vpack.c.b16 %v2505, %v2504
        %v2516 = vpack.c.b16 %v2507, %v2506
        %v2517 = vpack.c.b16 %v2509, %v2508
        %2526 = vmatprep.subr.bf16.mxu0 0
        %2527 = vmatpush1.bf16.msra.mxu0 %v2510
        %2528 = vmatprep.subr.bf16.mxu0 0
        %2529 = vmatpush1.bf16.msra.mxu0 %v2511
        %2530 = vmatprep.subr.bf16.mxu0 0
        %2531 = vmatpush1.bf16.msra.mxu0 %v2512
        %2532 = vmatprep.subr.bf16.mxu0 0
        %2533 = vmatpush1.bf16.msra.mxu0 %v2513
        %2534 = vmatprep.subr.bf16.mxu0 0
        %2535 = vmatpush1.bf16.msra.mxu0 %v2514
        %2536 = vmatprep.subr.bf16.mxu0 0
        %2537 = vmatpush1.bf16.msra.mxu0 %v2515
        %2538 = vmatprep.subr.bf16.mxu0 0
        %2539 = vmatpush1.bf16.msra.mxu0 %v2516
        %2540 = vmatprep.subr.bf16.mxu0 0
        %2541 = vmatpush1.bf16.msra.mxu0 %v2517
        %2542 = vmatprep.subr.bf16.mxu0 0
        %2543 = vmatpush1.bf16.msra.mxu0 0
        %2544 = vmatprep.subr.bf16.mxu0 0
        %2545 = vmatpush1.bf16.msra.mxu0 0
        %2546 = vmatprep.subr.bf16.mxu0 0
        %2547 = vmatpush1.bf16.msra.mxu0 0
        %2548 = vmatprep.subr.bf16.mxu0 0
        %2549 = vmatpush1.bf16.msra.mxu0 0
        %2550 = vmatprep.subr.bf16.mxu0 0
        %2551 = vmatpush1.bf16.msra.mxu0 0
        %2552 = vmatprep.subr.bf16.mxu0 0
        %2553 = vmatpush1.bf16.msra.mxu0 0
        %2554 = vmatprep.subr.bf16.mxu0 0
        %2555 = vmatpush1.bf16.msra.mxu0 0
        %2556 = vmatprep.subr.bf16.mxu0 0
        %2557 = vmatpush1.bf16.msra.mxu0 0
        %2558 = vmatprep.mubr.bf16.mxu0 0
        %2559 = vmatmul.mubr.bf16.gmra.mrb[0].mxu0 %v2464
        %v2560 = vpop.f32.mrb[0].mxu0
        %v2561 = vadd.f32 0.0, %v2560
        %v2562 = vpop.f32.mrb[0].mxu0
        %v2563 = vpop.f32.mrb[0].mxu0
        %v2564 = vadd.f32 0.0, %v2563
        %v2565 = vpop.f32.mrb[0].mxu0
        %2566 = vmatprep.mubr.bf16.mxu0 0
        %2567 = vmatmul.mubr.bf16.gmra.mrb[0].mxu0 %v2466
        %v2568 = vpop.f32.mrb[0].mxu0
        %v2569 = vadd.f32 0.0, %v2568
        %v2570 = vpop.f32.mrb[0].mxu0
        %v2571 = vpop.f32.mrb[0].mxu0
        %v2572 = vadd.f32 0.0, %v2571
        %v2573 = vpop.f32.mrb[0].mxu0
        %2574 = vmatprep.mubr.bf16.mxu0 0
        %2575 = vmatmul.mubr.bf16.gmra.mrb[0].mxu0 %v2468
        %v2576 = vpop.f32.mrb[0].mxu0
        %v2577 = vadd.f32 0.0, %v2576
        %v2578 = vpop.f32.mrb[0].mxu0
        %v2579 = vpop.f32.mrb[0].mxu0
        %v2580 = vadd.f32 0.0, %v2579
        %v2581 = vpop.f32.mrb[0].mxu0
        %2582 = vmatprep.mubr.bf16.mxu0 0
        %2583 = vmatmul.mubr.bf16.gmra.mrb[0].mxu0 %v2470
        %v2584 = vpop.f32.mrb[0].mxu0
        %v2585 = vadd.f32 0.0, %v2584
        %v2586 = vpop.f32.mrb[0].mxu0
        %v2587 = vpop.f32.mrb[0].mxu0
        %v2588 = vadd.f32 0.0, %v2587
        %v2589 = vpop.f32.mrb[0].mxu0
        %2590 = vmatprep.mubr.bf16.mxu0 0
        %2591 = vmatmul.mubr.bf16.gmra.mrb[0].mxu0 %v2472
        %v2592 = vpop.f32.mrb[0].mxu0
        %v2593 = vadd.f32 0.0, %v2592
        %v2594 = vpop.f32.mrb[0].mxu0
        %v2595 = vpop.f32.mrb[0].mxu0
        %v2596 = vadd.f32 0.0, %v2595
        %v2597 = vpop.f32.mrb[0].mxu0
        %2598 = vdwg.mxu0
        %v2599 = vadd.f32 %v2403, %v2561
        %v2600 = vadd.f32 %v2406, %v2564
        %v2601 = vadd.f32 %v2411, %v2569
        %v2602 = vadd.f32 %v2414, %v2572
        %v2603 = vadd.f32 %v2419, %v2577
        %v2604 = vadd.f32 %v2422, %v2580
        %v2605 = vadd.f32 %v2427, %v2585
        %v2606 = vadd.f32 %v2430, %v2588
        %v2607 = vadd.f32 %v2435, %v2593
        %v2608 = vadd.f32 %v2438, %v2596
        %v2609 = vld [vmem:[#allocation2 + $0x4] sm:$0xe]
        %v2610 = vld [vmem:[#allocation2 + $0x8] sm:$0xf]
        %v2611 = vld [vmem:[#allocation2 + $0xc] sm:$0xf]
        %v2612 = vld [vmem:[#allocation2 + $0x10] sm:$0xf]
        %v2613 = vld [vmem:[#allocation2 + $0x14] sm:$0xf]
        %v2614 = vld [vmem:[#allocation2 + $0x18] sm:$0xf]
        %v2615 = vld [vmem:[#allocation2 + $0x1c] sm:$0xf]
        %v2616 = vld [vmem:[#allocation2 + $0x20] sm:$0xf]
        %v2617 = vld [vmem:[#allocation2 + $0x24] sm:$0xf]
        %v2618 = vld [vmem:[#allocation2 + $0x28] sm:$0xf]
        %v2619 = vld [vmem:[#allocation2 + $0x2c] sm:$0x1]
        %s2620 = scalar_lea.vmem [#allocation3], 192
        %v2621 = vld [vmem:[%s2620] sm:$0xf]
        %v2622 = vld [vmem:[%s2620 + $0x4] sm:$0xf]
        %v2623 = vld [vmem:[%s2620 + $0x8] sm:$0xf]
        %v2624 = vld [vmem:[%s2620 + $0xc] sm:$0xf]
        %v2625 = vld [vmem:[%s2620 + $0x10] sm:$0xf]
        %v2626 = vld [vmem:[%s2620 + $0x14] sm:$0xf]
        %v2627 = vld [vmem:[%s2620 + $0x18] sm:$0xf]
        %v2628 = vld [vmem:[%s2620 + $0x1c] sm:$0xf]
        %v2629 = vld [vmem:[%s2620 + $0x20] sm:$0xf]
        %v2630 = vld [vmem:[%s2620 + $0x24] sm:$0xf]
        %v2631 = vld [vmem:[%s2620 + $0x28] sm:$0xf]
        %v2632 = vld [vmem:[%s2620 + $0x2c] sm:$0xf]
        %v2633 = vld [vmem:[%s2620 + $0x30] sm:$0xf]
        %v2634 = vld [vmem:[%s2620 + $0x34] sm:$0xf]
        %v2635 = vld [vmem:[%s2620 + $0x38] sm:$0xf]
        %v2636 = vld [vmem:[%s2620 + $0x3c] sm:$0xf]
        %v2648 = vunpack.c.l.b16 %v2609
        %v2649 = vunpack.c.l.b16 %v2610
        %v2650 = vunpack.c.l.b16 %v2611
        %v2651 = vunpack.c.l.b16 %v2612
        %v2652 = vunpack.c.l.b16 %v2613
        %v2653 = vunpack.c.l.b16 %v2614
        %v2654 = vunpack.c.l.b16 %v2615
        %v2655 = vunpack.c.l.b16 %v2616
        %v2656 = vunpack.c.l.b16 %v2617
        %v2657 = vunpack.c.l.b16 %v2618
        %v2658 = vunpack.c.l.b16 %v2619
        %v2659 = vpack.c.b16 %v2649, %v2648
        %v2660 = vpack.c.b16 %v2651, %v2650
        %v2661 = vpack.c.b16 %v2653, %v2652
        %v2662 = vpack.c.b16 %v2655, %v2654
        %v2663 = vpack.c.b16 %v2657, %v2656
        %v2664 = vpack.c.b16 %v2658, %v2658
        %v2665 = vrot.slane %v2659, 1
        %v2666 = vrot.slane %v2660, 1
        %v2667 = vsel %vm1289, %v2665, %v2666
        %v2668 = vrot.slane %v2661, 1
        %v2669 = vsel %vm1289, %v2666, %v2668
        %v2670 = vrot.slane %v2662, 1
        %v2671 = vsel %vm1289, %v2668, %v2670
        %v2672 = vrot.slane %v2663, 1
        %v2673 = vsel %vm1289, %v2670, %v2672
        %v2674 = vrot.slane %v2664, 1
        %v2675 = vsel %vm1289, %v2672, %v2674
        %v2697 = vunpack.c.l.b16 %v2621
        %v2698 = vunpack.c.l.b16 %v2622
        %v2699 = vunpack.c.l.b16 %v2623
        %v2700 = vunpack.c.l.b16 %v2624
        %v2701 = vunpack.c.l.b16 %v2625
        %v2702 = vunpack.c.l.b16 %v2626
        %v2703 = vunpack.c.l.b16 %v2627
        %v2704 = vunpack.c.l.b16 %v2628
        %v2705 = vunpack.c.l.b16 %v2629
        %v2706 = vunpack.c.l.b16 %v2630
        %v2707 = vunpack.c.l.b16 %v2631
        %v2708 = vunpack.c.l.b16 %v2632
        %v2709 = vunpack.c.l.b16 %v2633
        %v2710 = vunpack.c.l.b16 %v2634
        %v2711 = vunpack.c.l.b16 %v2635
        %v2712 = vunpack.c.l.b16 %v2636
        %v2713 = vpack.c.b16 %v2698, %v2697
        %v2714 = vpack.c.b16 %v2700, %v2699
        %v2715 = vpack.c.b16 %v2702, %v2701
        %v2716 = vpack.c.b16 %v2704, %v2703
        %v2717 = vpack.c.b16 %v2706, %v2705
        %v2718 = vpack.c.b16 %v2708, %v2707
        %v2719 = vpack.c.b16 %v2710, %v2709
        %v2720 = vpack.c.b16 %v2712, %v2711
        %2729 = vmatprep.subr.bf16.mxu0 0
        %2730 = vmatpush1.bf16.msra.mxu0 %v2713
        %2731 = vmatprep.subr.bf16.mxu0 0
        %2732 = vmatpush1.bf16.msra.mxu0 %v2714
        %2733 = vmatprep.subr.bf16.mxu0 0
        %2734 = vmatpush1.bf16.msra.mxu0 %v2715
        %2735 = vmatprep.subr.bf16.mxu0 0
        %2736 = vmatpush1.bf16.msra.mxu0 %v2716
        %2737 = vmatprep.subr.bf16.mxu0 0
        %2738 = vmatpush1.bf16.msra.mxu0 %v2717
        %2739 = vmatprep.subr.bf16.mxu0 0
        %2740 = vmatpush1.bf16.msra.mxu0 %v2718
        %2741 = vmatprep.subr.bf16.mxu0 0
        %2742 = vmatpush1.bf16.msra.mxu0 %v2719
        %2743 = vmatprep.subr.bf16.mxu0 0
        %2744 = vmatpush1.bf16.msra.mxu0 %v2720
        %2745 = vmatprep.subr.bf16.mxu0 0
        %2746 = vmatpush1.bf16.msra.mxu0 0
        %2747 = vmatprep.subr.bf16.mxu0 0
        %2748 = vmatpush1.bf16.msra.mxu0 0
        %2749 = vmatprep.subr.bf16.mxu0 0
        %2750 = vmatpush1.bf16.msra.mxu0 0
        %2751 = vmatprep.subr.bf16.mxu0 0
        %2752 = vmatpush1.bf16.msra.mxu0 0
        %2753 = vmatprep.subr.bf16.mxu0 0
        %2754 = vmatpush1.bf16.msra.mxu0 0
        %2755 = vmatprep.subr.bf16.mxu0 0
        %2756 = vmatpush1.bf16.msra.mxu0 0
        %2757 = vmatprep.subr.bf16.mxu0 0
        %2758 = vmatpush1.bf16.msra.mxu0 0
        %2759 = vmatprep.subr.bf16.mxu0 0
        %2760 = vmatpush1.bf16.msra.mxu0 0
        %2761 = vmatprep.mubr.bf16.mxu0 0
        %2762 = vmatmul.mubr.bf16.gmra.mrb[0].mxu0 %v2667
        %v2763 = vpop.f32.mrb[0].mxu0
        %v2764 = vadd.f32 0.0, %v2763
        %v2765 = vpop.f32.mrb[0].mxu0
        %v2766 = vpop.f32.mrb[0].mxu0
        %v2767 = vadd.f32 0.0, %v2766
        %v2768 = vpop.f32.mrb[0].mxu0
        %2769 = vmatprep.mubr.bf16.mxu0 0
        %2770 = vmatmul.mubr.bf16.gmra.mrb[0].mxu0 %v2669
        %v2771 = vpop.f32.mrb[0].mxu0
        %v2772 = vadd.f32 0.0, %v2771
        %v2773 = vpop.f32.mrb[0].mxu0
        %v2774 = vpop.f32.mrb[0].mxu0
        %v2775 = vadd.f32 0.0, %v2774
        %v2776 = vpop.f32.mrb[0].mxu0
        %2777 = vmatprep.mubr.bf16.mxu0 0
        %2778 = vmatmul.mubr.bf16.gmra.mrb[0].mxu0 %v2671
        %v2779 = vpop.f32.mrb[0].mxu0
        %v2780 = vadd.f32 0.0, %v2779
        %v2781 = vpop.f32.mrb[0].mxu0
        %v2782 = vpop.f32.mrb[0].mxu0
        %v2783 = vadd.f32 0.0, %v2782
        %v2784 = vpop.f32.mrb[0].mxu0
        %2785 = vmatprep.mubr.bf16.mxu0 0
        %2786 = vmatmul.mubr.bf16.gmra.mrb[0].mxu0 %v2673
        %v2787 = vpop.f32.mrb[0].mxu0
        %v2788 = vadd.f32 0.0, %v2787
        %v2789 = vpop.f32.mrb[0].mxu0
        %v2790 = vpop.f32.mrb[0].mxu0
        %v2791 = vadd.f32 0.0, %v2790
        %v2792 = vpop.f32.mrb[0].mxu0
        %2793 = vmatprep.mubr.bf16.mxu0 0
        %2794 = vmatmul.mubr.bf16.gmra.mrb[0].mxu0 %v2675
        %v2795 = vpop.f32.mrb[0].mxu0
        %v2796 = vadd.f32 0.0, %v2795
        %v2797 = vpop.f32.mrb[0].mxu0
        %v2798 = vpop.f32.mrb[0].mxu0
        %v2799 = vadd.f32 0.0, %v2798
        %v2800 = vpop.f32.mrb[0].mxu0
        %2801 = vdwg.mxu0
        %v2802 = vadd.f32 %v2599, %v2764
        %v2803 = vadd.f32 %v2600, %v2767
        %v2804 = vadd.f32 %v2601, %v2772
        %v2805 = vadd.f32 %v2602, %v2775
        %v2806 = vadd.f32 %v2603, %v2780
        %v2807 = vadd.f32 %v2604, %v2783
        %v2808 = vadd.f32 %v2605, %v2788
        %v2809 = vadd.f32 %v2606, %v2791
        %v2810 = vadd.f32 %v2607, %v2796
        %v2811 = vadd.f32 %v2608, %v2799
        %v2812 = vld [vmem:[#allocation2 + $0x2c] sm:$0x3]
        %s2813 = scalar_lea.vmem [#allocation3], 256
        %v2814 = vld [vmem:[%s2813] sm:$0xf]
        %v2815 = vld [vmem:[%s2813 + $0x4] sm:$0xf]
        %v2816 = vld [vmem:[%s2813 + $0x8] sm:$0xf]
        %v2817 = vld [vmem:[%s2813 + $0xc] sm:$0xf]
        %v2818 = vld [vmem:[%s2813 + $0x10] sm:$0xf]
        %v2819 = vld [vmem:[%s2813 + $0x14] sm:$0xf]
        %v2820 = vld [vmem:[%s2813 + $0x18] sm:$0xf]
        %v2821 = vld [vmem:[%s2813 + $0x1c] sm:$0xf]
        %v2822 = vld [vmem:[%s2813 + $0x20] sm:$0xf]
        %v2823 = vld [vmem:[%s2813 + $0x24] sm:$0xf]
        %v2824 = vld [vmem:[%s2813 + $0x28] sm:$0xf]
        %v2825 = vld [vmem:[%s2813 + $0x2c] sm:$0xf]
        %v2826 = vld [vmem:[%s2813 + $0x30] sm:$0xf]
        %v2827 = vld [vmem:[%s2813 + $0x34] sm:$0xf]
        %v2828 = vld [vmem:[%s2813 + $0x38] sm:$0xf]
        %v2829 = vld [vmem:[%s2813 + $0x3c] sm:$0xf]
        %v2831 = vunpack.c.l.b16 %v2812
        %v2832 = vpack.c.b16 %v2831, %v2831
        %v2834 = vshrl.u32 %v2659, 16
        %v2836 = vrot.slane %v2834, 1
        %v2837 = vshll.u32 %v2659, 16
        %v2839 = vrot.slane %v2837, 2
        %v2840 = vor.u32 %v2836, %v2839
        %v2842 = vshrl.u32 %v2660, 16
        %v2844 = vrot.slane %v2842, 1
        %v2845 = vshll.u32 %v2660, 16
        %v2847 = vrot.slane %v2845, 2
        %v2848 = vor.u32 %v2844, %v2847
        %v2849 = vsel %vm1561, %v2840, %v2848
        %v2851 = vshrl.u32 %v2661, 16
        %v2853 = vrot.slane %v2851, 1
        %v2854 = vshll.u32 %v2661, 16
        %v2856 = vrot.slane %v2854, 2
        %v2857 = vor.u32 %v2853, %v2856
        %v2858 = vsel %vm1561, %v2848, %v2857
        %v2860 = vshrl.u32 %v2662, 16
        %v2862 = vrot.slane %v2860, 1
        %v2863 = vshll.u32 %v2662, 16
        %v2865 = vrot.slane %v2863, 2
        %v2866 = vor.u32 %v2862, %v2865
        %v2867 = vsel %vm1561, %v2857, %v2866
        %v2869 = vshrl.u32 %v2663, 16
        %v2871 = vrot.slane %v2869, 1
        %v2872 = vshll.u32 %v2663, 16
        %v2874 = vrot.slane %v2872, 2
        %v2875 = vor.u32 %v2871, %v2874
        %v2876 = vsel %vm1561, %v2866, %v2875
        %v2878 = vshrl.u32 %v2832, 16
        %v2880 = vrot.slane %v2878, 1
        %v2881 = vshll.u32 %v2832, 16
        %v2883 = vrot.slane %v2881, 2
        %v2884 = vor.u32 %v2880, %v2883
        %v2885 = vsel %vm1561, %v2875, %v2884
        %v2907 = vunpack.c.l.b16 %v2814
        %v2908 = vunpack.c.l.b16 %v2815
        %v2909 = vunpack.c.l.b16 %v2816
        %v2910 = vunpack.c.l.b16 %v2817
        %v2911 = vunpack.c.l.b16 %v2818
        %v2912 = vunpack.c.l.b16 %v2819
        %v2913 = vunpack.c.l.b16 %v2820
        %v2914 = vunpack.c.l.b16 %v2821
        %v2915 = vunpack.c.l.b16 %v2822
        %v2916 = vunpack.c.l.b16 %v2823
        %v2917 = vunpack.c.l.b16 %v2824
        %v2918 = vunpack.c.l.b16 %v2825
        %v2919 = vunpack.c.l.b16 %v2826
        %v2920 = vunpack.c.l.b16 %v2827
        %v2921 = vunpack.c.l.b16 %v2828
        %v2922 = vunpack.c.l.b16 %v2829
        %v2923 = vpack.c.b16 %v2908, %v2907
        %v2924 = vpack.c.b16 %v2910, %v2909
        %v2925 = vpack.c.b16 %v2912, %v2911
        %v2926 = vpack.c.b16 %v2914, %v2913
        %v2927 = vpack.c.b16 %v2916, %v2915
        %v2928 = vpack.c.b16 %v2918, %v2917
        %v2929 = vpack.c.b16 %v2920, %v2919
        %v2930 = vpack.c.b16 %v2922, %v2921
        %2939 = vmatprep.subr.bf16.mxu0 0
        %2940 = vmatpush1.bf16.msra.mxu0 %v2923
        %2941 = vmatprep.subr.bf16.mxu0 0
        %2942 = vmatpush1.bf16.msra.mxu0 %v2924
        %2943 = vmatprep.subr.bf16.mxu0 0
        %2944 = vmatpush1.bf16.msra.mxu0 %v2925
        %2945 = vmatprep.subr.bf16.mxu0 0
        %2946 = vmatpush1.bf16.msra.mxu0 %v2926
        %2947 = vmatprep.subr.bf16.mxu0 0
        %2948 = vmatpush1.bf16.msra.mxu0 %v2927
        %2949 = vmatprep.subr.bf16.mxu0 0
        %2950 = vmatpush1.bf16.msra.mxu0 %v2928
        %2951 = vmatprep.subr.bf16.mxu0 0
        %2952 = vmatpush1.bf16.msra.mxu0 %v2929
        %2953 = vmatprep.subr.bf16.mxu0 0
        %2954 = vmatpush1.bf16.msra.mxu0 %v2930
        %2955 = vmatprep.subr.bf16.mxu0 0
        %2956 = vmatpush1.bf16.msra.mxu0 0
        %2957 = vmatprep.subr.bf16.mxu0 0
        %2958 = vmatpush1.bf16.msra.mxu0 0
        %2959 = vmatprep.subr.bf16.mxu0 0
        %2960 = vmatpush1.bf16.msra.mxu0 0
        %2961 = vmatprep.subr.bf16.mxu0 0
        %2962 = vmatpush1.bf16.msra.mxu0 0
        %2963 = vmatprep.subr.bf16.mxu0 0
        %2964 = vmatpush1.bf16.msra.mxu0 0
        %2965 = vmatprep.subr.bf16.mxu0 0
        %2966 = vmatpush1.bf16.msra.mxu0 0
        %2967 = vmatprep.subr.bf16.mxu0 0
        %2968 = vmatpush1.bf16.msra.mxu0 0
        %2969 = vmatprep.subr.bf16.mxu0 0
        %2970 = vmatpush1.bf16.msra.mxu0 0
        %2971 = vmatprep.mubr.bf16.mxu0 0
        %2972 = vmatmul.mubr.bf16.gmra.mrb[0].mxu0 %v2849
        %v2973 = vpop.f32.mrb[0].mxu0
        %v2974 = vadd.f32 0.0, %v2973
        %v2975 = vpop.f32.mrb[0].mxu0
        %v2976 = vpop.f32.mrb[0].mxu0
        %v2977 = vadd.f32 0.0, %v2976
        %v2978 = vpop.f32.mrb[0].mxu0
        %2979 = vmatprep.mubr.bf16.mxu0 0
        %2980 = vmatmul.mubr.bf16.gmra.mrb[0].mxu0 %v2858
        %v2981 = vpop.f32.mrb[0].mxu0
        %v2982 = vadd.f32 0.0, %v2981
        %v2983 = vpop.f32.mrb[0].mxu0
        %v2984 = vpop.f32.mrb[0].mxu0
        %v2985 = vadd.f32 0.0, %v2984
        %v2986 = vpop.f32.mrb[0].mxu0
        %2987 = vmatprep.mubr.bf16.mxu0 0
        %2988 = vmatmul.mubr.bf16.gmra.mrb[0].mxu0 %v2867
        %v2989 = vpop.f32.mrb[0].mxu0
        %v2990 = vadd.f32 0.0, %v2989
        %v2991 = vpop.f32.mrb[0].mxu0
        %v2992 = vpop.f32.mrb[0].mxu0
        %v2993 = vadd.f32 0.0, %v2992
        %v2994 = vpop.f32.mrb[0].mxu0
        %2995 = vmatprep.mubr.bf16.mxu0 0
        %2996 = vmatmul.mubr.bf16.gmra.mrb[0].mxu0 %v2876
        %v2997 = vpop.f32.mrb[0].mxu0
        %v2998 = vadd.f32 0.0, %v2997
        %v2999 = vpop.f32.mrb[0].mxu0
        %v3000 = vpop.f32.mrb[0].mxu0
        %v3001 = vadd.f32 0.0, %v3000
        %v3002 = vpop.f32.mrb[0].mxu0
        %3003 = vmatprep.mubr.bf16.mxu0 0
        %3004 = vmatmul.mubr.bf16.gmra.mrb[0].mxu0 %v2885
        %v3005 = vpop.f32.mrb[0].mxu0
        %v3006 = vadd.f32 0.0, %v3005
        %v3007 = vpop.f32.mrb[0].mxu0
        %v3008 = vpop.f32.mrb[0].mxu0
        %v3009 = vadd.f32 0.0, %v3008
        %v3010 = vpop.f32.mrb[0].mxu0
        %3011 = vdwg.mxu0
        %v3012 = vadd.f32 %v2802, %v2974
        %v3013 = vadd.f32 %v2803, %v2977
        %v3014 = vadd.f32 %v2804, %v2982
        %v3015 = vadd.f32 %v2805, %v2985
        %v3016 = vadd.f32 %v2806, %v2990
        %v3017 = vadd.f32 %v2807, %v2993
        %v3018 = vadd.f32 %v2808, %v2998
        %v3019 = vadd.f32 %v2809, %v3001
        %v3020 = vadd.f32 %v2810, %v3006
        %v3021 = vadd.f32 %v2811, %v3009
        %v3022 = vld [vmem:[#allocation2 + $0x4] sm:$0xc]
        %s3023 = scalar_lea.vmem [#allocation3], 320
        %v3024 = vld [vmem:[%s3023] sm:$0xf]
        %v3025 = vld [vmem:[%s3023 + $0x4] sm:$0xf]
        %v3026 = vld [vmem:[%s3023 + $0x8] sm:$0xf]
        %v3027 = vld [vmem:[%s3023 + $0xc] sm:$0xf]
        %v3028 = vld [vmem:[%s3023 + $0x10] sm:$0xf]
        %v3029 = vld [vmem:[%s3023 + $0x14] sm:$0xf]
        %v3030 = vld [vmem:[%s3023 + $0x18] sm:$0xf]
        %v3031 = vld [vmem:[%s3023 + $0x1c] sm:$0xf]
        %v3032 = vld [vmem:[%s3023 + $0x20] sm:$0xf]
        %v3033 = vld [vmem:[%s3023 + $0x24] sm:$0xf]
        %v3034 = vld [vmem:[%s3023 + $0x28] sm:$0xf]
        %v3035 = vld [vmem:[%s3023 + $0x2c] sm:$0xf]
        %v3036 = vld [vmem:[%s3023 + $0x30] sm:$0xf]
        %v3037 = vld [vmem:[%s3023 + $0x34] sm:$0xf]
        %v3038 = vld [vmem:[%s3023 + $0x38] sm:$0xf]
        %v3039 = vld [vmem:[%s3023 + $0x3c] sm:$0xf]
        %v3041 = vunpack.c.l.b16 %v3022
        %v3042 = vpack.c.b16 %v2649, %v3041
        %vm3043 = vcmask 1045504
        %v3044 = vrot.slane %v3042, 2
        %v3045 = vrot.slane %v2660, 2
        %v3046 = vsel %vm3043, %v3044, %v3045
        %v3047 = vrot.slane %v2661, 2
        %v3048 = vsel %vm3043, %v3045, %v3047
        %v3049 = vrot.slane %v2662, 2
        %v3050 = vsel %vm3043, %v3047, %v3049
        %v3051 = vrot.slane %v2663, 2
        %v3052 = vsel %vm3043, %v3049, %v3051
        %v3053 = vrot.slane %v2832, 2
        %v3054 = vsel %vm3043, %v3051, %v3053
        %v3076 = vunpack.c.l.b16 %v3024
        %v3077 = vunpack.c.l.b16 %v3025
        %v3078 = vunpack.c.l.b16 %v3026
        %v3079 = vunpack.c.l.b16 %v3027
        %v3080 = vunpack.c.l.b16 %v3028
        %v3081 = vunpack.c.l.b16 %v3029
        %v3082 = vunpack.c.l.b16 %v3030
        %v3083 = vunpack.c.l.b16 %v3031
        %v3084 = vunpack.c.l.b16 %v3032
        %v3085 = vunpack.c.l.b16 %v3033
        %v3086 = vunpack.c.l.b16 %v3034
        %v3087 = vunpack.c.l.b16 %v3035
        %v3088 = vunpack.c.l.b16 %v3036
        %v3089 = vunpack.c.l.b16 %v3037
        %v3090 = vunpack.c.l.b16 %v3038
        %v3091 = vunpack.c.l.b16 %v3039
        %v3092 = vpack.c.b16 %v3077, %v3076
        %v3093 = vpack.c.b16 %v3079, %v3078
        %v3094 = vpack.c.b16 %v3081, %v3080
        %v3095 = vpack.c.b16 %v3083, %v3082
        %v3096 = vpack.c.b16 %v3085, %v3084
        %v3097 = vpack.c.b16 %v3087, %v3086
        %v3098 = vpack.c.b16 %v3089, %v3088
        %v3099 = vpack.c.b16 %v3091, %v3090
        %3108 = vmatprep.subr.bf16.mxu0 0
        %3109 = vmatpush1.bf16.msra.mxu0 %v3092
        %3110 = vmatprep.subr.bf16.mxu0 0
        %3111 = vmatpush1.bf16.msra.mxu0 %v3093
        %3112 = vmatprep.subr.bf16.mxu0 0
        %3113 = vmatpush1.bf16.msra.mxu0 %v3094
        %3114 = vmatprep.subr.bf16.mxu0 0
        %3115 = vmatpush1.bf16.msra.mxu0 %v3095
        %3116 = vmatprep.subr.bf16.mxu0 0
        %3117 = vmatpush1.bf16.msra.mxu0 %v3096
        %3118 = vmatprep.subr.bf16.mxu0 0
        %3119 = vmatpush1.bf16.msra.mxu0 %v3097
        %3120 = vmatprep.subr.bf16.mxu0 0
        %3121 = vmatpush1.bf16.msra.mxu0 %v3098
        %3122 = vmatprep.subr.bf16.mxu0 0
        %3123 = vmatpush1.bf16.msra.mxu0 %v3099
        %3124 = vmatprep.subr.bf16.mxu0 0
        %3125 = vmatpush1.bf16.msra.mxu0 0
        %3126 = vmatprep.subr.bf16.mxu0 0
        %3127 = vmatpush1.bf16.msra.mxu0 0
        %3128 = vmatprep.subr.bf16.mxu0 0
        %3129 = vmatpush1.bf16.msra.mxu0 0
        %3130 = vmatprep.subr.bf16.mxu0 0
        %3131 = vmatpush1.bf16.msra.mxu0 0
        %3132 = vmatprep.subr.bf16.mxu0 0
        %3133 = vmatpush1.bf16.msra.mxu0 0
        %3134 = vmatprep.subr.bf16.mxu0 0
        %3135 = vmatpush1.bf16.msra.mxu0 0
        %3136 = vmatprep.subr.bf16.mxu0 0
        %3137 = vmatpush1.bf16.msra.mxu0 0
        %3138 = vmatprep.subr.bf16.mxu0 0
        %3139 = vmatpush1.bf16.msra.mxu0 0
        %3140 = vmatprep.mubr.bf16.mxu0 0
        %3141 = vmatmul.mubr.bf16.gmra.mrb[0].mxu0 %v3046
        %v3142 = vpop.f32.mrb[0].mxu0
        %v3143 = vadd.f32 0.0, %v3142
        %v3144 = vpop.f32.mrb[0].mxu0
        %v3145 = vpop.f32.mrb[0].mxu0
        %v3146 = vadd.f32 0.0, %v3145
        %v3147 = vpop.f32.mrb[0].mxu0
        %3148 = vmatprep.mubr.bf16.mxu0 0
        %3149 = vmatmul.mubr.bf16.gmra.mrb[0].mxu0 %v3048
        %v3150 = vpop.f32.mrb[0].mxu0
        %v3151 = vadd.f32 0.0, %v3150
        %v3152 = vpop.f32.mrb[0].mxu0
        %v3153 = vpop.f32.mrb[0].mxu0
        %v3154 = vadd.f32 0.0, %v3153
        %v3155 = vpop.f32.mrb[0].mxu0
        %3156 = vmatprep.mubr.bf16.mxu0 0
        %3157 = vmatmul.mubr.bf16.gmra.mrb[0].mxu0 %v3050
        %v3158 = vpop.f32.mrb[0].mxu0
        %v3159 = vadd.f32 0.0, %v3158
        %v3160 = vpop.f32.mrb[0].mxu0
        %v3161 = vpop.f32.mrb[0].mxu0
        %v3162 = vadd.f32 0.0, %v3161
        %v3163 = vpop.f32.mrb[0].mxu0
        %3164 = vmatprep.mubr.bf16.mxu0 0
        %3165 = vmatmul.mubr.bf16.gmra.mrb[0].mxu0 %v3052
        %v3166 = vpop.f32.mrb[0].mxu0
        %v3167 = vadd.f32 0.0, %v3166
        %v3168 = vpop.f32.mrb[0].mxu0
        %v3169 = vpop.f32.mrb[0].mxu0
        %v3170 = vadd.f32 0.0, %v3169
        %v3171 = vpop.f32.mrb[0].mxu0
        %3172 = vmatprep.mubr.bf16.mxu0 0
        %3173 = vmatmul.mubr.bf16.gmra.mrb[0].mxu0 %v3054
        %v3174 = vpop.f32.mrb[0].mxu0
        %v3175 = vadd.f32 0.0, %v3174
        %v3176 = vpop.f32.mrb[0].mxu0
        %v3177 = vpop.f32.mrb[0].mxu0
        %v3178 = vadd.f32 0.0, %v3177
        %v3179 = vpop.f32.mrb[0].mxu0
        %3180 = vdwg.mxu0
        %v3181 = vadd.f32 %v3012, %v3143
        %v3182 = vadd.f32 %v3013, %v3146
        %v3183 = vadd.f32 %v3014, %v3151
        %v3184 = vadd.f32 %v3015, %v3154
        %v3185 = vadd.f32 %v3016, %v3159
        %v3186 = vadd.f32 %v3017, %v3162
        %v3187 = vadd.f32 %v3018, %v3167
        %v3188 = vadd.f32 %v3019, %v3170
        %v3189 = vadd.f32 %v3020, %v3175
        %v3190 = vadd.f32 %v3021, %v3178
        %v3191 = vld [vmem:[#allocation2 + $0x8] sm:$0xc]
        %v3192 = vld [vmem:[#allocation2 + $0xc] sm:$0xf]
        %v3193 = vld [vmem:[#allocation2 + $0x10] sm:$0xf]
        %v3194 = vld [vmem:[#allocation2 + $0x14] sm:$0xf]
        %v3195 = vld [vmem:[#allocation2 + $0x18] sm:$0xf]
        %v3196 = vld [vmem:[#allocation2 + $0x1c] sm:$0xf]
        %v3197 = vld [vmem:[#allocation2 + $0x20] sm:$0xf]
        %v3198 = vld [vmem:[#allocation2 + $0x24] sm:$0xf]
        %v3199 = vld [vmem:[#allocation2 + $0x28] sm:$0xf]
        %v3200 = vld [vmem:[#allocation2 + $0x2c] sm:$0xf]
        %v3201 = vld [vmem:[#allocation2 + $0x30] sm:$0x3]
        %s3202 = scalar_lea.vmem [#allocation3], 384
        %v3203 = vld [vmem:[%s3202] sm:$0xf]
        %v3204 = vld [vmem:[%s3202 + $0x4] sm:$0xf]
        %v3205 = vld [vmem:[%s3202 + $0x8] sm:$0xf]
        %v3206 = vld [vmem:[%s3202 + $0xc] sm:$0xf]
        %v3207 = vld [vmem:[%s3202 + $0x10] sm:$0xf]
        %v3208 = vld [vmem:[%s3202 + $0x14] sm:$0xf]
        %v3209 = vld [vmem:[%s3202 + $0x18] sm:$0xf]
        %v3210 = vld [vmem:[%s3202 + $0x1c] sm:$0xf]
        %v3211 = vld [vmem:[%s3202 + $0x20] sm:$0xf]
        %v3212 = vld [vmem:[%s3202 + $0x24] sm:$0xf]
        %v3213 = vld [vmem:[%s3202 + $0x28] sm:$0xf]
        %v3214 = vld [vmem:[%s3202 + $0x2c] sm:$0xf]
        %v3215 = vld [vmem:[%s3202 + $0x30] sm:$0xf]
        %v3216 = vld [vmem:[%s3202 + $0x34] sm:$0xf]
        %v3217 = vld [vmem:[%s3202 + $0x38] sm:$0xf]
        %v3218 = vld [vmem:[%s3202 + $0x3c] sm:$0xf]
        %v3230 = vunpack.c.l.b16 %v3191
        %v3231 = vunpack.c.l.b16 %v3192
        %v3232 = vunpack.c.l.b16 %v3193
        %v3233 = vunpack.c.l.b16 %v3194
        %v3234 = vunpack.c.l.b16 %v3195
        %v3235 = vunpack.c.l.b16 %v3196
        %v3236 = vunpack.c.l.b16 %v3197
        %v3237 = vunpack.c.l.b16 %v3198
        %v3238 = vunpack.c.l.b16 %v3199
        %v3239 = vunpack.c.l.b16 %v3200
        %v3240 = vunpack.c.l.b16 %v3201
        %v3241 = vpack.c.b16 %v3231, %v3230
        %v3242 = vpack.c.b16 %v3233, %v3232
        %v3243 = vpack.c.b16 %v3235, %v3234
        %v3244 = vpack.c.b16 %v3237, %v3236
        %v3245 = vpack.c.b16 %v3239, %v3238
        %v3246 = vpack.c.b16 %v3240, %v3240
        %v3247 = vrot.slane %v3241, 2
        %v3248 = vrot.slane %v3242, 2
        %v3249 = vsel %vm3043, %v3247, %v3248
        %v3250 = vrot.slane %v3243, 2
        %v3251 = vsel %vm3043, %v3248, %v3250
        %v3252 = vrot.slane %v3244, 2
        %v3253 = vsel %vm3043, %v3250, %v3252
        %v3254 = vrot.slane %v3245, 2
        %v3255 = vsel %vm3043, %v3252, %v3254
        %v3256 = vrot.slane %v3246, 2
        %v3257 = vsel %vm3043, %v3254, %v3256
        %v3279 = vunpack.c.l.b16 %v3203
        %v3280 = vunpack.c.l.b16 %v3204
        %v3281 = vunpack.c.l.b16 %v3205
        %v3282 = vunpack.c.l.b16 %v3206
        %v3283 = vunpack.c.l.b16 %v3207
        %v3284 = vunpack.c.l.b16 %v3208
        %v3285 = vunpack.c.l.b16 %v3209
        %v3286 = vunpack.c.l.b16 %v3210
        %v3287 = vunpack.c.l.b16 %v3211
        %v3288 = vunpack.c.l.b16 %v3212
        %v3289 = vunpack.c.l.b16 %v3213
        %v3290 = vunpack.c.l.b16 %v3214
        %v3291 = vunpack.c.l.b16 %v3215
        %v3292 = vunpack.c.l.b16 %v3216
        %v3293 = vunpack.c.l.b16 %v3217
        %v3294 = vunpack.c.l.b16 %v3218
        %v3295 = vpack.c.b16 %v3280, %v3279
        %v3296 = vpack.c.b16 %v3282, %v3281
        %v3297 = vpack.c.b16 %v3284, %v3283
        %v3298 = vpack.c.b16 %v3286, %v3285
        %v3299 = vpack.c.b16 %v3288, %v3287
        %v3300 = vpack.c.b16 %v3290, %v3289
        %v3301 = vpack.c.b16 %v3292, %v3291
        %v3302 = vpack.c.b16 %v3294, %v3293
        %3311 = vmatprep.subr.bf16.mxu0 0
        %3312 = vmatpush1.bf16.msra.mxu0 %v3295
        %3313 = vmatprep.subr.bf16.mxu0 0
        %3314 = vmatpush1.bf16.msra.mxu0 %v3296
        %3315 = vmatprep.subr.bf16.mxu0 0
        %3316 = vmatpush1.bf16.msra.mxu0 %v3297
        %3317 = vmatprep.subr.bf16.mxu0 0
        %3318 = vmatpush1.bf16.msra.mxu0 %v3298
        %3319 = vmatprep.subr.bf16.mxu0 0
        %3320 = vmatpush1.bf16.msra.mxu0 %v3299
        %3321 = vmatprep.subr.bf16.mxu0 0
        %3322 = vmatpush1.bf16.msra.mxu0 %v3300
        %3323 = vmatprep.subr.bf16.mxu0 0
        %3324 = vmatpush1.bf16.msra.mxu0 %v3301
        %3325 = vmatprep.subr.bf16.mxu0 0
        %3326 = vmatpush1.bf16.msra.mxu0 %v3302
        %3327 = vmatprep.subr.bf16.mxu0 0
        %3328 = vmatpush1.bf16.msra.mxu0 0
        %3329 = vmatprep.subr.bf16.mxu0 0
        %3330 = vmatpush1.bf16.msra.mxu0 0
        %3331 = vmatprep.subr.bf16.mxu0 0
        %3332 = vmatpush1.bf16.msra.mxu0 0
        %3333 = vmatprep.subr.bf16.mxu0 0
        %3334 = vmatpush1.bf16.msra.mxu0 0
        %3335 = vmatprep.subr.bf16.mxu0 0
        %3336 = vmatpush1.bf16.msra.mxu0 0
        %3337 = vmatprep.subr.bf16.mxu0 0
        %3338 = vmatpush1.bf16.msra.mxu0 0
        %3339 = vmatprep.subr.bf16.mxu0 0
        %3340 = vmatpush1.bf16.msra.mxu0 0
        %3341 = vmatprep.subr.bf16.mxu0 0
        %3342 = vmatpush1.bf16.msra.mxu0 0
        %3343 = vmatprep.mubr.bf16.mxu0 0
        %3344 = vmatmul.mubr.bf16.gmra.mrb[0].mxu0 %v3249
        %v3345 = vpop.f32.mrb[0].mxu0
        %v3346 = vadd.f32 0.0, %v3345
        %v3347 = vpop.f32.mrb[0].mxu0
        %v3348 = vpop.f32.mrb[0].mxu0
        %v3349 = vadd.f32 0.0, %v3348
        %v3350 = vpop.f32.mrb[0].mxu0
        %3351 = vmatprep.mubr.bf16.mxu0 0
        %3352 = vmatmul.mubr.bf16.gmra.mrb[0].mxu0 %v3251
        %v3353 = vpop.f32.mrb[0].mxu0
        %v3354 = vadd.f32 0.0, %v3353
        %v3355 = vpop.f32.mrb[0].mxu0
        %v3356 = vpop.f32.mrb[0].mxu0
        %v3357 = vadd.f32 0.0, %v3356
        %v3358 = vpop.f32.mrb[0].mxu0
        %3359 = vmatprep.mubr.bf16.mxu0 0
        %3360 = vmatmul.mubr.bf16.gmra.mrb[0].mxu0 %v3253
        %v3361 = vpop.f32.mrb[0].mxu0
        %v3362 = vadd.f32 0.0, %v3361
        %v3363 = vpop.f32.mrb[0].mxu0
        %v3364 = vpop.f32.mrb[0].mxu0
        %v3365 = vadd.f32 0.0, %v3364
        %v3366 = vpop.f32.mrb[0].mxu0
        %3367 = vmatprep.mubr.bf16.mxu0 0
        %3368 = vmatmul.mubr.bf16.gmra.mrb[0].mxu0 %v3255
        %v3369 = vpop.f32.mrb[0].mxu0
        %v3370 = vadd.f32 0.0, %v3369
        %v3371 = vpop.f32.mrb[0].mxu0
        %v3372 = vpop.f32.mrb[0].mxu0
        %v3373 = vadd.f32 0.0, %v3372
        %v3374 = vpop.f32.mrb[0].mxu0
        %3375 = vmatprep.mubr.bf16.mxu0 0
        %3376 = vmatmul.mubr.bf16.gmra.mrb[0].mxu0 %v3257
        %v3377 = vpop.f32.mrb[0].mxu0
        %v3378 = vadd.f32 0.0, %v3377
        %v3379 = vpop.f32.mrb[0].mxu0
        %v3380 = vpop.f32.mrb[0].mxu0
        %v3381 = vadd.f32 0.0, %v3380
        %v3382 = vpop.f32.mrb[0].mxu0
        %3383 = vdwg.mxu0
        %v3384 = vadd.f32 %v3181, %v3346
        %v3385 = vadd.f32 %v3182, %v3349
        %v3386 = vadd.f32 %v3183, %v3354
        %v3387 = vadd.f32 %v3184, %v3357
        %v3388 = vadd.f32 %v3185, %v3362
        %v3389 = vadd.f32 %v3186, %v3365
        %v3390 = vadd.f32 %v3187, %v3370
        %v3391 = vadd.f32 %v3188, %v3373
        %v3392 = vadd.f32 %v3189, %v3378
        %v3393 = vadd.f32 %v3190, %v3381
        %v3394 = vld [vmem:[#allocation2 + $0x30] sm:$0x7]
        %s3395 = scalar_lea.vmem [#allocation3], 448
        %v3396 = vld [vmem:[%s3395] sm:$0xf]
        %v3397 = vld [vmem:[%s3395 + $0x4] sm:$0xf]
        %v3398 = vld [vmem:[%s3395 + $0x8] sm:$0xf]
        %v3399 = vld [vmem:[%s3395 + $0xc] sm:$0xf]
        %v3400 = vld [vmem:[%s3395 + $0x10] sm:$0xf]
        %v3401 = vld [vmem:[%s3395 + $0x14] sm:$0xf]
        %v3402 = vld [vmem:[%s3395 + $0x18] sm:$0xf]
        %v3403 = vld [vmem:[%s3395 + $0x1c] sm:$0xf]
        %v3404 = vld [vmem:[%s3395 + $0x20] sm:$0xf]
        %v3405 = vld [vmem:[%s3395 + $0x24] sm:$0xf]
        %v3406 = vld [vmem:[%s3395 + $0x28] sm:$0xf]
        %v3407 = vld [vmem:[%s3395 + $0x2c] sm:$0xf]
        %v3408 = vld [vmem:[%s3395 + $0x30] sm:$0xf]
        %v3409 = vld [vmem:[%s3395 + $0x34] sm:$0xf]
        %v3410 = vld [vmem:[%s3395 + $0x38] sm:$0xf]
        %v3411 = vld [vmem:[%s3395 + $0x3c] sm:$0xf]
        %v3413 = vunpack.c.l.b16 %v3394
        %v3414 = vpack.c.b16 %v3413, %v3413
        %vm3415 = vsmask.f32 5376
        %v3417 = vshrl.u32 %v3241, 16
        %v3419 = vrot.slane %v3417, 2
        %v3420 = vshll.u32 %v3241, 16
        %v3422 = vrot.slane %v3420, 3
        %v3423 = vor.u32 %v3419, %v3422
        %v3425 = vshrl.u32 %v3242, 16
        %v3427 = vrot.slane %v3425, 2
        %v3428 = vshll.u32 %v3242, 16
        %v3430 = vrot.slane %v3428, 3
        %v3431 = vor.u32 %v3427, %v3430
        %v3432 = vsel %vm3415, %v3423, %v3431
        %v3434 = vshrl.u32 %v3243, 16
        %v3436 = vrot.slane %v3434, 2
        %v3437 = vshll.u32 %v3243, 16
        %v3439 = vrot.slane %v3437, 3
        %v3440 = vor.u32 %v3436, %v3439
        %v3441 = vsel %vm3415, %v3431, %v3440
        %v3443 = vshrl.u32 %v3244, 16
        %v3445 = vrot.slane %v3443, 2
        %v3446 = vshll.u32 %v3244, 16
        %v3448 = vrot.slane %v3446, 3
        %v3449 = vor.u32 %v3445, %v3448
        %v3450 = vsel %vm3415, %v3440, %v3449
        %v3452 = vshrl.u32 %v3245, 16
        %v3454 = vrot.slane %v3452, 2
        %v3455 = vshll.u32 %v3245, 16
        %v3457 = vrot.slane %v3455, 3
        %v3458 = vor.u32 %v3454, %v3457
        %v3459 = vsel %vm3415, %v3449, %v3458
        %v3461 = vshrl.u32 %v3414, 16
        %v3463 = vrot.slane %v3461, 2
        %v3464 = vshll.u32 %v3414, 16
        %v3466 = vrot.slane %v3464, 3
        %v3467 = vor.u32 %v3463, %v3466
        %v3468 = vsel %vm3415, %v3458, %v3467
        %v3490 = vunpack.c.l.b16 %v3396
        %v3491 = vunpack.c.l.b16 %v3397
        %v3492 = vunpack.c.l.b16 %v3398
        %v3493 = vunpack.c.l.b16 %v3399
        %v3494 = vunpack.c.l.b16 %v3400
        %v3495 = vunpack.c.l.b16 %v3401
        %v3496 = vunpack.c.l.b16 %v3402
        %v3497 = vunpack.c.l.b16 %v3403
        %v3498 = vunpack.c.l.b16 %v3404
        %v3499 = vunpack.c.l.b16 %v3405
        %v3500 = vunpack.c.l.b16 %v3406
        %v3501 = vunpack.c.l.b16 %v3407
        %v3502 = vunpack.c.l.b16 %v3408
        %v3503 = vunpack.c.l.b16 %v3409
        %v3504 = vunpack.c.l.b16 %v3410
        %v3505 = vunpack.c.l.b16 %v3411
        %v3506 = vpack.c.b16 %v3491, %v3490
        %v3507 = vpack.c.b16 %v3493, %v3492
        %v3508 = vpack.c.b16 %v3495, %v3494
        %v3509 = vpack.c.b16 %v3497, %v3496
        %v3510 = vpack.c.b16 %v3499, %v3498
        %v3511 = vpack.c.b16 %v3501, %v3500
        %v3512 = vpack.c.b16 %v3503, %v3502
        %v3513 = vpack.c.b16 %v3505, %v3504
        %3522 = vmatprep.subr.bf16.mxu0 0
        %3523 = vmatpush1.bf16.msra.mxu0 %v3506
        %3524 = vmatprep.subr.bf16.mxu0 0
        %3525 = vmatpush1.bf16.msra.mxu0 %v3507
        %3526 = vmatprep.subr.bf16.mxu0 0
        %3527 = vmatpush1.bf16.msra.mxu0 %v3508
        %3528 = vmatprep.subr.bf16.mxu0 0
        %3529 = vmatpush1.bf16.msra.mxu0 %v3509
        %3530 = vmatprep.subr.bf16.mxu0 0
        %3531 = vmatpush1.bf16.msra.mxu0 %v3510
        %3532 = vmatprep.subr.bf16.mxu0 0
        %3533 = vmatpush1.bf16.msra.mxu0 %v3511
        %3534 = vmatprep.subr.bf16.mxu0 0
        %3535 = vmatpush1.bf16.msra.mxu0 %v3512
        %3536 = vmatprep.subr.bf16.mxu0 0
        %3537 = vmatpush1.bf16.msra.mxu0 %v3513
        %3538 = vmatprep.subr.bf16.mxu0 0
        %3539 = vmatpush1.bf16.msra.mxu0 0
        %3540 = vmatprep.subr.bf16.mxu0 0
        %3541 = vmatpush1.bf16.msra.mxu0 0
        %3542 = vmatprep.subr.bf16.mxu0 0
        %3543 = vmatpush1.bf16.msra.mxu0 0
        %3544 = vmatprep.subr.bf16.mxu0 0
        %3545 = vmatpush1.bf16.msra.mxu0 0
        %3546 = vmatprep.subr.bf16.mxu0 0
        %3547 = vmatpush1.bf16.msra.mxu0 0
        %3548 = vmatprep.subr.bf16.mxu0 0
        %3549 = vmatpush1.bf16.msra.mxu0 0
        %3550 = vmatprep.subr.bf16.mxu0 0
        %3551 = vmatpush1.bf16.msra.mxu0 0
        %3552 = vmatprep.subr.bf16.mxu0 0
        %3553 = vmatpush1.bf16.msra.mxu0 0
        %3554 = vmatprep.mubr.bf16.mxu0 0
        %3555 = vmatmul.mubr.bf16.gmra.mrb[0].mxu0 %v3432
        %v3556 = vpop.f32.mrb[0].mxu0
        %v3557 = vadd.f32 0.0, %v3556
        %v3558 = vpop.f32.mrb[0].mxu0
        %v3559 = vpop.f32.mrb[0].mxu0
        %v3560 = vadd.f32 0.0, %v3559
        %v3561 = vpop.f32.mrb[0].mxu0
        %3562 = vmatprep.mubr.bf16.mxu0 0
        %3563 = vmatmul.mubr.bf16.gmra.mrb[0].mxu0 %v3441
        %v3564 = vpop.f32.mrb[0].mxu0
        %v3565 = vadd.f32 0.0, %v3564
        %v3566 = vpop.f32.mrb[0].mxu0
        %v3567 = vpop.f32.mrb[0].mxu0
        %v3568 = vadd.f32 0.0, %v3567
        %v3569 = vpop.f32.mrb[0].mxu0
        %3570 = vmatprep.mubr.bf16.mxu0 0
        %3571 = vmatmul.mubr.bf16.gmra.mrb[0].mxu0 %v3450
        %v3572 = vpop.f32.mrb[0].mxu0
        %v3573 = vadd.f32 0.0, %v3572
        %v3574 = vpop.f32.mrb[0].mxu0
        %v3575 = vpop.f32.mrb[0].mxu0
        %v3576 = vadd.f32 0.0, %v3575
        %v3577 = vpop.f32.mrb[0].mxu0
        %3578 = vmatprep.mubr.bf16.mxu0 0
        %3579 = vmatmul.mubr.bf16.gmra.mrb[0].mxu0 %v3459
        %v3580 = vpop.f32.mrb[0].mxu0
        %v3581 = vadd.f32 0.0, %v3580
        %v3582 = vpop.f32.mrb[0].mxu0
        %v3583 = vpop.f32.mrb[0].mxu0
        %v3584 = vadd.f32 0.0, %v3583
        %v3585 = vpop.f32.mrb[0].mxu0
        %3586 = vmatprep.mubr.bf16.mxu0 0
        %3587 = vmatmul.mubr.bf16.gmra.mrb[0].mxu0 %v3468
        %v3588 = vpop.f32.mrb[0].mxu0
        %v3589 = vadd.f32 0.0, %v3588
        %v3590 = vpop.f32.mrb[0].mxu0
        %v3591 = vpop.f32.mrb[0].mxu0
        %v3592 = vadd.f32 0.0, %v3591
        %v3593 = vpop.f32.mrb[0].mxu0
        %3594 = vdwg.mxu0
        %v3595 = vadd.f32 %v3384, %v3557
        %v3596 = vadd.f32 %v3385, %v3560
        %v3597 = vadd.f32 %v3386, %v3565
        %v3598 = vadd.f32 %v3387, %v3568
        %v3599 = vadd.f32 %v3388, %v3573
        %v3600 = vadd.f32 %v3389, %v3576
        %v3601 = vadd.f32 %v3390, %v3581
        %v3602 = vadd.f32 %v3391, %v3584
        %v3603 = vadd.f32 %v3392, %v3589
        %v3604 = vadd.f32 %v3393, %v3592
        %v3605 = vld [vmem:[#allocation2 + $0x8] sm:$0x8]
        %s3606 = scalar_lea.vmem [#allocation3], 512
        %v3607 = vld [vmem:[%s3606] sm:$0xf]
        %v3608 = vld [vmem:[%s3606 + $0x4] sm:$0xf]
        %v3609 = vld [vmem:[%s3606 + $0x8] sm:$0xf]
        %v3610 = vld [vmem:[%s3606 + $0xc] sm:$0xf]
        %v3611 = vld [vmem:[%s3606 + $0x10] sm:$0xf]
        %v3612 = vld [vmem:[%s3606 + $0x14] sm:$0xf]
        %v3613 = vld [vmem:[%s3606 + $0x18] sm:$0xf]
        %v3614 = vld [vmem:[%s3606 + $0x1c] sm:$0xf]
        %v3615 = vld [vmem:[%s3606 + $0x20] sm:$0xf]
        %v3616 = vld [vmem:[%s3606 + $0x24] sm:$0xf]
        %v3617 = vld [vmem:[%s3606 + $0x28] sm:$0xf]
        %v3618 = vld [vmem:[%s3606 + $0x2c] sm:$0xf]
        %v3619 = vld [vmem:[%s3606 + $0x30] sm:$0xf]
        %v3620 = vld [vmem:[%s3606 + $0x34] sm:$0xf]
        %v3621 = vld [vmem:[%s3606 + $0x38] sm:$0xf]
        %v3622 = vld [vmem:[%s3606 + $0x3c] sm:$0xf]
        %v3624 = vunpack.c.l.b16 %v3605
        %v3625 = vpack.c.b16 %v3231, %v3624
        %vm3626 = vcmask 1044480
        %v3627 = vrot.slane %v3625, 3
        %v3628 = vrot.slane %v3242, 3
        %v3629 = vsel %vm3626, %v3627, %v3628
        %v3630 = vrot.slane %v3243, 3
        %v3631 = vsel %vm3626, %v3628, %v3630
        %v3632 = vrot.slane %v3244, 3
        %v3633 = vsel %vm3626, %v3630, %v3632
        %v3634 = vrot.slane %v3245, 3
        %v3635 = vsel %vm3626, %v3632, %v3634
        %v3636 = vrot.slane %v3414, 3
        %v3637 = vsel %vm3626, %v3634, %v3636
        %v3659 = vunpack.c.l.b16 %v3607
        %v3660 = vunpack.c.l.b16 %v3608
        %v3661 = vunpack.c.l.b16 %v3609
        %v3662 = vunpack.c.l.b16 %v3610
        %v3663 = vunpack.c.l.b16 %v3611
        %v3664 = vunpack.c.l.b16 %v3612
        %v3665 = vunpack.c.l.b16 %v3613
        %v3666 = vunpack.c.l.b16 %v3614
        %v3667 = vunpack.c.l.b16 %v3615
        %v3668 = vunpack.c.l.b16 %v3616
        %v3669 = vunpack.c.l.b16 %v3617
        %v3670 = vunpack.c.l.b16 %v3618
        %v3671 = vunpack.c.l.b16 %v3619
        %v3672 = vunpack.c.l.b16 %v3620
        %v3673 = vunpack.c.l.b16 %v3621
        %v3674 = vunpack.c.l.b16 %v3622
        %v3675 = vpack.c.b16 %v3660, %v3659
        %v3676 = vpack.c.b16 %v3662, %v3661
        %v3677 = vpack.c.b16 %v3664, %v3663
        %v3678 = vpack.c.b16 %v3666, %v3665
        %v3679 = vpack.c.b16 %v3668, %v3667
        %v3680 = vpack.c.b16 %v3670, %v3669
        %v3681 = vpack.c.b16 %v3672, %v3671
        %v3682 = vpack.c.b16 %v3674, %v3673
        %3691 = vmatprep.subr.bf16.mxu0 0
        %3692 = vmatpush1.bf16.msra.mxu0 %v3675
        %3693 = vmatprep.subr.bf16.mxu0 0
        %3694 = vmatpush1.bf16.msra.mxu0 %v3676
        %3695 = vmatprep.subr.bf16.mxu0 0
        %3696 = vmatpush1.bf16.msra.mxu0 %v3677
        %3697 = vmatprep.subr.bf16.mxu0 0
        %3698 = vmatpush1.bf16.msra.mxu0 %v3678
        %3699 = vmatprep.subr.bf16.mxu0 0
        %3700 = vmatpush1.bf16.msra.mxu0 %v3679
        %3701 = vmatprep.subr.bf16.mxu0 0
        %3702 = vmatpush1.bf16.msra.mxu0 %v3680
        %3703 = vmatprep.subr.bf16.mxu0 0
        %3704 = vmatpush1.bf16.msra.mxu0 %v3681
        %3705 = vmatprep.subr.bf16.mxu0 0
        %3706 = vmatpush1.bf16.msra.mxu0 %v3682
        %3707 = vmatprep.subr.bf16.mxu0 0
        %3708 = vmatpush1.bf16.msra.mxu0 0
        %3709 = vmatprep.subr.bf16.mxu0 0
        %3710 = vmatpush1.bf16.msra.mxu0 0
        %3711 = vmatprep.subr.bf16.mxu0 0
        %3712 = vmatpush1.bf16.msra.mxu0 0
        %3713 = vmatprep.subr.bf16.mxu0 0
        %3714 = vmatpush1.bf16.msra.mxu0 0
        %3715 = vmatprep.subr.bf16.mxu0 0
        %3716 = vmatpush1.bf16.msra.mxu0 0
        %3717 = vmatprep.subr.bf16.mxu0 0
        %3718 = vmatpush1.bf16.msra.mxu0 0
        %3719 = vmatprep.subr.bf16.mxu0 0
        %3720 = vmatpush1.bf16.msra.mxu0 0
        %3721 = vmatprep.subr.bf16.mxu0 0
        %3722 = vmatpush1.bf16.msra.mxu0 0
        %3723 = vmatprep.mubr.bf16.mxu0 0
        %3724 = vmatmul.mubr.bf16.gmra.mrb[0].mxu0 %v3629
        %v3725 = vpop.f32.mrb[0].mxu0
        %v3726 = vadd.f32 0.0, %v3725
        %v3727 = vpop.f32.mrb[0].mxu0
        %v3728 = vpop.f32.mrb[0].mxu0
        %v3729 = vadd.f32 0.0, %v3728
        %v3730 = vpop.f32.mrb[0].mxu0
        %3731 = vmatprep.mubr.bf16.mxu0 0
        %3732 = vmatmul.mubr.bf16.gmra.mrb[0].mxu0 %v3631
        %v3733 = vpop.f32.mrb[0].mxu0
        %v3734 = vadd.f32 0.0, %v3733
        %v3735 = vpop.f32.mrb[0].mxu0
        %v3736 = vpop.f32.mrb[0].mxu0
        %v3737 = vadd.f32 0.0, %v3736
        %v3738 = vpop.f32.mrb[0].mxu0
        %3739 = vmatprep.mubr.bf16.mxu0 0
        %3740 = vmatmul.mubr.bf16.gmra.mrb[0].mxu0 %v3633
        %v3741 = vpop.f32.mrb[0].mxu0
        %v3742 = vadd.f32 0.0, %v3741
        %v3743 = vpop.f32.mrb[0].mxu0
        %v3744 = vpop.f32.mrb[0].mxu0
        %v3745 = vadd.f32 0.0, %v3744
        %v3746 = vpop.f32.mrb[0].mxu0
        %3747 = vmatprep.mubr.bf16.mxu0 0
        %3748 = vmatmul.mubr.bf16.gmra.mrb[0].mxu0 %v3635
        %v3749 = vpop.f32.mrb[0].mxu0
        %v3750 = vadd.f32 0.0, %v3749
        %v3751 = vpop.f32.mrb[0].mxu0
        %v3752 = vpop.f32.mrb[0].mxu0
        %v3753 = vadd.f32 0.0, %v3752
        %v3754 = vpop.f32.mrb[0].mxu0
        %3755 = vmatprep.mubr.bf16.mxu0 0
        %3756 = vmatmul.mubr.bf16.gmra.mrb[0].mxu0 %v3637
        %v3757 = vpop.f32.mrb[0].mxu0
        %v3758 = vadd.f32 0.0, %v3757
        %v3759 = vpop.f32.mrb[0].mxu0
        %v3760 = vpop.f32.mrb[0].mxu0
        %v3761 = vadd.f32 0.0, %v3760
        %v3762 = vpop.f32.mrb[0].mxu0
        %3763 = vdwg.mxu0
        %v3764 = vadd.f32 %v3595, %v3726
        %v3765 = vadd.f32 %v3596, %v3729
        %v3766 = vadd.f32 %v3597, %v3734
        %v3767 = vadd.f32 %v3598, %v3737
        %v3768 = vadd.f32 %v3599, %v3742
        %v3769 = vadd.f32 %v3600, %v3745
        %v3770 = vadd.f32 %v3601, %v3750
        %v3771 = vadd.f32 %v3602, %v3753
        %v3772 = vadd.f32 %v3603, %v3758
        %v3773 = vadd.f32 %v3604, %v3761
        %v3774 = vmul.f32 %v3764, %v280
        %v3775 = vmul.f32 %v3765, %v285
        %v3776 = vmul.f32 %v3766, %v290
        %v3777 = vmul.f32 %v3767, %v295
        %v3778 = vmul.f32 %v3768, %v300
        %v3779 = vmul.f32 %v3769, %v305
        %v3780 = vmul.f32 %v3770, %v310
        %v3781 = vmul.f32 %v3771, %v315
        %v3782 = vmul.f32 %v3772, %v320
        %v3783 = vmul.f32 %v3773, %v325
        %v3784 = vadd.f32 %v3774, %v3775
        %v3785 = vadd.f32 %v3784, %v3776
        %v3786 = vadd.f32 %v3785, %v3777
        %v3787 = vadd.f32 %v3786, %v3778
        %v3788 = vadd.f32 %v3787, %v3779
        %v3789 = vadd.f32 %v3788, %v3780
        %v3790 = vadd.f32 %v3789, %v3781
        %v3791 = vadd.f32 %v3790, %v3782
        %v3792 = vadd.f32 %v3791, %v3783
        %v3793 = vrot.slane %v3792, 4
        %v3794 = vadd.f32 %v3792, %v3793
        %v3795 = vrot.slane %v3794, 2
        %v3796 = vadd.f32 %v3794, %v3795
        %v3797 = vrot.slane %v3796, 1
        %v3798 = vadd.f32 %v3796, %v3797
        %v3799 = vmul.f32 %v3774, %v3774
        %v3800 = vmul.f32 %v3775, %v3775
        %v3801 = vmul.f32 %v3776, %v3776
        %v3802 = vmul.f32 %v3777, %v3777
        %v3803 = vmul.f32 %v3778, %v3778
        %v3804 = vmul.f32 %v3779, %v3779
        %v3805 = vmul.f32 %v3780, %v3780
        %v3806 = vmul.f32 %v3781, %v3781
        %v3807 = vmul.f32 %v3782, %v3782
        %v3808 = vmul.f32 %v3783, %v3783
        %v3809 = vadd.f32 %v3799, %v3800
        %v3810 = vadd.f32 %v3809, %v3801
        %v3811 = vadd.f32 %v3810, %v3802
        %v3812 = vadd.f32 %v3811, %v3803
        %v3813 = vadd.f32 %v3812, %v3804
        %v3814 = vadd.f32 %v3813, %v3805
        %v3815 = vadd.f32 %v3814, %v3806
        %v3816 = vadd.f32 %v3815, %v3807
        %v3817 = vadd.f32 %v3816, %v3808
        %v3818 = vrot.slane %v3817, 4
        %v3819 = vadd.f32 %v3817, %v3818
        %v3820 = vrot.slane %v3819, 2
        %v3821 = vadd.f32 %v3819, %v3820
        %v3822 = vrot.slane %v3821, 1
        %v3823 = vadd.f32 %v3821, %v3822
        %v3824 = vmul.f32 %v3798, %v333
        %v3825 = vsel %vm1767, %v3824, 0.0
        %3826 = vadd.xlane.f32.xlu0 %v3825
        %v3827 = vpop.xlane.xlu0 %3826
        %v3828 = vrot.slane %v3827, 4
        %v3829 = vadd.f32 %v3827, %v3828
        %v3830 = vrot.slane %v3829, 2
        %v3831 = vadd.f32 %v3829, %v3830
        %v3832 = vrot.slane %v3831, 1
        %v3833 = vadd.f32 %v3831, %v3832
        %s3834 = vtos %v3833
        %s3835 = smul.f32 %s3834, 0.00390625
        %v3836 = vmul.f32 %v3823, %v333
        %v3837 = vsel %vm1767, %v3836, 0.0
        %3838 = vadd.xlane.f32.xlu0 %v3837
        %v3839 = vpop.xlane.xlu0 %3838
        %v3840 = vrot.slane %v3839, 4
        %v3841 = vadd.f32 %v3839, %v3840
        %v3842 = vrot.slane %v3841, 2
        %v3843 = vadd.f32 %v3841, %v3842
        %v3844 = vrot.slane %v3843, 1
        %v3845 = vadd.f32 %v3843, %v3844
        %s3846 = vtos %v3845
        %s3847 = smul.f32 %s3846, 0.00390625
        %v3848 = vstv %s3835
        %v3849 = vmul.f32 %v3848, %v333
        %v3850 = vadd.f32 %v3849, 0.0
        %s3851 = smul.f32 %s3835, %s3835
        %s3852 = ssub.f32 %s3847, %s3851
        %v3853 = vstv %s3852
        %v3854 = vmul.f32 %v3853, %v333
        %v3855 = vadd.f32 %v3854, 0.0
        %v3856 = vmul.f32 %v3798, %v338
        %v3857 = vsel %vm1767, %v3856, 0.0
        %3858 = vadd.xlane.f32.xlu0 %v3857
        %v3859 = vpop.xlane.xlu0 %3858
        %v3860 = vrot.slane %v3859, 4
        %v3861 = vadd.f32 %v3859, %v3860
        %v3862 = vrot.slane %v3861, 2
        %v3863 = vadd.f32 %v3861, %v3862
        %v3864 = vrot.slane %v3863, 1
        %v3865 = vadd.f32 %v3863, %v3864
        %s3866 = vtos %v3865
        %s3867 = smul.f32 %s3866, 0.00390625
        %v3868 = vmul.f32 %v3823, %v338
        %v3869 = vsel %vm1767, %v3868, 0.0
        %3870 = vadd.xlane.f32.xlu0 %v3869
        %v3871 = vpop.xlane.xlu0 %3870
        %v3872 = vrot.slane %v3871, 4
        %v3873 = vadd.f32 %v3871, %v3872
        %v3874 = vrot.slane %v3873, 2
        %v3875 = vadd.f32 %v3873, %v3874
        %v3876 = vrot.slane %v3875, 1
        %v3877 = vadd.f32 %v3875, %v3876
        %s3878 = vtos %v3877
        %s3879 = smul.f32 %s3878, 0.00390625
        %v3880 = vstv %s3867
        %v3881 = vmul.f32 %v3880, %v338
        %v3882 = vadd.f32 %v3850, %v3881
        %s3883 = smul.f32 %s3867, %s3867
        %s3884 = ssub.f32 %s3879, %s3883
        %v3885 = vstv %s3884
        %v3886 = vmul.f32 %v3885, %v338
        %v3887 = vadd.f32 %v3855, %v3886
        %v3888 = vsub.f32 %v3774, %v3882
        %v3889 = vsub.f32 %v3775, %v3882
        %v3890 = vsub.f32 %v3776, %v3882
        %v3891 = vsub.f32 %v3777, %v3882
        %v3892 = vsub.f32 %v3778, %v3882
        %v3893 = vsub.f32 %v3779, %v3882
        %v3894 = vsub.f32 %v3780, %v3882
        %v3895 = vsub.f32 %v3781, %v3882
        %v3896 = vsub.f32 %v3782, %v3882
        %v3897 = vsub.f32 %v3783, %v3882
        %v3898 = vadd.f32 %v3887, 1e-05
        %v3899 = vrsqrt.pop %v3898
        %v3900 = vmul.f32 %v3888, %v3899
        %v3901 = vmul.f32 %v3889, %v3899
        %v3902 = vmul.f32 %v3890, %v3899
        %v3903 = vmul.f32 %v3891, %v3899
        %v3904 = vmul.f32 %v3892, %v3899
        %v3905 = vmul.f32 %v3893, %v3899
        %v3906 = vmul.f32 %v3894, %v3899
        %v3907 = vmul.f32 %v3895, %v3899
        %v3908 = vmul.f32 %v3896, %v3899
        %v3909 = vmul.f32 %v3897, %v3899
        %v3910 = vlaneseq
        %v3911 = vshrl.u32 %v3910, 7
        %v3912 = vsub.s32 2, %v3911
        %v3913 = vrot.slane %v266, %v3912
        %v3914 = vmul.f32 %v3900, %v3913
        %v3915 = vmul.f32 %v3901, %v3913
        %v3916 = vmul.f32 %v3902, %v3913
        %v3917 = vmul.f32 %v3903, %v3913
        %v3918 = vmul.f32 %v3904, %v3913
        %v3919 = vmul.f32 %v3905, %v3913
        %v3920 = vmul.f32 %v3906, %v3913
        %v3921 = vmul.f32 %v3907, %v3913
        %v3922 = vmul.f32 %v3908, %v3913
        %v3923 = vmul.f32 %v3909, %v3913
        %v3924 = vlaneseq
        %v3925 = vshrl.u32 %v3924, 7
        %v3926 = vsub.s32 3, %v3925
        %v3927 = vrot.slane %v266, %v3926
        %v3928 = vadd.f32 %v3914, %v3927
        %v3929 = vadd.f32 %v3915, %v3927
        %v3930 = vadd.f32 %v3916, %v3927
        %v3931 = vadd.f32 %v3917, %v3927
        %v3932 = vadd.f32 %v3918, %v3927
        %v3933 = vadd.f32 %v3919, %v3927
        %v3934 = vadd.f32 %v3920, %v3927
        %v3935 = vadd.f32 %v3921, %v3927
        %v3936 = vadd.f32 %v3922, %v3927
        %v3937 = vadd.f32 %v3923, %v3927
        %v3938 = vld [vmem:[%s923] sm:$0xf]
        %v3939 = vld [vmem:[%s923 + $0x4] sm:$0xf]
        %v3940 = vld [vmem:[%s923 + $0x8] sm:$0xf]
        %v3941 = vld [vmem:[%s923 + $0xc] sm:$0xf]
        %v3942 = vld [vmem:[%s923 + $0x10] sm:$0xf]
        %v3943 = vld [vmem:[%s923 + $0x14] sm:$0xf]
        %v3944 = vld [vmem:[%s923 + $0x18] sm:$0xf]
        %v3945 = vld [vmem:[%s923 + $0x1c] sm:$0xf]
        %v3946 = vld [vmem:[%s923 + $0x20] sm:$0xf]
        %v3947 = vld [vmem:[%s923 + $0x24] sm:$0xf]
        %v3948 = vld [vmem:[%s4] sm:$0x3]
        %v3959 = vunpack.c.l.b16 %v3938
        %v3960 = vunpack.c.l.b16 %v3939
        %v3961 = vunpack.c.l.b16 %v3940
        %v3962 = vunpack.c.l.b16 %v3941
        %v3963 = vunpack.c.l.b16 %v3942
        %v3964 = vunpack.c.l.b16 %v3943
        %v3965 = vunpack.c.l.b16 %v3944
        %v3966 = vunpack.c.l.b16 %v3945
        %v3967 = vunpack.c.l.b16 %v3946
        %v3968 = vunpack.c.l.b16 %v3947
        %v3969 = vpack.c.b16 %v3960, %v3959
        %v3970 = vpack.c.b16 %v3962, %v3961
        %v3971 = vpack.c.b16 %v3964, %v3963
        %v3972 = vpack.c.b16 %v3966, %v3965
        %v3973 = vpack.c.b16 %v3968, %v3967
        %v3975 = vsel %vm388, %v3969, 0
        %v3978 = vsel %vm388, %v3970, 0
        %v3981 = vsel %vm388, %v3971, 0
        %v3984 = vsel %vm388, %v3972, 0
        %v3987 = vsel %vm388, %v3973, 0
        %v3990 = vsel %vm404, %v3948, 0
        %3992 = vmatprep.subr.bf16.mxu0 0
        %3993 = vmatpush1.bf16.msra.mxu0 %v3990
        %3994 = vmatprep.subr.bf16.mxu0 0
        %3995 = vmatpush1.bf16.msra.mxu0 0
        %3996 = vmatprep.subr.bf16.mxu0 0
        %3997 = vmatpush1.bf16.msra.mxu0 0
        %3998 = vmatprep.subr.bf16.mxu0 0
        %3999 = vmatpush1.bf16.msra.mxu0 0
        %4000 = vmatprep.subr.bf16.mxu0 0
        %4001 = vmatpush1.bf16.msra.mxu0 0
        %4002 = vmatprep.subr.bf16.mxu0 0
        %4003 = vmatpush1.bf16.msra.mxu0 0
        %4004 = vmatprep.subr.bf16.mxu0 0
        %4005 = vmatpush1.bf16.msra.mxu0 0
        %4006 = vmatprep.subr.bf16.mxu0 0
        %4007 = vmatpush1.bf16.msra.mxu0 0
        %4008 = vmatprep.subr.bf16.mxu0 0
        %4009 = vmatpush1.bf16.msra.mxu0 0
        %4010 = vmatprep.subr.bf16.mxu0 0
        %4011 = vmatpush1.bf16.msra.mxu0 0
        %4012 = vmatprep.subr.bf16.mxu0 0
        %4013 = vmatpush1.bf16.msra.mxu0 0
        %4014 = vmatprep.subr.bf16.mxu0 0
        %4015 = vmatpush1.bf16.msra.mxu0 0
        %4016 = vmatprep.subr.bf16.mxu0 0
        %4017 = vmatpush1.bf16.msra.mxu0 0
        %4018 = vmatprep.subr.bf16.mxu0 0
        %4019 = vmatpush1.bf16.msra.mxu0 0
        %4020 = vmatprep.subr.bf16.mxu0 0
        %4021 = vmatpush1.bf16.msra.mxu0 0
        %4022 = vmatprep.subr.bf16.mxu0 0
        %4023 = vmatpush1.bf16.msra.mxu0 0
        %4024 = vmatprep.mubr.bf16.mxu0 0
        %4025 = vmatmul.mubr.bf16.gmra.mrb[0].mxu0 %v3975
        %v4026 = vpop.f32.mrb[0].mxu0
        %v4027 = vadd.f32 0.0, %v4026
        %v4028 = vpop.f32.mrb[0].mxu0
        %v4029 = vpop.f32.mrb[0].mxu0
        %v4030 = vadd.f32 0.0, %v4029
        %v4031 = vpop.f32.mrb[0].mxu0
        %4032 = vmatprep.mubr.bf16.mxu0 0
        %4033 = vmatmul.mubr.bf16.gmra.mrb[0].mxu0 %v3978
        %v4034 = vpop.f32.mrb[0].mxu0
        %v4035 = vadd.f32 0.0, %v4034
        %v4036 = vpop.f32.mrb[0].mxu0
        %v4037 = vpop.f32.mrb[0].mxu0
        %v4038 = vadd.f32 0.0, %v4037
        %v4039 = vpop.f32.mrb[0].mxu0
        %4040 = vmatprep.mubr.bf16.mxu0 0
        %4041 = vmatmul.mubr.bf16.gmra.mrb[0].mxu0 %v3981
        %v4042 = vpop.f32.mrb[0].mxu0
        %v4043 = vadd.f32 0.0, %v4042
        %v4044 = vpop.f32.mrb[0].mxu0
        %v4045 = vpop.f32.mrb[0].mxu0
        %v4046 = vadd.f32 0.0, %v4045
        %v4047 = vpop.f32.mrb[0].mxu0
        %4048 = vmatprep.mubr.bf16.mxu0 0
        %4049 = vmatmul.mubr.bf16.gmra.mrb[0].mxu0 %v3984
        %v4050 = vpop.f32.mrb[0].mxu0
        %v4051 = vadd.f32 0.0, %v4050
        %v4052 = vpop.f32.mrb[0].mxu0
        %v4053 = vpop.f32.mrb[0].mxu0
        %v4054 = vadd.f32 0.0, %v4053
        %v4055 = vpop.f32.mrb[0].mxu0
        %4056 = vmatprep.mubr.bf16.mxu0 0
        %4057 = vmatmul.mubr.bf16.gmra.mrb[0].mxu0 %v3987
        %v4058 = vpop.f32.mrb[0].mxu0
        %v4059 = vadd.f32 0.0, %v4058
        %v4060 = vpop.f32.mrb[0].mxu0
        %v4061 = vpop.f32.mrb[0].mxu0
        %v4062 = vadd.f32 0.0, %v4061
        %v4063 = vpop.f32.mrb[0].mxu0
        %4064 = vdwg.mxu0
        %v4065 = vadd.f32 %v4027, %v4030
        %v4066 = vadd.f32 %v4065, %v4035
        %v4067 = vadd.f32 %v4066, %v4038
        %v4068 = vadd.f32 %v4067, %v4043
        %v4069 = vadd.f32 %v4068, %v4046
        %v4070 = vadd.f32 %v4069, %v4051
        %v4071 = vadd.f32 %v4070, %v4054
        %v4072 = vadd.f32 %v4071, %v4059
        %v4073 = vadd.f32 %v4072, %v4062
        %v4074 = vrot.slane %v4073, 4
        %v4075 = vadd.f32 %v4073, %v4074
        %v4076 = vrot.slane %v4075, 2
        %v4077 = vadd.f32 %v4075, %v4076
        %v4078 = vrot.slane %v4077, 1
        %v4079 = vadd.f32 %v4077, %v4078
        %v4080 = vmul.f32 %v4027, %v4027
        %v4081 = vmul.f32 %v4030, %v4030
        %v4082 = vmul.f32 %v4035, %v4035
        %v4083 = vmul.f32 %v4038, %v4038
        %v4084 = vmul.f32 %v4043, %v4043
        %v4085 = vmul.f32 %v4046, %v4046
        %v4086 = vmul.f32 %v4051, %v4051
        %v4087 = vmul.f32 %v4054, %v4054
        %v4088 = vmul.f32 %v4059, %v4059
        %v4089 = vmul.f32 %v4062, %v4062
        %v4090 = vadd.f32 %v4080, %v4081
        %v4091 = vadd.f32 %v4090, %v4082
        %v4092 = vadd.f32 %v4091, %v4083
        %v4093 = vadd.f32 %v4092, %v4084
        %v4094 = vadd.f32 %v4093, %v4085
        %v4095 = vadd.f32 %v4094, %v4086
        %v4096 = vadd.f32 %v4095, %v4087
        %v4097 = vadd.f32 %v4096, %v4088
        %v4098 = vadd.f32 %v4097, %v4089
        %v4099 = vrot.slane %v4098, 4
        %v4100 = vadd.f32 %v4098, %v4099
        %v4101 = vrot.slane %v4100, 2
        %v4102 = vadd.f32 %v4100, %v4101
        %v4103 = vrot.slane %v4102, 1
        %v4104 = vadd.f32 %v4102, %v4103
        %v4105 = vmul.f32 %v4079, %v333
        %v4106 = vsel %vm1767, %v4105, 0.0
        %4107 = vadd.xlane.f32.xlu0 %v4106
        %v4108 = vpop.xlane.xlu0 %4107
        %v4109 = vrot.slane %v4108, 4
        %v4110 = vadd.f32 %v4108, %v4109
        %v4111 = vrot.slane %v4110, 2
        %v4112 = vadd.f32 %v4110, %v4111
        %v4113 = vrot.slane %v4112, 1
        %v4114 = vadd.f32 %v4112, %v4113
        %s4115 = vtos %v4114
        %s4116 = smul.f32 %s4115, 0.00390625
        %v4117 = vmul.f32 %v4104, %v333
        %v4118 = vsel %vm1767, %v4117, 0.0
        %4119 = vadd.xlane.f32.xlu0 %v4118
        %v4120 = vpop.xlane.xlu0 %4119
        %v4121 = vrot.slane %v4120, 4
        %v4122 = vadd.f32 %v4120, %v4121
        %v4123 = vrot.slane %v4122, 2
        %v4124 = vadd.f32 %v4122, %v4123
        %v4125 = vrot.slane %v4124, 1
        %v4126 = vadd.f32 %v4124, %v4125
        %s4127 = vtos %v4126
        %s4128 = smul.f32 %s4127, 0.00390625
        %v4129 = vstv %s4116
        %v4130 = vmul.f32 %v4129, %v333
        %v4131 = vadd.f32 %v4130, 0.0
        %s4132 = smul.f32 %s4116, %s4116
        %s4133 = ssub.f32 %s4128, %s4132
        %v4134 = vstv %s4133
        %v4135 = vmul.f32 %v4134, %v333
        %v4136 = vadd.f32 %v4135, 0.0
        %v4137 = vmul.f32 %v4079, %v338
        %v4138 = vsel %vm1767, %v4137, 0.0
        %4139 = vadd.xlane.f32.xlu0 %v4138
        %v4140 = vpop.xlane.xlu0 %4139
        %v4141 = vrot.slane %v4140, 4
        %v4142 = vadd.f32 %v4140, %v4141
        %v4143 = vrot.slane %v4142, 2
        %v4144 = vadd.f32 %v4142, %v4143
        %v4145 = vrot.slane %v4144, 1
        %v4146 = vadd.f32 %v4144, %v4145
        %s4147 = vtos %v4146
        %s4148 = smul.f32 %s4147, 0.00390625
        %v4149 = vmul.f32 %v4104, %v338
        %v4150 = vsel %vm1767, %v4149, 0.0
        %4151 = vadd.xlane.f32.xlu0 %v4150
        %v4152 = vpop.xlane.xlu0 %4151
        %v4153 = vrot.slane %v4152, 4
        %v4154 = vadd.f32 %v4152, %v4153
        %v4155 = vrot.slane %v4154, 2
        %v4156 = vadd.f32 %v4154, %v4155
        %v4157 = vrot.slane %v4156, 1
        %v4158 = vadd.f32 %v4156, %v4157
        %s4159 = vtos %v4158
        %s4160 = smul.f32 %s4159, 0.00390625
        %v4161 = vstv %s4148
        %v4162 = vmul.f32 %v4161, %v338
        %v4163 = vadd.f32 %v4131, %v4162
        %s4164 = smul.f32 %s4148, %s4148
        %s4165 = ssub.f32 %s4160, %s4164
        %v4166 = vstv %s4165
        %v4167 = vmul.f32 %v4166, %v338
        %v4168 = vadd.f32 %v4136, %v4167
        %v4169 = vsub.f32 %v4027, %v4163
        %v4170 = vsub.f32 %v4030, %v4163
        %v4171 = vsub.f32 %v4035, %v4163
        %v4172 = vsub.f32 %v4038, %v4163
        %v4173 = vsub.f32 %v4043, %v4163
        %v4174 = vsub.f32 %v4046, %v4163
        %v4175 = vsub.f32 %v4051, %v4163
        %v4176 = vsub.f32 %v4054, %v4163
        %v4177 = vsub.f32 %v4059, %v4163
        %v4178 = vsub.f32 %v4062, %v4163
        %v4179 = vadd.f32 %v4168, 1e-05
        %v4180 = vrsqrt.pop %v4179
        %v4181 = vmul.f32 %v4169, %v4180
        %v4182 = vmul.f32 %v4170, %v4180
        %v4183 = vmul.f32 %v4171, %v4180
        %v4184 = vmul.f32 %v4172, %v4180
        %v4185 = vmul.f32 %v4173, %v4180
        %v4186 = vmul.f32 %v4174, %v4180
        %v4187 = vmul.f32 %v4175, %v4180
        %v4188 = vmul.f32 %v4176, %v4180
        %v4189 = vmul.f32 %v4177, %v4180
        %v4190 = vmul.f32 %v4178, %v4180
        %v4191 = vlaneseq
        %v4192 = vshrl.u32 %v4191, 7
        %v4193 = vsub.s32 4, %v4192
        %v4194 = vrot.slane %v266, %v4193
        %v4195 = vmul.f32 %v4181, %v4194
        %v4196 = vmul.f32 %v4182, %v4194
        %v4197 = vmul.f32 %v4183, %v4194
        %v4198 = vmul.f32 %v4184, %v4194
        %v4199 = vmul.f32 %v4185, %v4194
        %v4200 = vmul.f32 %v4186, %v4194
        %v4201 = vmul.f32 %v4187, %v4194
        %v4202 = vmul.f32 %v4188, %v4194
        %v4203 = vmul.f32 %v4189, %v4194
        %v4204 = vmul.f32 %v4190, %v4194
        %v4205 = vlaneseq
        %v4206 = vshrl.u32 %v4205, 7
        %v4207 = vsub.s32 5, %v4206
        %v4208 = vrot.slane %v266, %v4207
        %v4209 = vadd.f32 %v4195, %v4208
        %v4210 = vadd.f32 %v4196, %v4208
        %v4211 = vadd.f32 %v4197, %v4208
        %v4212 = vadd.f32 %v4198, %v4208
        %v4213 = vadd.f32 %v4199, %v4208
        %v4214 = vadd.f32 %v4200, %v4208
        %v4215 = vadd.f32 %v4201, %v4208
        %v4216 = vadd.f32 %v4202, %v4208
        %v4217 = vadd.f32 %v4203, %v4208
        %v4218 = vadd.f32 %v4204, %v4208
        %v4219 = vadd.f32 %v3928, %v4209
        %v4220 = vadd.f32 %v3929, %v4210
        %v4221 = vadd.f32 %v3930, %v4211
        %v4222 = vadd.f32 %v3931, %v4212
        %v4223 = vadd.f32 %v3932, %v4213
        %v4224 = vadd.f32 %v3933, %v4214
        %v4225 = vadd.f32 %v3934, %v4215
        %v4226 = vadd.f32 %v3935, %v4216
        %v4227 = vadd.f32 %v3936, %v4217
        %v4228 = vadd.f32 %v3937, %v4218
        %v4229 = vmax.f32 %v4219, 0.0
        %v4230 = vmax.f32 %v4220, 0.0
        %v4231 = vmax.f32 %v4221, 0.0
        %v4232 = vmax.f32 %v4222, 0.0
        %v4233 = vmax.f32 %v4223, 0.0
        %v4234 = vmax.f32 %v4224, 0.0
        %v4235 = vmax.f32 %v4225, 0.0
        %v4236 = vmax.f32 %v4226, 0.0
        %v4237 = vmax.f32 %v4227, 0.0
        %v4238 = vmax.f32 %v4228, 0.0
        %v4239 = vpack.c.bf16 %v4230, %v4229
        %v4240 = vpack.c.bf16 %v4232, %v4231
        %v4241 = vpack.c.bf16 %v4234, %v4233
        %v4242 = vpack.c.bf16 %v4236, %v4235
        %v4243 = vpack.c.bf16 %v4238, %v4237
        %v4249 = vunpack.c.l.b16 %v4239
        %v4250 = vunpack.c.h.b16 %v4239
        %v4251 = vunpack.c.l.b16 %v4240
        %v4252 = vunpack.c.h.b16 %v4240
        %v4253 = vunpack.c.l.b16 %v4241
        %v4254 = vunpack.c.h.b16 %v4241
        %v4255 = vunpack.c.l.b16 %v4242
        %v4256 = vunpack.c.h.b16 %v4242
        %v4257 = vunpack.c.l.b16 %v4243
        %v4258 = vunpack.c.h.b16 %v4243
        %v4259 = vpack.c.b16 %v4249, %v4249
        %v4260 = vpack.c.b16 %v4250, %v4250
        %v4261 = vpack.c.b16 %v4251, %v4251
        %v4262 = vpack.c.b16 %v4252, %v4252
        %v4263 = vpack.c.b16 %v4253, %v4253
        %v4264 = vpack.c.b16 %v4254, %v4254
        %v4265 = vpack.c.b16 %v4255, %v4255
        %v4266 = vpack.c.b16 %v4256, %v4256
        %v4267 = vpack.c.b16 %v4257, %v4257
        %v4268 = vpack.c.b16 %v4258, %v4258
        %4279 = vst [vmem:[%s259] sm:$0xf] %v4259
        %4280 = vst [vmem:[%s259 + $0x4] sm:$0xf] %v4260
        %4281 = vst [vmem:[%s259 + $0x8] sm:$0xf] %v4261
        %4282 = vst [vmem:[%s259 + $0xc] sm:$0xf] %v4262
        %4283 = vst [vmem:[%s259 + $0x10] sm:$0xf] %v4263
        %4284 = vst [vmem:[%s259 + $0x14] sm:$0xf] %v4264
        %4285 = vst [vmem:[%s259 + $0x18] sm:$0xf] %v4265
        %4286 = vst [vmem:[%s259 + $0x1c] sm:$0xf] %v4266
        %4287 = vst [vmem:[%s259 + $0x20] sm:$0xf] %v4267
        %4288 = vst [vmem:[%s259 + $0x24] sm:$0xf] %v4268
        %s4289 = sand.u32 %s160, 1
        %s4290 = scalar_lea.sflag [#allocation5], %s4289
        %s4291 = sand.u32 %s160, 1
        %s4292 = smul.addr %s4291, 40
        %s4293 = scalar_lea.vmem [#allocation6], %s4292
        // Predicated region
        $region49: #{tpu_custom_call.1} parent=43 // pred_check
          %p4294 = pneg %p170
        $region50: #{tpu_custom_call.1} parent=43 // pred_check_branch
          %4296 = sbr.rel (%p4294) target = $region52
        $region51: #{tpu_custom_call.1} parent=43 // pred_region
          %s4298 = ssub.s32 640, 640
          %4299 = vsyncadd %s4290, %s4298
          %s4300 = smul.addr %s21, 10
          %s4301 = smul.addr %s4300, 64
          %s4302 = scalar_lea.hbm %s6, %s4301
          %s4303 = sshll.u32 %s4293, 4
          %s4304 = int_to_ptr.vmem [resolvable:$true] %s4303
          %4309 = dma.vmem_to_hbm [thread:$0]  %s4304, 640, %s4302, %s4290, 64, 64, 4
        $region52: #{tpu_custom_call.1} parent=43 // pred_fallthru
          _
      $region44: #{tpu_custom_call.1} parent=5 // pred_fallthru
        _
      %p4310 = scmp.le.s32.totalorder 2, %s16
      // Predicated region
      $region53: #{tpu_custom_call.1} parent=5 // pred_check
        %p4311 = pneg %p4310
      $region54: #{tpu_custom_call.1} parent=5 // pred_check_branch
        %4313 = sbr.rel (%p4311) target = $region56
      $region55: #{tpu_custom_call.1} parent=5 // pred_region
        %s4314 = ssub.s32 %s16, 2
        // Predicated region
        $region57: #{tpu_custom_call.1} parent=55 // pred_check
          %p4315 = pneg %p176
        $region58: #{tpu_custom_call.1} parent=55 // pred_check_branch
          %4317 = sbr.rel (%p4315) target = $region60
        $region59: #{tpu_custom_call.1} parent=55 // pred_region
          %s4318 = sand.u32 %s161, 1
          %s4319 = scalar_lea.sflag [#allocation5], %s4318
          %s4320 = sand.u32 %s161, 1
          %s4321 = smul.addr %s4320, 40
          %s4322 = scalar_lea.vmem [#allocation6], %s4321
          %4323 = dma.done %s4319, 640
        $region60: #{tpu_custom_call.1} parent=55 // pred_fallthru
          _
      $region56: #{tpu_custom_call.1} parent=5 // pred_fallthru
        _
    $region6: #{tpu_custom_call.1} parent=1 // loop_footer
      %s20 = sadd.s32 1, %s16
    $region7: #{tpu_custom_call.1} parent=1 // loop_footer_branch
      %15 = sbr.rel target = $region3
    $region8: #{tpu_custom_call.1} parent=1 // loop_exit
      _
    %4324 = vsyncpa [#allocation4], 1
    %s4325 = scalar_lea.sflag [#allocation4], 1
    %4326 = vsyncpa %s4325, 1
    %4327 = vsyncpa [#allocation5], 1
    %s4328 = scalar_lea.sflag [#allocation5], 1
    %4329 = vsyncpa %s4328, 1

</llo_original>
